<compile_context>
chip_gen: v5e
topology: v5e:2x2
jax: 0.10.0
libtpu: 0.0.40
codegen_flags: <defaults>
</compile_context>

<pallas_src>
import functools

import jax
import jax.numpy as jnp
from jax import lax
from jax.experimental import pallas as pl
from jax.experimental.pallas import tpu as pltpu

BINS = 3

# contract the edge (sublane) axis of both operands: gt.T @ msg on the MXU
_TRANS_A = (((0,), (0,)), ((), ()))


def _bf16(x):
    return x.astype(jnp.bfloat16)


def _full_spec(shape):
    zeros = (0,) * len(shape)
    return pl.BlockSpec(shape, lambda k: zeros)


def _edge_spec(tile, tail):
    tail = tuple(tail)
    zeros = (0,) * len(tail)
    return pl.BlockSpec((tile,) + tail, lambda k: (k,) + zeros)


def _vmem_limit_bytes():
    # ~48 MiB on 64-MiB v7x, ~96 MiB on 128-MiB v5e/v6e.
    try:
        phys = int(pltpu.get_tpu_info().vmem_capacity_bytes)
    except Exception:  # robust fallback if the query is unavailable
        phys = 64 * 1024 * 1024
    return max(32 * 1024 * 1024, min(phys - (16 << 20), (phys * 3) // 4))


def _pick_edge_tile(n, e, in_dim, h, num_relations, vmem_limit, granule=256):
    """Largest 256-aligned edge tile whose streamed rows fit the VMEM budget."""
    # VMEM-resident node-level state of kernel 1 (inputs, resident outputs,
    # scratch tables / accumulators); weights are negligible.
    node_bytes = (4 * n * in_dim                          # x (f32)
                  + 4 * 4 * n * h                         # 4 resident (n,h) outs
                  + 2 * 2 * n * (2 * num_relations * h)   # XW_src/XW_dst (bf16)
                  + 2 * n * h + 2 * n                     # xp, a_dst (bf16)
                  + 4 * n + 4 * n * h)                    # GAT denom / numerator
    # Bytes streamed per edge row (gs+gt bf16, edge_time f32, relation one-hot),
    # x2 for double buffering, plus ~512 B/row of per-tile f32 temporaries.
    per_row = 2 * (2 * (2 * n) + 4 * (4 * BINS) + 4 * num_relations) + 512
    budget = vmem_limit - node_bytes - (8 << 20)          # 8 MiB headroom
    cap = max(granule, (budget // max(per_row, 1)) // granule * granule)
    e_min = granule * ((e + granule - 1) // granule)
    return int(min(cap, e_min))


# ---------- kernel 1: field_mlp + GAT + geonn_l1 + geonn_l2_1(focr) --------- #

def _edge_fused_kernel(
        # inputs
        x_ref, fw_ref, fb_ref,                       # field_mlp
        gw_ref, attsrc_ref, attdst_ref, gb_ref,      # GATConv
        wj_ref, wi_ref, bm_ref,                      # stacked l1 | l2_1 weights
        beta_ref, lam_ref,                           # edge-time params
        gs_ref, gt_ref, et_ref, oh_ref,              # edge-tiled streams
        # outputs
        focr_ref, nei1_ref, foc1_ref, emb1_ref,
        # scratch
        xwsrc_ref, xwdst_ref, xp_ref, adst_ref, den_ref, num_ref, m_ref,
        *, h, num_relations):
    k = pl.program_id(0)

    @pl.when(k == 0)
    def _():
        # node-level precompute, runs once (f32 MXU; tiny vs. the edge work)
        focr = (jnp.dot(x_ref[...], fw_ref[...],
                        preferred_element_type=jnp.float32) + fb_ref[...])
        focr_ref[...] = focr
        # relation weights folded into the one-hot gathers (associativity)
        xwsrc_ref[...] = _bf16(jnp.dot(focr, wj_ref[...],
                                       preferred_element_type=jnp.float32))
        xwdst_ref[...] = _bf16(jnp.dot(focr, wi_ref[...],
                                       preferred_element_type=jnp.float32))
        # GAT projection + per-node target-side attention term
        xp = jnp.dot(x_ref[...], gw_ref[...], preferred_element_type=jnp.float32)
        xp_ref[...] = _bf16(xp)
        adst_ref[...] = _bf16(jnp.sum(xp * attdst_ref[...], axis=-1,
                                      keepdims=True))
        den_ref[...] = jnp.zeros_like(den_ref)
        num_ref[...] = jnp.zeros_like(num_ref)
        foc1_ref[...] = jnp.zeros_like(foc1_ref)
        emb1_ref[...] = jnp.zeros_like(emb1_ref)
        m_ref[...] = jnp.full_like(m_ref, -1e30)

    gs = gs_ref[...]                                             # (TE,N) bf16
    gt = gt_ref[...]                                             # (TE,N) bf16

    # ---- GeoMRGNN messages for both layers (l1 and l2_1 on focr) ----------- #
    m_all = (jnp.dot(gs, xwsrc_ref[...], preferred_element_type=jnp.float32)
             + jnp.dot(gt, xwdst_ref[...], preferred_element_type=jnp.float32)
             + bm_ref[...])                                      # (TE, 2*R*h)
    logit = jnp.sum(et_ref[...] * beta_ref[...], axis=-1, keepdims=True)
    w_edge = lam_ref[...] * jnp.exp(-logit)                      # (TE,1)
    oh = oh_ref[...]                                             # (TE,R)
    te = gs.shape[0]
    msg1 = jnp.zeros((te, h), jnp.float32)
    msg2 = jnp.zeros((te, h), jnp.float32)
    for r in range(num_relations):
        sel = oh[:, r:r + 1]
        msg1 = msg1 + sel * m_all[:, r * h:(r + 1) * h]
        msg2 = msg2 + sel * m_all[:, (num_relations + r) * h:
                                   (num_relations + r + 1) * h]
    # scatter-add to target nodes (contract the edge axis of gt on the MXU)
    foc1_ref[...] += lax.dot_general(gt, _bf16(w_edge * msg1), _TRANS_A,
                                     preferred_element_type=jnp.float32)
    emb1_ref[...] += lax.dot_general(gt, _bf16(w_edge * msg2), _TRANS_A,
                                     preferred_element_type=jnp.float32)

    # ---- GAT edge work: online softmax with a running global max ----------- #
    xp_src = jnp.dot(gs, xp_ref[...], preferred_element_type=jnp.float32)
    a_src_e = jnp.sum(xp_src * attsrc_ref[...], axis=-1, keepdims=True)
    a_dst_e = jnp.dot(gt, adst_ref[...], preferred_element_type=jnp.float32)
    score = a_src_e + a_dst_e
    score = jnp.where(score > 0, score, 0.2 * score)             # LeakyReLU(0.2)
    m_old = m_ref[...]                                           # (1,1)
    m_new = jnp.maximum(m_old, jnp.max(score, axis=0, keepdims=True))
    rescale = jnp.exp(m_old - m_new)                             # (1,1)
    es = jnp.exp(score - m_new)                                  # (TE,1)
    den_ref[...] = den_ref[...] * rescale + lax.dot_general(
        gt, _bf16(es), _TRANS_A, preferred_element_type=jnp.float32)
    num_ref[...] = num_ref[...] * rescale + lax.dot_general(
        gt, _bf16(es * xp_src), _TRANS_A, preferred_element_type=jnp.float32)
    m_ref[...] = m_new

    @pl.when(k == pl.num_programs(0) - 1)
    def _():
        den = den_ref[...]
        safe = jnp.where(den > 0, den, 1.0)       # isolated nodes -> bias only
        nei1_ref[...] = num_ref[...] / safe + gb_ref[...]


def _edge_fused_call(x, p, wj12, wi12, bm12, beta_row, gs, gt, et, oh,
                     *, num_relations, edge_tile, vmem_limit):
    n, in_dim = x.shape
    h = p["field_w"].shape[1]
    e_pad = gs.shape[0]
    r2h = wj12.shape[1]                    # 2 * R * h
    nb = 4 * BINS
    nrel = oh.shape[1]
    grid = (e_pad // edge_tile,)
    kern = functools.partial(_edge_fused_kernel, h=h,
                             num_relations=num_relations)

    flops = 2 * e_pad * n * (2 * r2h + 3 * h + 2) + 6 * n * in_dim * h
    cost = pl.CostEstimate(
        flops=int(flops), transcendentals=int(2 * e_pad),
        bytes_accessed=int(2 * (gs.size + gt.size)
                           + 4 * (et.size + oh.size + x.size + 4 * n * h)))

    out_shape = tuple(jax.ShapeDtypeStruct((n, h), jnp.float32)
                      for _ in range(4))

    return pl.pallas_call(
        kern,
        out_shape=out_shape,
        grid_spec=pltpu.PrefetchScalarGridSpec(
            num_scalar_prefetch=0,
            grid=grid,
            in_specs=[
                _full_spec((n, in_dim)),            # x
                _full_spec((in_dim, h)),            # field_w
                _full_spec((1, h)),                 # field_b
                _full_spec((in_dim, h)),            # gat_w
                _full_spec((1, h)),                 # att_src
                _full_spec((1, h)),                 # att_dst
                _full_spec((1, h)),                 # gat_bias
                _full_spec((h, r2h)),               # wj (l1 | l2_1)
                _full_spec((h, r2h)),               # wi (l1 | l2_1)
                _full_spec((1, r2h)),               # bias (l1 | l2_1)
                _full_spec((1, nb)),                # beta
                _full_spec((1, 1)),                 # lambda_sym
                _edge_spec(edge_tile, (n,)),        # gs
                _edge_spec(edge_tile, (n,)),        # gt
                _edge_spec(edge_tile, (nb,)),       # edge_time
                _edge_spec(edge_tile, (nrel,)),     # relation one-hot
            ],
            out_specs=[_full_spec((n, h)) for _ in range(4)],
            scratch_shapes=[
                pltpu.VMEM((n, r2h), jnp.bfloat16),   # XW_src
                pltpu.VMEM((n, r2h), jnp.bfloat16),   # XW_dst
                pltpu.VMEM((n, h), jnp.bfloat16),     # W x (GAT)
                pltpu.VMEM((n, 1), jnp.bfloat16),     # att_dst . (W x)
                pltpu.VMEM((n, 1), jnp.float32),      # GAT softmax denom
                pltpu.VMEM((n, h), jnp.float32),      # GAT numerator
                pltpu.VMEM((1, 1), jnp.float32),      # running global max
            ]),
        compiler_params=pltpu.CompilerParams(
            dimension_semantics=("arbitrary",),       # edge axis = reduction
            vmem_limit_bytes=vmem_limit),
        cost_estimate=cost,
    )(x, p["field_w"], p["field_b"], p["gat_w"], p["gat_att_src"],
      p["gat_att_dst"], p["gat_bias"], wj12, wi12, bm12, beta_row,
      p["lambda_sym"], gs, gt, et, oh)


# -------------- kernel 2: geonn_l2_1(emb1) + output MLP combine ------------- #

def _combine_kernel(
        # inputs
        emb1_ref, wj_ref, wi_ref, bm_ref, beta_ref, lam_ref,
        gs_ref, gt_ref, et_ref, oh_ref,
        focr_ref, nei1_ref, foc1_ref,
        w1_ref, c1_ref, w2_ref, c2_ref, w3_ref, c3_ref, w4_ref, c4_ref,
        wall_ref, call_ref,
        # outputs
        out_ref,
        # scratch
        xwsrc_ref, xwdst_ref, acc_ref,
        *, h, num_relations):
    k = pl.program_id(0)

    @pl.when(k == 0)
    def _():
        emb = emb1_ref[...]
        xwsrc_ref[...] = _bf16(jnp.dot(emb, wj_ref[...],
                                       preferred_element_type=jnp.float32))
        xwdst_ref[...] = _bf16(jnp.dot(emb, wi_ref[...],
                                       preferred_element_type=jnp.float32))
        acc_ref[...] = jnp.zeros_like(acc_ref)

    gs = gs_ref[...]
    gt = gt_ref[...]
    m_all = (jnp.dot(gs, xwsrc_ref[...], preferred_element_type=jnp.float32)
             + jnp.dot(gt, xwdst_ref[...], preferred_element_type=jnp.float32)
             + bm_ref[...])                                      # (TE, R*h)
    logit = jnp.sum(et_ref[...] * beta_ref[...], axis=-1, keepdims=True)
    w_edge = lam_ref[...] * jnp.exp(-logit)
    oh = oh_ref[...]
    msg = jnp.zeros((gs.shape[0], h), jnp.float32)
    for r in range(num_relations):
        msg = msg + oh[:, r:r + 1] * m_all[:, r * h:(r + 1) * h]
    acc_ref[...] += lax.dot_general(gt, _bf16(w_edge * msg), _TRANS_A,
                                    preferred_element_type=jnp.float32)

    @pl.when(k == pl.num_programs(0) - 1)
    def _():
        def lrelu(z):                 # nn.LeakyReLU default slope = 0.01
            return jnp.where(z > 0, z, 0.01 * z)

        def lin(t, w_r, b_r):
            return (jnp.dot(t, w_r[...], preferred_element_type=jnp.float32)
                    + b_r[...])

        a = focr_ref[...]
        b = nei1_ref[...]
        c = foc1_ref[...]
        d = acc_ref[...]                                         # node_foc2
        y = (lrelu(lin(a, w1_ref, c1_ref)) + lrelu(lin(b, w2_ref, c2_ref))
             + lrelu(lin(c, w3_ref, c3_ref)) + lrelu(lin(d, w4_ref, c4_ref)))
        # out_all on cat([a,b,c,d]) without materializing the concat:
        yall = (jnp.dot(a, wall_ref[0 * h:1 * h, :],
                        preferred_element_type=jnp.float32)
                + jnp.dot(b, wall_ref[1 * h:2 * h, :],
                          preferred_element_type=jnp.float32)
                + jnp.dot(c, wall_ref[2 * h:3 * h, :],
                          preferred_element_type=jnp.float32)
                + jnp.dot(d, wall_ref[3 * h:4 * h, :],
                          preferred_element_type=jnp.float32)
                + call_ref[...])
        out_ref[...] = y + lrelu(yall)


def _combine_call(emb1, wj2, wi2, bm2, beta_row, gs, gt, et, oh,
                  focr, nei1, foc1, p, *, num_relations, edge_tile, vmem_limit):
    n, h = emb1.shape
    e_pad = gs.shape[0]
    rh = wj2.shape[1]
    nb = 4 * BINS
    nrel = oh.shape[1]
    out_dim = p["out1_w"].shape[1]
    grid = (e_pad // edge_tile,)
    kern = functools.partial(_combine_kernel, h=h, num_relations=num_relations)

    flops = 2 * e_pad * n * (2 * rh + h) + 16 * n * h * out_dim
    cost = pl.CostEstimate(
        flops=int(flops), transcendentals=int(e_pad),
        bytes_accessed=int(2 * (gs.size + gt.size)
                           + 4 * (et.size + oh.size + 4 * n * h
                                  + n * out_dim)))

    return pl.pallas_call(
        kern,
        out_shape=jax.ShapeDtypeStruct((n, out_dim), jnp.float32),
        grid_spec=pltpu.PrefetchScalarGridSpec(
            num_scalar_prefetch=0,
            grid=grid,
            in_specs=[
                _full_spec((n, h)),                 # emb1
                _full_spec((h, rh)),                # wj (l2_1)
                _full_spec((h, rh)),                # wi (l2_1)
                _full_spec((1, rh)),                # bias (l2_1)
                _full_spec((1, nb)),                # beta
                _full_spec((1, 1)),                 # lambda_sym
                _edge_spec(edge_tile, (n,)),        # gs
                _edge_spec(edge_tile, (n,)),        # gt
                _edge_spec(edge_tile, (nb,)),       # edge_time
                _edge_spec(edge_tile, (nrel,)),     # relation one-hot
                _full_spec((n, h)),                 # node_focr
                _full_spec((n, h)),                 # node_nei1
                _full_spec((n, h)),                 # node_foc1
                _full_spec((h, out_dim)), _full_spec((1, out_dim)),
                _full_spec((h, out_dim)), _full_spec((1, out_dim)),
                _full_spec((h, out_dim)), _full_spec((1, out_dim)),
                _full_spec((h, out_dim)), _full_spec((1, out_dim)),
                _full_spec((4 * h, out_dim)), _full_spec((1, out_dim)),
            ],
            out_specs=_full_spec((n, out_dim)),
            scratch_shapes=[
                pltpu.VMEM((n, rh), jnp.bfloat16),    # emb1 @ Wj
                pltpu.VMEM((n, rh), jnp.bfloat16),    # emb1 @ Wi
                pltpu.VMEM((n, h), jnp.float32),      # node_foc2 accumulator
            ]),
        compiler_params=pltpu.CompilerParams(
            dimension_semantics=("arbitrary",),
            vmem_limit_bytes=vmem_limit),
        cost_estimate=cost,
    )(emb1, wj2, wi2, bm2, beta_row, p["lambda_sym"], gs, gt, et, oh,
      focr, nei1, foc1,
      p["out1_w"], p["out1_b"], p["out2_w"], p["out2_b"],
      p["out3_w"], p["out3_b"], p["out4_w"], p["out4_b"],
      p["outall_w"], p["outall_b"])


# --------------------------- parameter setup -------------------------------- #

def init_params(key, in_dim, h_dim, out_dim, num_relations):
    ks = iter(jax.random.split(key, 40))
    nrm = lambda shape, scale=0.1: (scale * jax.random.normal(next(ks), shape)
                                    ).astype(jnp.float32)
    p = {}
    # nn.Parameter lambda_sym (1,1), beta (4*BINS, 1) — xavier_normal_
    p["lambda_sym"] = (jax.random.normal(next(ks), (1, 1)) *
                       jnp.sqrt(2.0 / 2.0)).astype(jnp.float32)
    p["beta"] = (jax.random.normal(next(ks), (4 * BINS, 1)) *
                 jnp.sqrt(2.0 / (4 * BINS + 1))).astype(jnp.float32)
    # field_mlp: Linear(in_dim, h_dim); weights stored as [in, out]
    p["field_w"] = nrm((in_dim, h_dim))
    p["field_b"] = nrm((1, h_dim))
    # GATConv(in_dim, h_dim, heads=1, add_self_loops=False)
    p["gat_w"] = nrm((in_dim, h_dim))
    p["gat_att_src"] = nrm((1, h_dim))
    p["gat_att_dst"] = nrm((1, h_dim))
    p["gat_bias"] = nrm((1, h_dim))
    # GeoMRGNN layers (l1, l2_1): per-relation Linear(2*h_dim, h_dim)
    for name in ("l1", "l2_1"):
        p[f"{name}_wr"] = nrm((num_relations, 2 * h_dim, h_dim))
        p[f"{name}_br"] = nrm((num_relations, 1, h_dim))
    # NOTE: geonn_l2_2 exists in __init__ but is unused in forward; omitted.
    # output MLPs
    for name in ("out1", "out2", "out3", "out4"):
        p[f"{name}_w"] = nrm((h_dim, out_dim))
        p[f"{name}_b"] = nrm((1, out_dim))
    p["outall_w"] = nrm((4 * h_dim, out_dim))
    p["outall_b"] = nrm((1, out_dim))
    return p


# ------------------------------ forward -------------------------------------- #

def multi_relation_gnn_forward(params, x, edge_index, edge_type, edge_time,
                               num_relations, *, edge_tile=None):
    n, in_dim = x.shape
    e = edge_index.shape[1]
    h = params["field_w"].shape[1]

    vmem_limit = _vmem_limit_bytes()
    if edge_tile is None:
        edge_tile = _pick_edge_tile(n, e, in_dim, h, num_relations, vmem_limit)
    e_pad = edge_tile * ((e + edge_tile - 1) // edge_tile)

    # --- glue (plain JAX): bf16 one-hot gather/scatter operators ------------ #
    # TODO(synk): replace with index-based gathers at production N/E.
    src = edge_index[0]
    tgt = edge_index[1]
    gs = jax.nn.one_hot(src, n, dtype=jnp.bfloat16)          # (E,N) gather src
    gt = jax.nn.one_hot(tgt, n, dtype=jnp.bfloat16)          # (E,N) gather/scatter tgt
    rel_oh = jax.nn.one_hot(edge_type.reshape(-1), num_relations,
                            dtype=jnp.float32)               # (E,R)
    et = edge_time.astype(jnp.float32)

    # pad the edge axis to a multiple of the tile (zero one-hot rows are inert)
    if e_pad != e:
        pad = ((0, e_pad - e), (0, 0))
        gs = jnp.pad(gs, pad)
        gt = jnp.pad(gt, pad)
        rel_oh = jnp.pad(rel_oh, pad)
        et = jnp.pad(et, pad)

    beta_row = params["beta"].reshape(1, -1)                  # (1, 4*BINS)

    def stack_rel(wr, br):
        # per-relation Linear(2h, h): split x_j / x_i halves, stack relations
        # along the output axis -> (h, R*h) each (no in-kernel concat needed).
        wj = jnp.concatenate([wr[r, :h, :] for r in range(num_relations)], axis=1)
        wi = jnp.concatenate([wr[r, h:, :] for r in range(num_relations)], axis=1)
        bm = jnp.concatenate([br[r] for r in range(num_relations)], axis=1)
        return wj, wi, bm

    wj1, wi1, bm1 = stack_rel(params["l1_wr"], params["l1_br"])
    wj2, wi2, bm2 = stack_rel(params["l2_1_wr"], params["l2_1_br"])
    # both GeoMRGNN layers stacked along the output axis for kernel 1
    wj12 = jnp.concatenate([wj1, wj2], axis=1)                # (h, 2*R*h)
    wi12 = jnp.concatenate([wi1, wi2], axis=1)
    bm12 = jnp.concatenate([bm1, bm2], axis=1)

    node_focr, node_nei1, node_foc1, node_emb1 = _edge_fused_call(
        x, params, wj12, wi12, bm12, beta_row, gs, gt, et, rel_oh,
        num_relations=num_relations, edge_tile=edge_tile, vmem_limit=vmem_limit)

    return _combine_call(
        node_emb1, wj2, wi2, bm2, beta_row, gs, gt, et, rel_oh,
        node_focr, node_nei1, node_foc1, params,
        num_relations=num_relations, edge_tile=edge_tile, vmem_limit=vmem_limit)


# --------------------------------- main --------------------------------------- #

if __name__ == "__main__":
    N, IN_DIM, H_DIM, OUT_DIM, NUM_REL, E = 16, 8, 8, 4, 3, 32

    key = jax.random.PRNGKey(0)
    k_x, k_ei, k_et, k_time, k_p = jax.random.split(key, 5)

    x = jax.random.normal(k_x, (N, IN_DIM), dtype=jnp.float32)
    edge_index = jax.random.randint(k_ei, (2, E), 0, N, dtype=jnp.int32)
    edge_type = jax.random.randint(k_et, (E, 1), 0, NUM_REL, dtype=jnp.int32)
    edge_time = jax.random.uniform(k_time, (E, 4 * BINS), dtype=jnp.float32)

    params = init_params(k_p, IN_DIM, H_DIM, OUT_DIM, NUM_REL)

    fwd = jax.jit(functools.partial(multi_relation_gnn_forward,
                                    num_relations=NUM_REL))
    out = fwd(params, x, edge_index, edge_type, edge_time)
    out = jax.block_until_ready(out)
    assert out.shape == (N, OUT_DIM)
    assert bool(jnp.all(jnp.isfinite(out)))
    print("KERNEL_OK")
</pallas_src>

<mosaic_0001>
module attributes {stable_mosaic.version = 11 : i64} {
  func.func @_edge_fused_kernel(%arg0: i32, %arg1: memref<16x8xf32, #tpu.memory_space<vmem>>, %arg2: memref<8x8xf32, #tpu.memory_space<vmem>>, %arg3: memref<1x8xf32, #tpu.memory_space<vmem>>, %arg4: memref<8x8xf32, #tpu.memory_space<vmem>>, %arg5: memref<1x8xf32, #tpu.memory_space<vmem>>, %arg6: memref<1x8xf32, #tpu.memory_space<vmem>>, %arg7: memref<1x8xf32, #tpu.memory_space<vmem>>, %arg8: memref<8x48xf32, #tpu.memory_space<vmem>>, %arg9: memref<8x48xf32, #tpu.memory_space<vmem>>, %arg10: memref<1x48xf32, #tpu.memory_space<vmem>>, %arg11: memref<1x12xf32, #tpu.memory_space<vmem>>, %arg12: memref<1x1xf32, #tpu.memory_space<vmem>>, %arg13: memref<256x16xbf16, #tpu.memory_space<vmem>>, %arg14: memref<256x16xbf16, #tpu.memory_space<vmem>>, %arg15: memref<256x12xf32, #tpu.memory_space<vmem>>, %arg16: memref<256x3xf32, #tpu.memory_space<vmem>>, %arg17: memref<16x8xf32, #tpu.memory_space<vmem>>, %arg18: memref<16x8xf32, #tpu.memory_space<vmem>>, %arg19: memref<16x8xf32, #tpu.memory_space<vmem>>, %arg20: memref<16x8xf32, #tpu.memory_space<vmem>>, %arg21: memref<16x48xbf16, #tpu.memory_space<vmem>>, %arg22: memref<16x48xbf16, #tpu.memory_space<vmem>>, %arg23: memref<16x8xbf16, #tpu.memory_space<vmem>>, %arg24: memref<16x1xbf16, #tpu.memory_space<vmem>>, %arg25: memref<16x1xf32, #tpu.memory_space<vmem>>, %arg26: memref<16x8xf32, #tpu.memory_space<vmem>>, %arg27: memref<1x1xf32, #tpu.memory_space<vmem>>) attributes {dimension_semantics = [#tpu.dimension_semantics<arbitrary>], iteration_bounds = array<i64: 1>, scalar_prefetch = 0 : i64, scratch_operands = 7 : i64, tpu.core_type = #tpu.core_type<tc>, window_params = [{pipeline_mode = #tpu.pipeline_mode<synchronous>, transform_indices = @transform_0, window_bounds = array<i64: 16, 8>}, {pipeline_mode = #tpu.pipeline_mode<synchronous>, transform_indices = @transform_1, window_bounds = array<i64: 8, 8>}, {pipeline_mode = #tpu.pipeline_mode<synchronous>, transform_indices = @transform_2, window_bounds = array<i64: 1, 8>}, {pipeline_mode = #tpu.pipeline_mode<synchronous>, transform_indices = @transform_3, window_bounds = array<i64: 8, 8>}, {pipeline_mode = #tpu.pipeline_mode<synchronous>, transform_indices = @transform_4, window_bounds = array<i64: 1, 8>}, {pipeline_mode = #tpu.pipeline_mode<synchronous>, transform_indices = @transform_5, window_bounds = array<i64: 1, 8>}, {pipeline_mode = #tpu.pipeline_mode<synchronous>, transform_indices = @transform_6, window_bounds = array<i64: 1, 8>}, {pipeline_mode = #tpu.pipeline_mode<synchronous>, transform_indices = @transform_7, window_bounds = array<i64: 8, 48>}, {pipeline_mode = #tpu.pipeline_mode<synchronous>, transform_indices = @transform_8, window_bounds = array<i64: 8, 48>}, {pipeline_mode = #tpu.pipeline_mode<synchronous>, transform_indices = @transform_9, window_bounds = array<i64: 1, 48>}, {pipeline_mode = #tpu.pipeline_mode<synchronous>, transform_indices = @transform_10, window_bounds = array<i64: 1, 12>}, {pipeline_mode = #tpu.pipeline_mode<synchronous>, transform_indices = @transform_11, window_bounds = array<i64: 1, 1>}, {transform_indices = @transform_12, window_bounds = array<i64: 256, 16>}, {transform_indices = @transform_13, window_bounds = array<i64: 256, 16>}, {transform_indices = @transform_14, window_bounds = array<i64: 256, 12>}, {transform_indices = @transform_15, window_bounds = array<i64: 256, 3>}, {pipeline_mode = #tpu.pipeline_mode<synchronous>, transform_indices = @transform_16, window_bounds = array<i64: 16, 8>}, {pipeline_mode = #tpu.pipeline_mode<synchronous>, transform_indices = @transform_17, window_bounds = array<i64: 16, 8>}, {pipeline_mode = #tpu.pipeline_mode<synchronous>, transform_indices = @transform_18, window_bounds = array<i64: 16, 8>}, {pipeline_mode = #tpu.pipeline_mode<synchronous>, transform_indices = @transform_19, window_bounds = array<i64: 16, 8>}]} {
    %c0_i32 = arith.constant 0 : i32
    %0 = arith.cmpi eq, %arg0, %c0_i32 : i32
    %1 = arith.extui %0 : i1 to i32
    %c0_i32_0 = arith.constant 0 : i32
    %2 = arith.cmpi ne, %1, %c0_i32_0 : i32
    scf.if %2 {
      %c0_61 = arith.constant 0 : index
      %c0_62 = arith.constant 0 : index
      %113 = vector.load %arg1[%c0_61, %c0_62] : memref<16x8xf32, #tpu.memory_space<vmem>>, vector<16x8xf32>
      %c0_63 = arith.constant 0 : index
      %c0_64 = arith.constant 0 : index
      %114 = vector.load %arg2[%c0_63, %c0_64] : memref<8x8xf32, #tpu.memory_space<vmem>>, vector<8x8xf32>
      %cst_65 = arith.constant dense<0.000000e+00> : vector<16x8xf32>
      %115 = tpu.matmul %113, %114, %cst_65 {dimension_numbers = #tpu.dot_dimension_numbers<[1], [0], [0], [1], [0, 0, 1, 1], [], []>} : vector<16x8xf32>, vector<8x8xf32>, vector<16x8xf32> -> vector<16x8xf32>
      %c0_66 = arith.constant 0 : index
      %c0_67 = arith.constant 0 : index
      %116 = vector.load %arg3[%c0_66, %c0_67] : memref<1x8xf32, #tpu.memory_space<vmem>>, vector<1x8xf32>
      %117 = vector.broadcast %116 : vector<1x8xf32> to vector<16x8xf32>
      %118 = arith.addf %115, %117 : vector<16x8xf32>
      %c0_68 = arith.constant 0 : index
      %c0_69 = arith.constant 0 : index
      %119 = vector.load %arg17[%c0_68, %c0_69] : memref<16x8xf32, #tpu.memory_space<vmem>>, vector<16x8xf32>
      tpu.vector_store %arg17[%c0_68, %c0_69], %118 {strides = array<i32>} : memref<16x8xf32, #tpu.memory_space<vmem>>, vector<16x8xf32>,
      %c0_70 = arith.constant 0 : index
      %c0_71 = arith.constant 0 : index
      %120 = vector.load %arg8[%c0_70, %c0_71] : memref<8x48xf32, #tpu.memory_space<vmem>>, vector<8x48xf32>
      %cst_72 = arith.constant dense<0.000000e+00> : vector<16x48xf32>
      %121 = tpu.matmul %118, %120, %cst_72 {dimension_numbers = #tpu.dot_dimension_numbers<[1], [0], [0], [1], [0, 0, 1, 1], [], []>} : vector<16x8xf32>, vector<8x48xf32>, vector<16x48xf32> -> vector<16x48xf32>
      %122 = arith.truncf %121 : vector<16x48xf32> to vector<16x48xbf16>
      %c0_73 = arith.constant 0 : index
      %c0_74 = arith.constant 0 : index
      %123 = vector.load %arg21[%c0_73, %c0_74] : memref<16x48xbf16, #tpu.memory_space<vmem>>, vector<16x48xbf16>
      tpu.vector_store %arg21[%c0_73, %c0_74], %122 {strides = array<i32>} : memref<16x48xbf16, #tpu.memory_space<vmem>>, vector<16x48xbf16>,
      %c0_75 = arith.constant 0 : index
      %c0_76 = arith.constant 0 : index
      %124 = vector.load %arg9[%c0_75, %c0_76] : memref<8x48xf32, #tpu.memory_space<vmem>>, vector<8x48xf32>
      %cst_77 = arith.constant dense<0.000000e+00> : vector<16x48xf32>
      %125 = tpu.matmul %118, %124, %cst_77 {dimension_numbers = #tpu.dot_dimension_numbers<[1], [0], [0], [1], [0, 0, 1, 1], [], []>} : vector<16x8xf32>, vector<8x48xf32>, vector<16x48xf32> -> vector<16x48xf32>
      %126 = arith.truncf %125 : vector<16x48xf32> to vector<16x48xbf16>
      %c0_78 = arith.constant 0 : index
      %c0_79 = arith.constant 0 : index
      %127 = vector.load %arg22[%c0_78, %c0_79] : memref<16x48xbf16, #tpu.memory_space<vmem>>, vector<16x48xbf16>
      tpu.vector_store %arg22[%c0_78, %c0_79], %126 {strides = array<i32>} : memref<16x48xbf16, #tpu.memory_space<vmem>>, vector<16x48xbf16>,
      %c0_80 = arith.constant 0 : index
      %c0_81 = arith.constant 0 : index
      %128 = vector.load %arg1[%c0_80, %c0_81] : memref<16x8xf32, #tpu.memory_space<vmem>>, vector<16x8xf32>
      %c0_82 = arith.constant 0 : index
      %c0_83 = arith.constant 0 : index
      %129 = vector.load %arg4[%c0_82, %c0_83] : memref<8x8xf32, #tpu.memory_space<vmem>>, vector<8x8xf32>
      %cst_84 = arith.constant dense<0.000000e+00> : vector<16x8xf32>
      %130 = tpu.matmul %128, %129, %cst_84 {dimension_numbers = #tpu.dot_dimension_numbers<[1], [0], [0], [1], [0, 0, 1, 1], [], []>} : vector<16x8xf32>, vector<8x8xf32>, vector<16x8xf32> -> vector<16x8xf32>
      %131 = arith.truncf %130 : vector<16x8xf32> to vector<16x8xbf16>
      %c0_85 = arith.constant 0 : index
      %c0_86 = arith.constant 0 : index
      %132 = vector.load %arg23[%c0_85, %c0_86] : memref<16x8xbf16, #tpu.memory_space<vmem>>, vector<16x8xbf16>
      tpu.vector_store %arg23[%c0_85, %c0_86], %131 {strides = array<i32>} : memref<16x8xbf16, #tpu.memory_space<vmem>>, vector<16x8xbf16>,
      %c0_87 = arith.constant 0 : index
      %c0_88 = arith.constant 0 : index
      %133 = vector.load %arg6[%c0_87, %c0_88] : memref<1x8xf32, #tpu.memory_space<vmem>>, vector<1x8xf32>
      %134 = vector.broadcast %133 : vector<1x8xf32> to vector<16x8xf32>
      %135 = arith.mulf %130, %134 : vector<16x8xf32>
      %cst_89 = arith.constant dense<0.000000e+00> : vector<16xf32>
      %136 = vector.multi_reduction <add>, %135, %cst_89 [1] : vector<16x8xf32> to vector<16xf32>
      %137 = vector.shape_cast %136 : vector<16xf32> to vector<16x1xf32>
      %138 = arith.truncf %137 : vector<16x1xf32> to vector<16x1xbf16>
      %c0_90 = arith.constant 0 : index
      %c0_91 = arith.constant 0 : index
      %139 = vector.load %arg24[%c0_90, %c0_91] : memref<16x1xbf16, #tpu.memory_space<vmem>>, vector<16x1xbf16>
      tpu.vector_store %arg24[%c0_90, %c0_91], %138 {strides = array<i32>} : memref<16x1xbf16, #tpu.memory_space<vmem>>, vector<16x1xbf16>,
      %cst_92 = arith.constant 0.000000e+00 : f32
      %140 = vector.broadcast %cst_92 : f32 to vector<16x1xf32>
      %c0_93 = arith.constant 0 : index
      %c0_94 = arith.constant 0 : index
      %141 = vector.load %arg25[%c0_93, %c0_94] : memref<16x1xf32, #tpu.memory_space<vmem>>, vector<16x1xf32>
      tpu.vector_store %arg25[%c0_93, %c0_94], %140 {strides = array<i32>} : memref<16x1xf32, #tpu.memory_space<vmem>>, vector<16x1xf32>,
      %cst_95 = arith.constant 0.000000e+00 : f32
      %142 = vector.broadcast %cst_95 : f32 to vector<16x8xf32>
      %c0_96 = arith.constant 0 : index
      %c0_97 = arith.constant 0 : index
      %143 = vector.load %arg26[%c0_96, %c0_97] : memref<16x8xf32, #tpu.memory_space<vmem>>, vector<16x8xf32>
      tpu.vector_store %arg26[%c0_96, %c0_97], %142 {strides = array<i32>} : memref<16x8xf32, #tpu.memory_space<vmem>>, vector<16x8xf32>,
      %cst_98 = arith.constant 0.000000e+00 : f32
      %144 = vector.broadcast %cst_98 : f32 to vector<16x8xf32>
      %c0_99 = arith.constant 0 : index
      %c0_100 = arith.constant 0 : index
      %145 = vector.load %arg19[%c0_99, %c0_100] : memref<16x8xf32, #tpu.memory_space<vmem>>, vector<16x8xf32>
      tpu.vector_store %arg19[%c0_99, %c0_100], %144 {strides = array<i32>} : memref<16x8xf32, #tpu.memory_space<vmem>>, vector<16x8xf32>,
      %cst_101 = arith.constant 0.000000e+00 : f32
      %146 = vector.broadcast %cst_101 : f32 to vector<16x8xf32>
      %c0_102 = arith.constant 0 : index
      %c0_103 = arith.constant 0 : index
      %147 = vector.load %arg20[%c0_102, %c0_103] : memref<16x8xf32, #tpu.memory_space<vmem>>, vector<16x8xf32>
      tpu.vector_store %arg20[%c0_102, %c0_103], %146 {strides = array<i32>} : memref<16x8xf32, #tpu.memory_space<vmem>>, vector<16x8xf32>,
      %cst_104 = arith.constant -1.000000e+30 : f32
      %148 = vector.broadcast %cst_104 : f32 to vector<1x1xf32>
      %c0_105 = arith.constant 0 : index
      %c0_106 = arith.constant 0 : index
      %149 = vector.load %arg27[%c0_105, %c0_106] : memref<1x1xf32, #tpu.memory_space<vmem>>, vector<1x1xf32>
      tpu.vector_store %arg27[%c0_105, %c0_106], %148 {strides = array<i32>} : memref<1x1xf32, #tpu.memory_space<vmem>>, vector<1x1xf32>,
    } else {
    }
    %c0 = arith.constant 0 : index
    %c0_1 = arith.constant 0 : index
    %3 = vector.load %arg13[%c0, %c0_1] : memref<256x16xbf16, #tpu.memory_space<vmem>>, vector<256x16xbf16>
    %c0_2 = arith.constant 0 : index
    %c0_3 = arith.constant 0 : index
    %4 = vector.load %arg14[%c0_2, %c0_3] : memref<256x16xbf16, #tpu.memory_space<vmem>>, vector<256x16xbf16>
    %c0_4 = arith.constant 0 : index
    %c0_5 = arith.constant 0 : index
    %5 = vector.load %arg21[%c0_4, %c0_5] : memref<16x48xbf16, #tpu.memory_space<vmem>>, vector<16x48xbf16>
    %cst = arith.constant dense<0.000000e+00> : vector<256x48xf32>
    %6 = tpu.matmul %3, %5, %cst {dimension_numbers = #tpu.dot_dimension_numbers<[1], [0], [0], [1], [0, 0, 1, 1], [], []>} : vector<256x16xbf16>, vector<16x48xbf16>, vector<256x48xf32> -> vector<256x48xf32>
    %c0_6 = arith.constant 0 : index
    %c0_7 = arith.constant 0 : index
    %7 = vector.load %arg22[%c0_6, %c0_7] : memref<16x48xbf16, #tpu.memory_space<vmem>>, vector<16x48xbf16>
    %cst_8 = arith.constant dense<0.000000e+00> : vector<256x48xf32>
    %8 = tpu.matmul %4, %7, %cst_8 {dimension_numbers = #tpu.dot_dimension_numbers<[1], [0], [0], [1], [0, 0, 1, 1], [], []>} : vector<256x16xbf16>, vector<16x48xbf16>, vector<256x48xf32> -> vector<256x48xf32>
    %9 = arith.addf %6, %8 : vector<256x48xf32>
    %c0_9 = arith.constant 0 : index
    %c0_10 = arith.constant 0 : index
    %10 = vector.load %arg10[%c0_9, %c0_10] : memref<1x48xf32, #tpu.memory_space<vmem>>, vector<1x48xf32>
    %11 = vector.broadcast %10 : vector<1x48xf32> to vector<256x48xf32>
    %12 = arith.addf %9, %11 : vector<256x48xf32>
    %c0_11 = arith.constant 0 : index
    %c0_12 = arith.constant 0 : index
    %13 = vector.load %arg15[%c0_11, %c0_12] : memref<256x12xf32, #tpu.memory_space<vmem>>, vector<256x12xf32>
    %c0_13 = arith.constant 0 : index
    %c0_14 = arith.constant 0 : index
    %14 = vector.load %arg11[%c0_13, %c0_14] : memref<1x12xf32, #tpu.memory_space<vmem>>, vector<1x12xf32>
    %15 = vector.broadcast %14 : vector<1x12xf32> to vector<256x12xf32>
    %16 = arith.mulf %13, %15 : vector<256x12xf32>
    %cst_15 = arith.constant dense<0.000000e+00> : vector<256xf32>
    %17 = vector.multi_reduction <add>, %16, %cst_15 [1] : vector<256x12xf32> to vector<256xf32>
    %18 = vector.shape_cast %17 : vector<256xf32> to vector<256x1xf32>
    %c0_16 = arith.constant 0 : index
    %c0_17 = arith.constant 0 : index
    %19 = vector.load %arg12[%c0_16, %c0_17] : memref<1x1xf32, #tpu.memory_space<vmem>>, vector<1x1xf32>
    %cst_18 = arith.constant 0.000000e+00 : f32
    %20 = vector.broadcast %cst_18 : f32 to vector<256x1xf32>
    %21 = arith.subf %20, %18 : vector<256x1xf32>
    %22 = math.exp %21 : vector<256x1xf32>
    %23 = vector.broadcast %19 : vector<1x1xf32> to vector<256x1xf32>
    %24 = arith.mulf %23, %22 : vector<256x1xf32>
    %c0_19 = arith.constant 0 : index
    %c0_20 = arith.constant 0 : index
    %25 = vector.load %arg16[%c0_19, %c0_20] : memref<256x3xf32, #tpu.memory_space<vmem>>, vector<256x3xf32>
    %cst_21 = arith.constant 0.000000e+00 : f32
    %26 = vector.broadcast %cst_21 : f32 to vector<256x8xf32>
    %cst_22 = arith.constant 0.000000e+00 : f32
    %27 = vector.broadcast %cst_22 : f32 to vector<256x8xf32>
    %28 = vector.extract_strided_slice %25 {offsets = [0, 0], sizes = [256, 1], strides = [1, 1]} : vector<256x3xf32> to vector<256x1xf32>
    %29 = vector.extract_strided_slice %12 {offsets = [0, 0], sizes = [256, 8], strides = [1, 1]} : vector<256x48xf32> to vector<256x8xf32>
    %30 = vector.broadcast %28 : vector<256x1xf32> to vector<256x8xf32>
    %31 = arith.mulf %30, %29 : vector<256x8xf32>
    %32 = arith.addf %26, %31 : vector<256x8xf32>
    %33 = vector.extract_strided_slice %12 {offsets = [0, 24], sizes = [256, 8], strides = [1, 1]} : vector<256x48xf32> to vector<256x8xf32>
    %34 = vector.broadcast %28 : vector<256x1xf32> to vector<256x8xf32>
    %35 = arith.mulf %34, %33 : vector<256x8xf32>
    %36 = arith.addf %27, %35 : vector<256x8xf32>
    %37 = vector.extract_strided_slice %25 {offsets = [0, 1], sizes = [256, 1], strides = [1, 1]} : vector<256x3xf32> to vector<256x1xf32>
    %38 = vector.extract_strided_slice %12 {offsets = [0, 8], sizes = [256, 8], strides = [1, 1]} : vector<256x48xf32> to vector<256x8xf32>
    %39 = vector.broadcast %37 : vector<256x1xf32> to vector<256x8xf32>
    %40 = arith.mulf %39, %38 : vector<256x8xf32>
    %41 = arith.addf %32, %40 : vector<256x8xf32>
    %42 = vector.extract_strided_slice %12 {offsets = [0, 32], sizes = [256, 8], strides = [1, 1]} : vector<256x48xf32> to vector<256x8xf32>
    %43 = vector.broadcast %37 : vector<256x1xf32> to vector<256x8xf32>
    %44 = arith.mulf %43, %42 : vector<256x8xf32>
    %45 = arith.addf %36, %44 : vector<256x8xf32>
    %46 = vector.extract_strided_slice %25 {offsets = [0, 2], sizes = [256, 1], strides = [1, 1]} : vector<256x3xf32> to vector<256x1xf32>
    %47 = vector.extract_strided_slice %12 {offsets = [0, 16], sizes = [256, 8], strides = [1, 1]} : vector<256x48xf32> to vector<256x8xf32>
    %48 = vector.broadcast %46 : vector<256x1xf32> to vector<256x8xf32>
    %49 = arith.mulf %48, %47 : vector<256x8xf32>
    %50 = arith.addf %41, %49 : vector<256x8xf32>
    %51 = vector.extract_strided_slice %12 {offsets = [0, 40], sizes = [256, 8], strides = [1, 1]} : vector<256x48xf32> to vector<256x8xf32>
    %52 = vector.broadcast %46 : vector<256x1xf32> to vector<256x8xf32>
    %53 = arith.mulf %52, %51 : vector<256x8xf32>
    %54 = arith.addf %45, %53 : vector<256x8xf32>
    %c0_23 = arith.constant 0 : index
    %c0_24 = arith.constant 0 : index
    %55 = vector.load %arg19[%c0_23, %c0_24] : memref<16x8xf32, #tpu.memory_space<vmem>>, vector<16x8xf32>
    %56 = vector.broadcast %24 : vector<256x1xf32> to vector<256x8xf32>
    %57 = arith.mulf %56, %50 : vector<256x8xf32>
    %58 = arith.truncf %57 : vector<256x8xf32> to vector<256x8xbf16>
    %cst_25 = arith.constant dense<0.000000e+00> : vector<16x8xf32>
    %59 = tpu.matmul %4, %58, %cst_25 {dimension_numbers = #tpu.dot_dimension_numbers<[0], [0], [1], [1], [0, 1, 1, 1], [], []>} : vector<256x16xbf16>, vector<256x8xbf16>, vector<16x8xf32> -> vector<16x8xf32>
    %60 = arith.addf %55, %59 : vector<16x8xf32>
    %c0_26 = arith.constant 0 : index
    %c0_27 = arith.constant 0 : index
    %61 = vector.load %arg19[%c0_26, %c0_27] : memref<16x8xf32, #tpu.memory_space<vmem>>, vector<16x8xf32>
    tpu.vector_store %arg19[%c0_26, %c0_27], %60 {strides = array<i32>} : memref<16x8xf32, #tpu.memory_space<vmem>>, vector<16x8xf32>,
    %c0_28 = arith.constant 0 : index
    %c0_29 = arith.constant 0 : index
    %62 = vector.load %arg20[%c0_28, %c0_29] : memref<16x8xf32, #tpu.memory_space<vmem>>, vector<16x8xf32>
    %63 = vector.broadcast %24 : vector<256x1xf32> to vector<256x8xf32>
    %64 = arith.mulf %63, %54 : vector<256x8xf32>
    %65 = arith.truncf %64 : vector<256x8xf32> to vector<256x8xbf16>
    %cst_30 = arith.constant dense<0.000000e+00> : vector<16x8xf32>
    %66 = tpu.matmul %4, %65, %cst_30 {dimension_numbers = #tpu.dot_dimension_numbers<[0], [0], [1], [1], [0, 1, 1, 1], [], []>} : vector<256x16xbf16>, vector<256x8xbf16>, vector<16x8xf32> -> vector<16x8xf32>
    %67 = arith.addf %62, %66 : vector<16x8xf32>
    %c0_31 = arith.constant 0 : index
    %c0_32 = arith.constant 0 : index
    %68 = vector.load %arg20[%c0_31, %c0_32] : memref<16x8xf32, #tpu.memory_space<vmem>>, vector<16x8xf32>
    tpu.vector_store %arg20[%c0_31, %c0_32], %67 {strides = array<i32>} : memref<16x8xf32, #tpu.memory_space<vmem>>, vector<16x8xf32>,
    %c0_33 = arith.constant 0 : index
    %c0_34 = arith.constant 0 : index
    %69 = vector.load %arg23[%c0_33, %c0_34] : memref<16x8xbf16, #tpu.memory_space<vmem>>, vector<16x8xbf16>
    %cst_35 = arith.constant dense<0.000000e+00> : vector<256x8xf32>
    %70 = tpu.matmul %3, %69, %cst_35 {dimension_numbers = #tpu.dot_dimension_numbers<[1], [0], [0], [1], [0, 0, 1, 1], [], []>} : vector<256x16xbf16>, vector<16x8xbf16>, vector<256x8xf32> -> vector<256x8xf32>
    %c0_36 = arith.constant 0 : index
    %c0_37 = arith.constant 0 : index
    %71 = vector.load %arg5[%c0_36, %c0_37] : memref<1x8xf32, #tpu.memory_space<vmem>>, vector<1x8xf32>
    %72 = vector.broadcast %71 : vector<1x8xf32> to vector<256x8xf32>
    %73 = arith.mulf %70, %72 : vector<256x8xf32>
    %cst_38 = arith.constant dense<0.000000e+00> : vector<256xf32>
    %74 = vector.multi_reduction <add>, %73, %cst_38 [1] : vector<256x8xf32> to vector<256xf32>
    %75 = vector.shape_cast %74 : vector<256xf32> to vector<256x1xf32>
    %c0_39 = arith.constant 0 : index
    %c0_40 = arith.constant 0 : index
    %76 = vector.load %arg24[%c0_39, %c0_40] : memref<16x1xbf16, #tpu.memory_space<vmem>>, vector<16x1xbf16>
    %cst_41 = arith.constant dense<0.000000e+00> : vector<256x1xf32>
    %77 = tpu.matmul %4, %76, %cst_41 {dimension_numbers = #tpu.dot_dimension_numbers<[1], [0], [0], [1], [0, 0, 1, 1], [], []>} : vector<256x16xbf16>, vector<16x1xbf16>, vector<256x1xf32> -> vector<256x1xf32>
    %78 = arith.addf %75, %77 : vector<256x1xf32>
    %cst_42 = arith.constant 0.000000e+00 : f32
    %79 = vector.broadcast %cst_42 : f32 to vector<256x1xf32>
    %80 = arith.cmpf ogt, %78, %79 : vector<256x1xf32>
    %cst_43 = arith.constant 2.000000e-01 : f32
    %81 = vector.broadcast %cst_43 : f32 to vector<256x1xf32>
    %82 = arith.mulf %81, %78 : vector<256x1xf32>
    %83 = arith.select %80, %78, %82 : vector<256x1xi1>, vector<256x1xf32>
    %c0_44 = arith.constant 0 : index
    %c0_45 = arith.constant 0 : index
    %84 = vector.load %arg27[%c0_44, %c0_45] : memref<1x1xf32, #tpu.memory_space<vmem>>, vector<1x1xf32>
    %cst_46 = arith.constant dense<0xFF800000> : vector<1xf32>
    %85 = vector.multi_reduction <maximumf>, %83, %cst_46 [0] : vector<256x1xf32> to vector<1xf32>
    %86 = vector.shape_cast %85 : vector<1xf32> to vector<1x1xf32>
    %87 = arith.maximumf %84, %86 : vector<1x1xf32>
    %88 = arith.subf %84, %87 : vector<1x1xf32>
    %89 = math.exp %88 : vector<1x1xf32>
    %90 = vector.broadcast %87 : vector<1x1xf32> to vector<256x1xf32>
    %91 = arith.subf %83, %90 : vector<256x1xf32>
    %92 = math.exp %91 : vector<256x1xf32>
    %c0_47 = arith.constant 0 : index
    %c0_48 = arith.constant 0 : index
    %93 = vector.load %arg25[%c0_47, %c0_48] : memref<16x1xf32, #tpu.memory_space<vmem>>, vector<16x1xf32>
    %94 = vector.broadcast %89 : vector<1x1xf32> to vector<16x1xf32>
    %95 = arith.mulf %93, %94 : vector<16x1xf32>
    %96 = arith.truncf %92 : vector<256x1xf32> to vector<256x1xbf16>
    %cst_49 = arith.constant dense<0.000000e+00> : vector<16x1xf32>
    %97 = tpu.matmul %4, %96, %cst_49 {dimension_numbers = #tpu.dot_dimension_numbers<[0], [0], [1], [1], [0, 1, 1, 1], [], []>} : vector<256x16xbf16>, vector<256x1xbf16>, vector<16x1xf32> -> vector<16x1xf32>
    %98 = arith.addf %95, %97 : vector<16x1xf32>
    %c0_50 = arith.constant 0 : index
    %c0_51 = arith.constant 0 : index
    %99 = vector.load %arg25[%c0_50, %c0_51] : memref<16x1xf32, #tpu.memory_space<vmem>>, vector<16x1xf32>
    tpu.vector_store %arg25[%c0_50, %c0_51], %98 {strides = array<i32>} : memref<16x1xf32, #tpu.memory_space<vmem>>, vector<16x1xf32>,
    %c0_52 = arith.constant 0 : index
    %c0_53 = arith.constant 0 : index
    %100 = vector.load %arg26[%c0_52, %c0_53] : memref<16x8xf32, #tpu.memory_space<vmem>>, vector<16x8xf32>
    %101 = vector.broadcast %89 : vector<1x1xf32> to vector<16x8xf32>
    %102 = arith.mulf %100, %101 : vector<16x8xf32>
    %103 = vector.broadcast %92 : vector<256x1xf32> to vector<256x8xf32>
    %104 = arith.mulf %103, %70 : vector<256x8xf32>
    %105 = arith.truncf %104 : vector<256x8xf32> to vector<256x8xbf16>
    %cst_54 = arith.constant dense<0.000000e+00> : vector<16x8xf32>
    %106 = tpu.matmul %4, %105, %cst_54 {dimension_numbers = #tpu.dot_dimension_numbers<[0], [0], [1], [1], [0, 1, 1, 1], [], []>} : vector<256x16xbf16>, vector<256x8xbf16>, vector<16x8xf32> -> vector<16x8xf32>
    %107 = arith.addf %102, %106 : vector<16x8xf32>
    %c0_55 = arith.constant 0 : index
    %c0_56 = arith.constant 0 : index
    %108 = vector.load %arg26[%c0_55, %c0_56] : memref<16x8xf32, #tpu.memory_space<vmem>>, vector<16x8xf32>
    tpu.vector_store %arg26[%c0_55, %c0_56], %107 {strides = array<i32>} : memref<16x8xf32, #tpu.memory_space<vmem>>, vector<16x8xf32>,
    %c0_57 = arith.constant 0 : index
    %c0_58 = arith.constant 0 : index
    %109 = vector.load %arg27[%c0_57, %c0_58] : memref<1x1xf32, #tpu.memory_space<vmem>>, vector<1x1xf32>
    tpu.vector_store %arg27[%c0_57, %c0_58], %87 {strides = array<i32>} : memref<1x1xf32, #tpu.memory_space<vmem>>, vector<1x1xf32>,
    %c0_i32_59 = arith.constant 0 : i32
    %110 = arith.cmpi eq, %arg0, %c0_i32_59 : i32
    %111 = arith.extui %110 : i1 to i32
    %c0_i32_60 = arith.constant 0 : i32
    %112 = arith.cmpi ne, %111, %c0_i32_60 : i32
    scf.if %112 {
      %c0_61 = arith.constant 0 : index
      %c0_62 = arith.constant 0 : index
      %113 = vector.load %arg25[%c0_61, %c0_62] : memref<16x1xf32, #tpu.memory_space<vmem>>, vector<16x1xf32>
      %cst_63 = arith.constant 0.000000e+00 : f32
      %114 = vector.broadcast %cst_63 : f32 to vector<16x1xf32>
      %115 = arith.cmpf ogt, %113, %114 : vector<16x1xf32>
      %cst_64 = arith.constant 1.000000e+00 : f32
      %116 = vector.broadcast %cst_64 : f32 to vector<16x1xf32>
      %117 = arith.select %115, %113, %116 : vector<16x1xi1>, vector<16x1xf32>
      %c0_65 = arith.constant 0 : index
      %c0_66 = arith.constant 0 : index
      %118 = vector.load %arg26[%c0_65, %c0_66] : memref<16x8xf32, #tpu.memory_space<vmem>>, vector<16x8xf32>
      %119 = vector.broadcast %117 : vector<16x1xf32> to vector<16x8xf32>
      %120 = arith.divf %118, %119 : vector<16x8xf32>
      %c0_67 = arith.constant 0 : index
      %c0_68 = arith.constant 0 : index
      %121 = vector.load %arg7[%c0_67, %c0_68] : memref<1x8xf32, #tpu.memory_space<vmem>>, vector<1x8xf32>
      %122 = vector.broadcast %121 : vector<1x8xf32> to vector<16x8xf32>
      %123 = arith.addf %120, %122 : vector<16x8xf32>
      %c0_69 = arith.constant 0 : index
      %c0_70 = arith.constant 0 : index
      %124 = vector.load %arg18[%c0_69, %c0_70] : memref<16x8xf32, #tpu.memory_space<vmem>>, vector<16x8xf32>
      tpu.vector_store %arg18[%c0_69, %c0_70], %123 {strides = array<i32>} : memref<16x8xf32, #tpu.memory_space<vmem>>, vector<16x8xf32>,
    } else {
    }
    return
  }
  func.func @transform_0(%arg0: i32) -> (i32, i32) {
    %c0_i32 = arith.constant 0 : i32
    %c0_i32_0 = arith.constant 0 : i32
    %c0_i32_1 = arith.constant 0 : i32
    return %c0_i32, %c0_i32_0 : i32, i32
  }
  func.func @transform_1(%arg0: i32) -> (i32, i32) {
    %c0_i32 = arith.constant 0 : i32
    %c0_i32_0 = arith.constant 0 : i32
    %c0_i32_1 = arith.constant 0 : i32
    return %c0_i32, %c0_i32_0 : i32, i32
  }
  func.func @transform_2(%arg0: i32) -> (i32, i32) {
    %c0_i32 = arith.constant 0 : i32
    %c0_i32_0 = arith.constant 0 : i32
    %c0_i32_1 = arith.constant 0 : i32
    return %c0_i32, %c0_i32_0 : i32, i32
  }
  func.func @transform_3(%arg0: i32) -> (i32, i32) {
    %c0_i32 = arith.constant 0 : i32
    %c0_i32_0 = arith.constant 0 : i32
    %c0_i32_1 = arith.constant 0 : i32
    return %c0_i32, %c0_i32_0 : i32, i32
  }
  func.func @transform_4(%arg0: i32) -> (i32, i32) {
    %c0_i32 = arith.constant 0 : i32
    %c0_i32_0 = arith.constant 0 : i32
    %c0_i32_1 = arith.constant 0 : i32
    return %c0_i32, %c0_i32_0 : i32, i32
  }
  func.func @transform_5(%arg0: i32) -> (i32, i32) {
    %c0_i32 = arith.constant 0 : i32
    %c0_i32_0 = arith.constant 0 : i32
    %c0_i32_1 = arith.constant 0 : i32
    return %c0_i32, %c0_i32_0 : i32, i32
  }
  func.func @transform_6(%arg0: i32) -> (i32, i32) {
    %c0_i32 = arith.constant 0 : i32
    %c0_i32_0 = arith.constant 0 : i32
    %c0_i32_1 = arith.constant 0 : i32
    return %c0_i32, %c0_i32_0 : i32, i32
  }
  func.func @transform_7(%arg0: i32) -> (i32, i32) {
    %c0_i32 = arith.constant 0 : i32
    %c0_i32_0 = arith.constant 0 : i32
    %c0_i32_1 = arith.constant 0 : i32
    return %c0_i32, %c0_i32_0 : i32, i32
  }
  func.func @transform_8(%arg0: i32) -> (i32, i32) {
    %c0_i32 = arith.constant 0 : i32
    %c0_i32_0 = arith.constant 0 : i32
    %c0_i32_1 = arith.constant 0 : i32
    return %c0_i32, %c0_i32_0 : i32, i32
  }
  func.func @transform_9(%arg0: i32) -> (i32, i32) {
    %c0_i32 = arith.constant 0 : i32
    %c0_i32_0 = arith.constant 0 : i32
    %c0_i32_1 = arith.constant 0 : i32
    return %c0_i32, %c0_i32_0 : i32, i32
  }
  func.func @transform_10(%arg0: i32) -> (i32, i32) {
    %c0_i32 = arith.constant 0 : i32
    %c0_i32_0 = arith.constant 0 : i32
    %c0_i32_1 = arith.constant 0 : i32
    return %c0_i32, %c0_i32_0 : i32, i32
  }
  func.func @transform_11(%arg0: i32) -> (i32, i32) {
    %c0_i32 = arith.constant 0 : i32
    %c0_i32_0 = arith.constant 0 : i32
    %c0_i32_1 = arith.constant 0 : i32
    return %c0_i32, %c0_i32_0 : i32, i32
  }
  func.func @transform_12(%arg0: i32) -> (i32, i32) {
    %c0_i32 = arith.constant 0 : i32
    %c0_i32_0 = arith.constant 0 : i32
    return %arg0, %c0_i32 : i32, i32
  }
  func.func @transform_13(%arg0: i32) -> (i32, i32) {
    %c0_i32 = arith.constant 0 : i32
    %c0_i32_0 = arith.constant 0 : i32
    return %arg0, %c0_i32 : i32, i32
  }
  func.func @transform_14(%arg0: i32) -> (i32, i32) {
    %c0_i32 = arith.constant 0 : i32
    %c0_i32_0 = arith.constant 0 : i32
    return %arg0, %c0_i32 : i32, i32
  }
  func.func @transform_15(%arg0: i32) -> (i32, i32) {
    %c0_i32 = arith.constant 0 : i32
    %c0_i32_0 = arith.constant 0 : i32
    return %arg0, %c0_i32 : i32, i32
  }
  func.func @transform_16(%arg0: i32) -> (i32, i32) {
    %c0_i32 = arith.constant 0 : i32
    %c0_i32_0 = arith.constant 0 : i32
    %c0_i32_1 = arith.constant 0 : i32
    return %c0_i32, %c0_i32_0 : i32, i32
  }
  func.func @transform_17(%arg0: i32) -> (i32, i32) {
    %c0_i32 = arith.constant 0 : i32
    %c0_i32_0 = arith.constant 0 : i32
    %c0_i32_1 = arith.constant 0 : i32
    return %c0_i32, %c0_i32_0 : i32, i32
  }
  func.func @transform_18(%arg0: i32) -> (i32, i32) {
    %c0_i32 = arith.constant 0 : i32
    %c0_i32_0 = arith.constant 0 : i32
    %c0_i32_1 = arith.constant 0 : i32
    return %c0_i32, %c0_i32_0 : i32, i32
  }
  func.func @transform_19(%arg0: i32) -> (i32, i32) {
    %c0_i32 = arith.constant 0 : i32
    %c0_i32_0 = arith.constant 0 : i32
    %c0_i32_1 = arith.constant 0 : i32
    return %c0_i32, %c0_i32_0 : i32, i32
  }
}

module attributes {stable_mosaic.version = 11 : i64} {
  func.func @_combine_kernel(%arg0: i32, %arg1: memref<16x8xf32, #tpu.memory_space<vmem>>, %arg2: memref<8x24xf32, #tpu.memory_space<vmem>>, %arg3: memref<8x24xf32, #tpu.memory_space<vmem>>, %arg4: memref<1x24xf32, #tpu.memory_space<vmem>>, %arg5: memref<1x12xf32, #tpu.memory_space<vmem>>, %arg6: memref<1x1xf32, #tpu.memory_space<vmem>>, %arg7: memref<256x16xbf16, #tpu.memory_space<vmem>>, %arg8: memref<256x16xbf16, #tpu.memory_space<vmem>>, %arg9: memref<256x12xf32, #tpu.memory_space<vmem>>, %arg10: memref<256x3xf32, #tpu.memory_space<vmem>>, %arg11: memref<16x8xf32, #tpu.memory_space<vmem>>, %arg12: memref<16x8xf32, #tpu.memory_space<vmem>>, %arg13: memref<16x8xf32, #tpu.memory_space<vmem>>, %arg14: memref<8x4xf32, #tpu.memory_space<vmem>>, %arg15: memref<1x4xf32, #tpu.memory_space<vmem>>, %arg16: memref<8x4xf32, #tpu.memory_space<vmem>>, %arg17: memref<1x4xf32, #tpu.memory_space<vmem>>, %arg18: memref<8x4xf32, #tpu.memory_space<vmem>>, %arg19: memref<1x4xf32, #tpu.memory_space<vmem>>, %arg20: memref<8x4xf32, #tpu.memory_space<vmem>>, %arg21: memref<1x4xf32, #tpu.memory_space<vmem>>, %arg22: memref<32x4xf32, #tpu.memory_space<vmem>>, %arg23: memref<1x4xf32, #tpu.memory_space<vmem>>, %arg24: memref<16x4xf32, #tpu.memory_space<vmem>>, %arg25: memref<16x24xbf16, #tpu.memory_space<vmem>>, %arg26: memref<16x24xbf16, #tpu.memory_space<vmem>>, %arg27: memref<16x8xf32, #tpu.memory_space<vmem>>) attributes {dimension_semantics = [#tpu.dimension_semantics<arbitrary>], iteration_bounds = array<i64: 1>, scalar_prefetch = 0 : i64, scratch_operands = 3 : i64, tpu.core_type = #tpu.core_type<tc>, window_params = [{pipeline_mode = #tpu.pipeline_mode<synchronous>, transform_indices = @transform_0, window_bounds = array<i64: 16, 8>}, {pipeline_mode = #tpu.pipeline_mode<synchronous>, transform_indices = @transform_1, window_bounds = array<i64: 8, 24>}, {pipeline_mode = #tpu.pipeline_mode<synchronous>, transform_indices = @transform_2, window_bounds = array<i64: 8, 24>}, {pipeline_mode = #tpu.pipeline_mode<synchronous>, transform_indices = @transform_3, window_bounds = array<i64: 1, 24>}, {pipeline_mode = #tpu.pipeline_mode<synchronous>, transform_indices = @transform_4, window_bounds = array<i64: 1, 12>}, {pipeline_mode = #tpu.pipeline_mode<synchronous>, transform_indices = @transform_5, window_bounds = array<i64: 1, 1>}, {transform_indices = @transform_6, window_bounds = array<i64: 256, 16>}, {transform_indices = @transform_7, window_bounds = array<i64: 256, 16>}, {transform_indices = @transform_8, window_bounds = array<i64: 256, 12>}, {transform_indices = @transform_9, window_bounds = array<i64: 256, 3>}, {pipeline_mode = #tpu.pipeline_mode<synchronous>, transform_indices = @transform_10, window_bounds = array<i64: 16, 8>}, {pipeline_mode = #tpu.pipeline_mode<synchronous>, transform_indices = @transform_11, window_bounds = array<i64: 16, 8>}, {pipeline_mode = #tpu.pipeline_mode<synchronous>, transform_indices = @transform_12, window_bounds = array<i64: 16, 8>}, {pipeline_mode = #tpu.pipeline_mode<synchronous>, transform_indices = @transform_13, window_bounds = array<i64: 8, 4>}, {pipeline_mode = #tpu.pipeline_mode<synchronous>, transform_indices = @transform_14, window_bounds = array<i64: 1, 4>}, {pipeline_mode = #tpu.pipeline_mode<synchronous>, transform_indices = @transform_15, window_bounds = array<i64: 8, 4>}, {pipeline_mode = #tpu.pipeline_mode<synchronous>, transform_indices = @transform_16, window_bounds = array<i64: 1, 4>}, {pipeline_mode = #tpu.pipeline_mode<synchronous>, transform_indices = @transform_17, window_bounds = array<i64: 8, 4>}, {pipeline_mode = #tpu.pipeline_mode<synchronous>, transform_indices = @transform_18, window_bounds = array<i64: 1, 4>}, {pipeline_mode = #tpu.pipeline_mode<synchronous>, transform_indices = @transform_19, window_bounds = array<i64: 8, 4>}, {pipeline_mode = #tpu.pipeline_mode<synchronous>, transform_indices = @transform_20, window_bounds = array<i64: 1, 4>}, {pipeline_mode = #tpu.pipeline_mode<synchronous>, transform_indices = @transform_21, window_bounds = array<i64: 32, 4>}, {pipeline_mode = #tpu.pipeline_mode<synchronous>, transform_indices = @transform_22, window_bounds = array<i64: 1, 4>}, {pipeline_mode = #tpu.pipeline_mode<synchronous>, transform_indices = @transform_23, window_bounds = array<i64: 16, 4>}]} {
    %c0_i32 = arith.constant 0 : i32
    %0 = arith.cmpi eq, %arg0, %c0_i32 : i32
    %1 = arith.extui %0 : i1 to i32
    %c0_i32_0 = arith.constant 0 : i32
    %2 = arith.cmpi ne, %1, %c0_i32_0 : i32
    scf.if %2 {
      %c0_29 = arith.constant 0 : index
      %c0_30 = arith.constant 0 : index
      %52 = vector.load %arg1[%c0_29, %c0_30] : memref<16x8xf32, #tpu.memory_space<vmem>>, vector<16x8xf32>
      %c0_31 = arith.constant 0 : index
      %c0_32 = arith.constant 0 : index
      %53 = vector.load %arg2[%c0_31, %c0_32] : memref<8x24xf32, #tpu.memory_space<vmem>>, vector<8x24xf32>
      %cst_33 = arith.constant dense<0.000000e+00> : vector<16x24xf32>
      %54 = tpu.matmul %52, %53, %cst_33 {dimension_numbers = #tpu.dot_dimension_numbers<[1], [0], [0], [1], [0, 0, 1, 1], [], []>} : vector<16x8xf32>, vector<8x24xf32>, vector<16x24xf32> -> vector<16x24xf32>
      %55 = arith.truncf %54 : vector<16x24xf32> to vector<16x24xbf16>
      %c0_34 = arith.constant 0 : index
      %c0_35 = arith.constant 0 : index
      %56 = vector.load %arg25[%c0_34, %c0_35] : memref<16x24xbf16, #tpu.memory_space<vmem>>, vector<16x24xbf16>
      tpu.vector_store %arg25[%c0_34, %c0_35], %55 {strides = array<i32>} : memref<16x24xbf16, #tpu.memory_space<vmem>>, vector<16x24xbf16>,
      %c0_36 = arith.constant 0 : index
      %c0_37 = arith.constant 0 : index
      %57 = vector.load %arg3[%c0_36, %c0_37] : memref<8x24xf32, #tpu.memory_space<vmem>>, vector<8x24xf32>
      %cst_38 = arith.constant dense<0.000000e+00> : vector<16x24xf32>
      %58 = tpu.matmul %52, %57, %cst_38 {dimension_numbers = #tpu.dot_dimension_numbers<[1], [0], [0], [1], [0, 0, 1, 1], [], []>} : vector<16x8xf32>, vector<8x24xf32>, vector<16x24xf32> -> vector<16x24xf32>
      %59 = arith.truncf %58 : vector<16x24xf32> to vector<16x24xbf16>
      %c0_39 = arith.constant 0 : index
      %c0_40 = arith.constant 0 : index
      %60 = vector.load %arg26[%c0_39, %c0_40] : memref<16x24xbf16, #tpu.memory_space<vmem>>, vector<16x24xbf16>
      tpu.vector_store %arg26[%c0_39, %c0_40], %59 {strides = array<i32>} : memref<16x24xbf16, #tpu.memory_space<vmem>>, vector<16x24xbf16>,
      %cst_41 = arith.constant 0.000000e+00 : f32
      %61 = vector.broadcast %cst_41 : f32 to vector<16x8xf32>
      %c0_42 = arith.constant 0 : index
      %c0_43 = arith.constant 0 : index
      %62 = vector.load %arg27[%c0_42, %c0_43] : memref<16x8xf32, #tpu.memory_space<vmem>>, vector<16x8xf32>
      tpu.vector_store %arg27[%c0_42, %c0_43], %61 {strides = array<i32>} : memref<16x8xf32, #tpu.memory_space<vmem>>, vector<16x8xf32>,
    } else {
    }
    %c0 = arith.constant 0 : index
    %c0_1 = arith.constant 0 : index
    %3 = vector.load %arg7[%c0, %c0_1] : memref<256x16xbf16, #tpu.memory_space<vmem>>, vector<256x16xbf16>
    %c0_2 = arith.constant 0 : index
    %c0_3 = arith.constant 0 : index
    %4 = vector.load %arg8[%c0_2, %c0_3] : memref<256x16xbf16, #tpu.memory_space<vmem>>, vector<256x16xbf16>
    %c0_4 = arith.constant 0 : index
    %c0_5 = arith.constant 0 : index
    %5 = vector.load %arg25[%c0_4, %c0_5] : memref<16x24xbf16, #tpu.memory_space<vmem>>, vector<16x24xbf16>
    %cst = arith.constant dense<0.000000e+00> : vector<256x24xf32>
    %6 = tpu.matmul %3, %5, %cst {dimension_numbers = #tpu.dot_dimension_numbers<[1], [0], [0], [1], [0, 0, 1, 1], [], []>} : vector<256x16xbf16>, vector<16x24xbf16>, vector<256x24xf32> -> vector<256x24xf32>
    %c0_6 = arith.constant 0 : index
    %c0_7 = arith.constant 0 : index
    %7 = vector.load %arg26[%c0_6, %c0_7] : memref<16x24xbf16, #tpu.memory_space<vmem>>, vector<16x24xbf16>
    %cst_8 = arith.constant dense<0.000000e+00> : vector<256x24xf32>
    %8 = tpu.matmul %4, %7, %cst_8 {dimension_numbers = #tpu.dot_dimension_numbers<[1], [0], [0], [1], [0, 0, 1, 1], [], []>} : vector<256x16xbf16>, vector<16x24xbf16>, vector<256x24xf32> -> vector<256x24xf32>
    %9 = arith.addf %6, %8 : vector<256x24xf32>
    %c0_9 = arith.constant 0 : index
    %c0_10 = arith.constant 0 : index
    %10 = vector.load %arg4[%c0_9, %c0_10] : memref<1x24xf32, #tpu.memory_space<vmem>>, vector<1x24xf32>
    %11 = vector.broadcast %10 : vector<1x24xf32> to vector<256x24xf32>
    %12 = arith.addf %9, %11 : vector<256x24xf32>
    %c0_11 = arith.constant 0 : index
    %c0_12 = arith.constant 0 : index
    %13 = vector.load %arg9[%c0_11, %c0_12] : memref<256x12xf32, #tpu.memory_space<vmem>>, vector<256x12xf32>
    %c0_13 = arith.constant 0 : index
    %c0_14 = arith.constant 0 : index
    %14 = vector.load %arg5[%c0_13, %c0_14] : memref<1x12xf32, #tpu.memory_space<vmem>>, vector<1x12xf32>
    %15 = vector.broadcast %14 : vector<1x12xf32> to vector<256x12xf32>
    %16 = arith.mulf %13, %15 : vector<256x12xf32>
    %cst_15 = arith.constant dense<0.000000e+00> : vector<256xf32>
    %17 = vector.multi_reduction <add>, %16, %cst_15 [1] : vector<256x12xf32> to vector<256xf32>
    %18 = vector.shape_cast %17 : vector<256xf32> to vector<256x1xf32>
    %c0_16 = arith.constant 0 : index
    %c0_17 = arith.constant 0 : index
    %19 = vector.load %arg6[%c0_16, %c0_17] : memref<1x1xf32, #tpu.memory_space<vmem>>, vector<1x1xf32>
    %cst_18 = arith.constant 0.000000e+00 : f32
    %20 = vector.broadcast %cst_18 : f32 to vector<256x1xf32>
    %21 = arith.subf %20, %18 : vector<256x1xf32>
    %22 = math.exp %21 : vector<256x1xf32>
    %23 = vector.broadcast %19 : vector<1x1xf32> to vector<256x1xf32>
    %24 = arith.mulf %23, %22 : vector<256x1xf32>
    %c0_19 = arith.constant 0 : index
    %c0_20 = arith.constant 0 : index
    %25 = vector.load %arg10[%c0_19, %c0_20] : memref<256x3xf32, #tpu.memory_space<vmem>>, vector<256x3xf32>
    %cst_21 = arith.constant 0.000000e+00 : f32
    %26 = vector.broadcast %cst_21 : f32 to vector<256x8xf32>
    %27 = vector.extract_strided_slice %25 {offsets = [0, 0], sizes = [256, 1], strides = [1, 1]} : vector<256x3xf32> to vector<256x1xf32>
    %28 = vector.extract_strided_slice %12 {offsets = [0, 0], sizes = [256, 8], strides = [1, 1]} : vector<256x24xf32> to vector<256x8xf32>
    %29 = vector.broadcast %27 : vector<256x1xf32> to vector<256x8xf32>
    %30 = arith.mulf %29, %28 : vector<256x8xf32>
    %31 = arith.addf %26, %30 : vector<256x8xf32>
    %32 = vector.extract_strided_slice %25 {offsets = [0, 1], sizes = [256, 1], strides = [1, 1]} : vector<256x3xf32> to vector<256x1xf32>
    %33 = vector.extract_strided_slice %12 {offsets = [0, 8], sizes = [256, 8], strides = [1, 1]} : vector<256x24xf32> to vector<256x8xf32>
    %34 = vector.broadcast %32 : vector<256x1xf32> to vector<256x8xf32>
    %35 = arith.mulf %34, %33 : vector<256x8xf32>
    %36 = arith.addf %31, %35 : vector<256x8xf32>
    %37 = vector.extract_strided_slice %25 {offsets = [0, 2], sizes = [256, 1], strides = [1, 1]} : vector<256x3xf32> to vector<256x1xf32>
    %38 = vector.extract_strided_slice %12 {offsets = [0, 16], sizes = [256, 8], strides = [1, 1]} : vector<256x24xf32> to vector<256x8xf32>
    %39 = vector.broadcast %37 : vector<256x1xf32> to vector<256x8xf32>
    %40 = arith.mulf %39, %38 : vector<256x8xf32>
    %41 = arith.addf %36, %40 : vector<256x8xf32>
    %c0_22 = arith.constant 0 : index
    %c0_23 = arith.constant 0 : index
    %42 = vector.load %arg27[%c0_22, %c0_23] : memref<16x8xf32, #tpu.memory_space<vmem>>, vector<16x8xf32>
    %43 = vector.broadcast %24 : vector<256x1xf32> to vector<256x8xf32>
    %44 = arith.mulf %43, %41 : vector<256x8xf32>
    %45 = arith.truncf %44 : vector<256x8xf32> to vector<256x8xbf16>
    %cst_24 = arith.constant dense<0.000000e+00> : vector<16x8xf32>
    %46 = tpu.matmul %4, %45, %cst_24 {dimension_numbers = #tpu.dot_dimension_numbers<[0], [0], [1], [1], [0, 1, 1, 1], [], []>} : vector<256x16xbf16>, vector<256x8xbf16>, vector<16x8xf32> -> vector<16x8xf32>
    %47 = arith.addf %42, %46 : vector<16x8xf32>
    %c0_25 = arith.constant 0 : index
    %c0_26 = arith.constant 0 : index
    %48 = vector.load %arg27[%c0_25, %c0_26] : memref<16x8xf32, #tpu.memory_space<vmem>>, vector<16x8xf32>
    tpu.vector_store %arg27[%c0_25, %c0_26], %47 {strides = array<i32>} : memref<16x8xf32, #tpu.memory_space<vmem>>, vector<16x8xf32>,
    %c0_i32_27 = arith.constant 0 : i32
    %49 = arith.cmpi eq, %arg0, %c0_i32_27 : i32
    %50 = arith.extui %49 : i1 to i32
    %c0_i32_28 = arith.constant 0 : i32
    %51 = arith.cmpi ne, %50, %c0_i32_28 : i32
    scf.if %51 {
      %c0_29 = arith.constant 0 : index
      %c0_30 = arith.constant 0 : index
      %52 = vector.load %arg11[%c0_29, %c0_30] : memref<16x8xf32, #tpu.memory_space<vmem>>, vector<16x8xf32>
      %c0_31 = arith.constant 0 : index
      %c0_32 = arith.constant 0 : index
      %53 = vector.load %arg12[%c0_31, %c0_32] : memref<16x8xf32, #tpu.memory_space<vmem>>, vector<16x8xf32>
      %c0_33 = arith.constant 0 : index
      %c0_34 = arith.constant 0 : index
      %54 = vector.load %arg13[%c0_33, %c0_34] : memref<16x8xf32, #tpu.memory_space<vmem>>, vector<16x8xf32>
      %c0_35 = arith.constant 0 : index
      %c0_36 = arith.constant 0 : index
      %55 = vector.load %arg27[%c0_35, %c0_36] : memref<16x8xf32, #tpu.memory_space<vmem>>, vector<16x8xf32>
      %c0_37 = arith.constant 0 : index
      %c0_38 = arith.constant 0 : index
      %56 = vector.load %arg14[%c0_37, %c0_38] : memref<8x4xf32, #tpu.memory_space<vmem>>, vector<8x4xf32>
      %cst_39 = arith.constant dense<0.000000e+00> : vector<16x4xf32>
      %57 = tpu.matmul %52, %56, %cst_39 {dimension_numbers = #tpu.dot_dimension_numbers<[1], [0], [0], [1], [0, 0, 1, 1], [], []>} : vector<16x8xf32>, vector<8x4xf32>, vector<16x4xf32> -> vector<16x4xf32>
      %c0_40 = arith.constant 0 : index
      %c0_41 = arith.constant 0 : index
      %58 = vector.load %arg15[%c0_40, %c0_41] : memref<1x4xf32, #tpu.memory_space<vmem>>, vector<1x4xf32>
      %59 = vector.broadcast %58 : vector<1x4xf32> to vector<16x4xf32>
      %60 = arith.addf %57, %59 : vector<16x4xf32>
      %cst_42 = arith.constant 0.000000e+00 : f32
      %61 = vector.broadcast %cst_42 : f32 to vector<16x4xf32>
      %62 = arith.cmpf ogt, %60, %61 : vector<16x4xf32>
      %cst_43 = arith.constant 0.00999999977 : f32
      %63 = vector.broadcast %cst_43 : f32 to vector<16x4xf32>
      %64 = arith.mulf %63, %60 : vector<16x4xf32>
      %65 = arith.select %62, %60, %64 : vector<16x4xi1>, vector<16x4xf32>
      %c0_44 = arith.constant 0 : index
      %c0_45 = arith.constant 0 : index
      %66 = vector.load %arg16[%c0_44, %c0_45] : memref<8x4xf32, #tpu.memory_space<vmem>>, vector<8x4xf32>
      %cst_46 = arith.constant dense<0.000000e+00> : vector<16x4xf32>
      %67 = tpu.matmul %53, %66, %cst_46 {dimension_numbers = #tpu.dot_dimension_numbers<[1], [0], [0], [1], [0, 0, 1, 1], [], []>} : vector<16x8xf32>, vector<8x4xf32>, vector<16x4xf32> -> vector<16x4xf32>
      %c0_47 = arith.constant 0 : index
      %c0_48 = arith.constant 0 : index
      %68 = vector.load %arg17[%c0_47, %c0_48] : memref<1x4xf32, #tpu.memory_space<vmem>>, vector<1x4xf32>
      %69 = vector.broadcast %68 : vector<1x4xf32> to vector<16x4xf32>
      %70 = arith.addf %67, %69 : vector<16x4xf32>
      %cst_49 = arith.constant 0.000000e+00 : f32
      %71 = vector.broadcast %cst_49 : f32 to vector<16x4xf32>
      %72 = arith.cmpf ogt, %70, %71 : vector<16x4xf32>
      %cst_50 = arith.constant 0.00999999977 : f32
      %73 = vector.broadcast %cst_50 : f32 to vector<16x4xf32>
      %74 = arith.mulf %73, %70 : vector<16x4xf32>
      %75 = arith.select %72, %70, %74 : vector<16x4xi1>, vector<16x4xf32>
      %76 = arith.addf %65, %75 : vector<16x4xf32>
      %c0_51 = arith.constant 0 : index
      %c0_52 = arith.constant 0 : index
      %77 = vector.load %arg18[%c0_51, %c0_52] : memref<8x4xf32, #tpu.memory_space<vmem>>, vector<8x4xf32>
      %cst_53 = arith.constant dense<0.000000e+00> : vector<16x4xf32>
      %78 = tpu.matmul %54, %77, %cst_53 {dimension_numbers = #tpu.dot_dimension_numbers<[1], [0], [0], [1], [0, 0, 1, 1], [], []>} : vector<16x8xf32>, vector<8x4xf32>, vector<16x4xf32> -> vector<16x4xf32>
      %c0_54 = arith.constant 0 : index
      %c0_55 = arith.constant 0 : index
      %79 = vector.load %arg19[%c0_54, %c0_55] : memref<1x4xf32, #tpu.memory_space<vmem>>, vector<1x4xf32>
      %80 = vector.broadcast %79 : vector<1x4xf32> to vector<16x4xf32>
      %81 = arith.addf %78, %80 : vector<16x4xf32>
      %cst_56 = arith.constant 0.000000e+00 : f32
      %82 = vector.broadcast %cst_56 : f32 to vector<16x4xf32>
      %83 = arith.cmpf ogt, %81, %82 : vector<16x4xf32>
      %cst_57 = arith.constant 0.00999999977 : f32
      %84 = vector.broadcast %cst_57 : f32 to vector<16x4xf32>
      %85 = arith.mulf %84, %81 : vector<16x4xf32>
      %86 = arith.select %83, %81, %85 : vector<16x4xi1>, vector<16x4xf32>
      %87 = arith.addf %76, %86 : vector<16x4xf32>
      %c0_58 = arith.constant 0 : index
      %c0_59 = arith.constant 0 : index
      %88 = vector.load %arg20[%c0_58, %c0_59] : memref<8x4xf32, #tpu.memory_space<vmem>>, vector<8x4xf32>
      %cst_60 = arith.constant dense<0.000000e+00> : vector<16x4xf32>
      %89 = tpu.matmul %55, %88, %cst_60 {dimension_numbers = #tpu.dot_dimension_numbers<[1], [0], [0], [1], [0, 0, 1, 1], [], []>} : vector<16x8xf32>, vector<8x4xf32>, vector<16x4xf32> -> vector<16x4xf32>
      %c0_61 = arith.constant 0 : index
      %c0_62 = arith.constant 0 : index
      %90 = vector.load %arg21[%c0_61, %c0_62] : memref<1x4xf32, #tpu.memory_space<vmem>>, vector<1x4xf32>
      %91 = vector.broadcast %90 : vector<1x4xf32> to vector<16x4xf32>
      %92 = arith.addf %89, %91 : vector<16x4xf32>
      %cst_63 = arith.constant 0.000000e+00 : f32
      %93 = vector.broadcast %cst_63 : f32 to vector<16x4xf32>
      %94 = arith.cmpf ogt, %92, %93 : vector<16x4xf32>
      %cst_64 = arith.constant 0.00999999977 : f32
      %95 = vector.broadcast %cst_64 : f32 to vector<16x4xf32>
      %96 = arith.mulf %95, %92 : vector<16x4xf32>
      %97 = arith.select %94, %92, %96 : vector<16x4xi1>, vector<16x4xf32>
      %98 = arith.addf %87, %97 : vector<16x4xf32>
      %c0_65 = arith.constant 0 : index
      %c0_66 = arith.constant 0 : index
      %99 = vector.load %arg22[%c0_65, %c0_66] : memref<32x4xf32, #tpu.memory_space<vmem>>, vector<8x4xf32>
      %cst_67 = arith.constant dense<0.000000e+00> : vector<16x4xf32>
      %100 = tpu.matmul %52, %99, %cst_67 {dimension_numbers = #tpu.dot_dimension_numbers<[1], [0], [0], [1], [0, 0, 1, 1], [], []>} : vector<16x8xf32>, vector<8x4xf32>, vector<16x4xf32> -> vector<16x4xf32>
      %c8 = arith.constant 8 : index
      %c0_68 = arith.constant 0 : index
      %101 = vector.load %arg22[%c8, %c0_68] : memref<32x4xf32, #tpu.memory_space<vmem>>, vector<8x4xf32>
      %cst_69 = arith.constant dense<0.000000e+00> : vector<16x4xf32>
      %102 = tpu.matmul %53, %101, %cst_69 {dimension_numbers = #tpu.dot_dimension_numbers<[1], [0], [0], [1], [0, 0, 1, 1], [], []>} : vector<16x8xf32>, vector<8x4xf32>, vector<16x4xf32> -> vector<16x4xf32>
      %103 = arith.addf %100, %102 : vector<16x4xf32>
      %c16 = arith.constant 16 : index
      %c0_70 = arith.constant 0 : index
      %104 = vector.load %arg22[%c16, %c0_70] : memref<32x4xf32, #tpu.memory_space<vmem>>, vector<8x4xf32>
      %cst_71 = arith.constant dense<0.000000e+00> : vector<16x4xf32>
      %105 = tpu.matmul %54, %104, %cst_71 {dimension_numbers = #tpu.dot_dimension_numbers<[1], [0], [0], [1], [0, 0, 1, 1], [], []>} : vector<16x8xf32>, vector<8x4xf32>, vector<16x4xf32> -> vector<16x4xf32>
      %106 = arith.addf %103, %105 : vector<16x4xf32>
      %c24 = arith.constant 24 : index
      %c0_72 = arith.constant 0 : index
      %107 = vector.load %arg22[%c24, %c0_72] : memref<32x4xf32, #tpu.memory_space<vmem>>, vector<8x4xf32>
      %cst_73 = arith.constant dense<0.000000e+00> : vector<16x4xf32>
      %108 = tpu.matmul %55, %107, %cst_73 {dimension_numbers = #tpu.dot_dimension_numbers<[1], [0], [0], [1], [0, 0, 1, 1], [], []>} : vector<16x8xf32>, vector<8x4xf32>, vector<16x4xf32> -> vector<16x4xf32>
      %109 = arith.addf %106, %108 : vector<16x4xf32>
      %c0_74 = arith.constant 0 : index
      %c0_75 = arith.constant 0 : index
      %110 = vector.load %arg23[%c0_74, %c0_75] : memref<1x4xf32, #tpu.memory_space<vmem>>, vector<1x4xf32>
      %111 = vector.broadcast %110 : vector<1x4xf32> to vector<16x4xf32>
      %112 = arith.addf %109, %111 : vector<16x4xf32>
      %cst_76 = arith.constant 0.000000e+00 : f32
      %113 = vector.broadcast %cst_76 : f32 to vector<16x4xf32>
      %114 = arith.cmpf ogt, %112, %113 : vector<16x4xf32>
      %cst_77 = arith.constant 0.00999999977 : f32
      %115 = vector.broadcast %cst_77 : f32 to vector<16x4xf32>
      %116 = arith.mulf %115, %112 : vector<16x4xf32>
      %117 = arith.select %114, %112, %116 : vector<16x4xi1>, vector<16x4xf32>
      %118 = arith.addf %98, %117 : vector<16x4xf32>
      %c0_78 = arith.constant 0 : index
      %c0_79 = arith.constant 0 : index
      %119 = vector.load %arg24[%c0_78, %c0_79] : memref<16x4xf32, #tpu.memory_space<vmem>>, vector<16x4xf32>
      tpu.vector_store %arg24[%c0_78, %c0_79], %118 {strides = array<i32>} : memref<16x4xf32, #tpu.memory_space<vmem>>, vector<16x4xf32>,
    } else {
    }
    return
  }
  func.func @transform_0(%arg0: i32) -> (i32, i32) {
    %c0_i32 = arith.constant 0 : i32
    %c0_i32_0 = arith.constant 0 : i32
    %c0_i32_1 = arith.constant 0 : i32
    return %c0_i32, %c0_i32_0 : i32, i32
  }
  func.func @transform_1(%arg0: i32) -> (i32, i32) {
    %c0_i32 = arith.constant 0 : i32
    %c0_i32_0 = arith.constant 0 : i32
    %c0_i32_1 = arith.constant 0 : i32
    return %c0_i32, %c0_i32_0 : i32, i32
  }
  func.func @transform_2(%arg0: i32) -> (i32, i32) {
    %c0_i32 = arith.constant 0 : i32
    %c0_i32_0 = arith.constant 0 : i32
    %c0_i32_1 = arith.constant 0 : i32
    return %c0_i32, %c0_i32_0 : i32, i32
  }
  func.func @transform_3(%arg0: i32) -> (i32, i32) {
    %c0_i32 = arith.constant 0 : i32
    %c0_i32_0 = arith.constant 0 : i32
    %c0_i32_1 = arith.constant 0 : i32
    return %c0_i32, %c0_i32_0 : i32, i32
  }
  func.func @transform_4(%arg0: i32) -> (i32, i32) {
    %c0_i32 = arith.constant 0 : i32
    %c0_i32_0 = arith.constant 0 : i32
    %c0_i32_1 = arith.constant 0 : i32
    return %c0_i32, %c0_i32_0 : i32, i32
  }
  func.func @transform_5(%arg0: i32) -> (i32, i32) {
    %c0_i32 = arith.constant 0 : i32
    %c0_i32_0 = arith.constant 0 : i32
    %c0_i32_1 = arith.constant 0 : i32
    return %c0_i32, %c0_i32_0 : i32, i32
  }
  func.func @transform_6(%arg0: i32) -> (i32, i32) {
    %c0_i32 = arith.constant 0 : i32
    %c0_i32_0 = arith.constant 0 : i32
    return %arg0, %c0_i32 : i32, i32
  }
  func.func @transform_7(%arg0: i32) -> (i32, i32) {
    %c0_i32 = arith.constant 0 : i32
    %c0_i32_0 = arith.constant 0 : i32
    return %arg0, %c0_i32 : i32, i32
  }
  func.func @transform_8(%arg0: i32) -> (i32, i32) {
    %c0_i32 = arith.constant 0 : i32
    %c0_i32_0 = arith.constant 0 : i32
    return %arg0, %c0_i32 : i32, i32
  }
  func.func @transform_9(%arg0: i32) -> (i32, i32) {
    %c0_i32 = arith.constant 0 : i32
    %c0_i32_0 = arith.constant 0 : i32
    return %arg0, %c0_i32 : i32, i32
  }
  func.func @transform_10(%arg0: i32) -> (i32, i32) {
    %c0_i32 = arith.constant 0 : i32
    %c0_i32_0 = arith.constant 0 : i32
    %c0_i32_1 = arith.constant 0 : i32
    return %c0_i32, %c0_i32_0 : i32, i32
  }
  func.func @transform_11(%arg0: i32) -> (i32, i32) {
    %c0_i32 = arith.constant 0 : i32
    %c0_i32_0 = arith.constant 0 : i32
    %c0_i32_1 = arith.constant 0 : i32
    return %c0_i32, %c0_i32_0 : i32, i32
  }
  func.func @transform_12(%arg0: i32) -> (i32, i32) {
    %c0_i32 = arith.constant 0 : i32
    %c0_i32_0 = arith.constant 0 : i32
    %c0_i32_1 = arith.constant 0 : i32
    return %c0_i32, %c0_i32_0 : i32, i32
  }
  func.func @transform_13(%arg0: i32) -> (i32, i32) {
    %c0_i32 = arith.constant 0 : i32
    %c0_i32_0 = arith.constant 0 : i32
    %c0_i32_1 = arith.constant 0 : i32
    return %c0_i32, %c0_i32_0 : i32, i32
  }
  func.func @transform_14(%arg0: i32) -> (i32, i32) {
    %c0_i32 = arith.constant 0 : i32
    %c0_i32_0 = arith.constant 0 : i32
    %c0_i32_1 = arith.constant 0 : i32
    return %c0_i32, %c0_i32_0 : i32, i32
  }
  func.func @transform_15(%arg0: i32) -> (i32, i32) {
    %c0_i32 = arith.constant 0 : i32
    %c0_i32_0 = arith.constant 0 : i32
    %c0_i32_1 = arith.constant 0 : i32
    return %c0_i32, %c0_i32_0 : i32, i32
  }
  func.func @transform_16(%arg0: i32) -> (i32, i32) {
    %c0_i32 = arith.constant 0 : i32
    %c0_i32_0 = arith.constant 0 : i32
    %c0_i32_1 = arith.constant 0 : i32
    return %c0_i32, %c0_i32_0 : i32, i32
  }
  func.func @transform_17(%arg0: i32) -> (i32, i32) {
    %c0_i32 = arith.constant 0 : i32
    %c0_i32_0 = arith.constant 0 : i32
    %c0_i32_1 = arith.constant 0 : i32
    return %c0_i32, %c0_i32_0 : i32, i32
  }
  func.func @transform_18(%arg0: i32) -> (i32, i32) {
    %c0_i32 = arith.constant 0 : i32
    %c0_i32_0 = arith.constant 0 : i32
    %c0_i32_1 = arith.constant 0 : i32
    return %c0_i32, %c0_i32_0 : i32, i32
  }
  func.func @transform_19(%arg0: i32) -> (i32, i32) {
    %c0_i32 = arith.constant 0 : i32
    %c0_i32_0 = arith.constant 0 : i32
    %c0_i32_1 = arith.constant 0 : i32
    return %c0_i32, %c0_i32_0 : i32, i32
  }
  func.func @transform_20(%arg0: i32) -> (i32, i32) {
    %c0_i32 = arith.constant 0 : i32
    %c0_i32_0 = arith.constant 0 : i32
    %c0_i32_1 = arith.constant 0 : i32
    return %c0_i32, %c0_i32_0 : i32, i32
  }
  func.func @transform_21(%arg0: i32) -> (i32, i32) {
    %c0_i32 = arith.constant 0 : i32
    %c0_i32_0 = arith.constant 0 : i32
    %c0_i32_1 = arith.constant 0 : i32
    return %c0_i32, %c0_i32_0 : i32, i32
  }
  func.func @transform_22(%arg0: i32) -> (i32, i32) {
    %c0_i32 = arith.constant 0 : i32
    %c0_i32_0 = arith.constant 0 : i32
    %c0_i32_1 = arith.constant 0 : i32
    return %c0_i32, %c0_i32_0 : i32, i32
  }
  func.func @transform_23(%arg0: i32) -> (i32, i32) {
    %c0_i32 = arith.constant 0 : i32
    %c0_i32_0 = arith.constant 0 : i32
    %c0_i32_1 = arith.constant 0 : i32
    return %c0_i32, %c0_i32_0 : i32, i32
  }
}

</mosaic_0001>

<llo_original>
// kernel: multi_relation_gnn_forward.3
$region0: #{multi_relation_gnn_forward.3}
  #allocation0 [shape = 'u32[]', space=smem, size = 0x4, offset = 0x4, fixed_abs, tag = 'smem constant byte address 0x4 - core index']
  #allocation1 [shape = 'u32[72,128]{1,0:T(1,128)}', space=vmem, size = 0x9000, scoped, tag = 'internal scratch']
  #allocation2 [shape = 'bf16[16,24]{1,0:T(8,128)(2,1)}', space=vmem, size = 0x1000, scoped, tag = 'scratch operand']
  #allocation3 [shape = 'bf16[16,24]{1,0:T(8,128)(2,1)}', space=vmem, size = 0x1000, scoped, tag = 'scratch operand']
  #allocation4 [shape = 'f32[16,8]{1,0:T(8,128)}', space=vmem, size = 0x2000, scoped, tag = 'scratch operand']
  #allocation5 [shape = 'f32[1,1]{1,0:T(1,128)S(1)}', space=vmem, size = 0x200, scoped, tag = 'scoped memory for multi_relation_gnn_forward.3']
  %s0 = inlined_call_operand.vmem [shape: f32[16,8], index: 0, kind: input, shape index: {}]
  %s1 = inlined_call_operand.vmem [shape: f32[8,24], index: 1, kind: input, shape index: {}]
  %s2 = inlined_call_operand.vmem [shape: f32[8,24], index: 2, kind: input, shape index: {}]
  %s3 = inlined_call_operand.vmem [shape: f32[1,24], index: 3, kind: input, shape index: {}]
  %s4 = inlined_call_operand.vmem [shape: f32[1,12], index: 4, kind: input, shape index: {}]
  %s5 = inlined_call_operand.<no memory space> [shape: f32[1,1], index: 5, kind: input, shape index: {}]
  %s6 = inlined_call_operand.vmem [shape: bf16[256,16], index: 6, kind: input, shape index: {}]
  %s7 = inlined_call_operand.vmem [shape: bf16[256,16], index: 7, kind: input, shape index: {}]
  %s8 = inlined_call_operand.vmem [shape: f32[256,12], index: 8, kind: input, shape index: {}]
  %s9 = inlined_call_operand.vmem [shape: f32[256,3], index: 9, kind: input, shape index: {}]
  %s10 = inlined_call_operand.vmem [shape: f32[16,8], index: 10, kind: input, shape index: {}]
  %s11 = inlined_call_operand.vmem [shape: f32[16,8], index: 11, kind: input, shape index: {}]
  %s12 = inlined_call_operand.vmem [shape: f32[16,8], index: 12, kind: input, shape index: {}]
  %s13 = inlined_call_operand.vmem [shape: f32[8,4], index: 13, kind: input, shape index: {}]
  %s14 = inlined_call_operand.vmem [shape: f32[1,4], index: 14, kind: input, shape index: {}]
  %s15 = inlined_call_operand.vmem [shape: f32[8,4], index: 15, kind: input, shape index: {}]
  %s16 = inlined_call_operand.vmem [shape: f32[1,4], index: 16, kind: input, shape index: {}]
  %s17 = inlined_call_operand.vmem [shape: f32[8,4], index: 17, kind: input, shape index: {}]
  %s18 = inlined_call_operand.vmem [shape: f32[1,4], index: 18, kind: input, shape index: {}]
  %s19 = inlined_call_operand.vmem [shape: f32[8,4], index: 19, kind: input, shape index: {}]
  %s20 = inlined_call_operand.vmem [shape: f32[1,4], index: 20, kind: input, shape index: {}]
  %s21 = inlined_call_operand.vmem [shape: f32[32,4], index: 21, kind: input, shape index: {}]
  %s22 = inlined_call_operand.vmem [shape: f32[1,4], index: 22, kind: input, shape index: {}]
  %s23 = inlined_call_operand.vmem [shape: f32[16,4], index: 23, kind: output, shape index: {}]
  %s24 = sld [smem:[#allocation0]]
  $region110: #{multi_relation_gnn_forward.3} parent=0
    _
  %s26 = ssub.s32 1, %s24
  %s27 = scalar_select 0, %s26, %s24
  %v28 = vstv %s5
  %29 = vst [vmem:[#allocation5] sm:$0x1] %v28
  // Predicated region
  $region2: #{multi_relation_gnn_forward.3} parent=0 // pred_check
    _
  $region3: #{multi_relation_gnn_forward.3} parent=0 // pred_check_branch
    %31 = sbr.rel (0) target = $region5
  $region4: #{multi_relation_gnn_forward.3} parent=0 // pred_region
    _
  $region5: #{multi_relation_gnn_forward.3} parent=0 // pred_fallthru
    _
  // Predicated region
  $region6: #{multi_relation_gnn_forward.3} parent=0 // pred_check
    _
  $region7: #{multi_relation_gnn_forward.3} parent=0 // pred_check_branch
    %33 = sbr.rel (0) target = $region9
  $region8: #{multi_relation_gnn_forward.3} parent=0 // pred_region
    _
  $region9: #{multi_relation_gnn_forward.3} parent=0 // pred_fallthru
    _
  // Predicated region
  $region10: #{multi_relation_gnn_forward.3} parent=0 // pred_check
    _
  $region11: #{multi_relation_gnn_forward.3} parent=0 // pred_check_branch
    %35 = sbr.rel (0) target = $region13
  $region12: #{multi_relation_gnn_forward.3} parent=0 // pred_region
    _
  $region13: #{multi_relation_gnn_forward.3} parent=0 // pred_fallthru
    _
  // Predicated region
  $region14: #{multi_relation_gnn_forward.3} parent=0 // pred_check
    _
  $region15: #{multi_relation_gnn_forward.3} parent=0 // pred_check_branch
    %37 = sbr.rel (0) target = $region17
  $region16: #{multi_relation_gnn_forward.3} parent=0 // pred_region
    _
  $region17: #{multi_relation_gnn_forward.3} parent=0 // pred_fallthru
    _
  // Predicated region
  $region18: #{multi_relation_gnn_forward.3} parent=0 // pred_check
    _
  $region19: #{multi_relation_gnn_forward.3} parent=0 // pred_check_branch
    %39 = sbr.rel (0) target = $region21
  $region20: #{multi_relation_gnn_forward.3} parent=0 // pred_region
    _
  $region21: #{multi_relation_gnn_forward.3} parent=0 // pred_fallthru
    _
  // Predicated region
  $region22: #{multi_relation_gnn_forward.3} parent=0 // pred_check
    _
  $region23: #{multi_relation_gnn_forward.3} parent=0 // pred_check_branch
    %41 = sbr.rel (0) target = $region25
  $region24: #{multi_relation_gnn_forward.3} parent=0 // pred_region
    _
  $region25: #{multi_relation_gnn_forward.3} parent=0 // pred_fallthru
    _
  // Predicated region
  $region26: #{multi_relation_gnn_forward.3} parent=0 // pred_check
    _
  $region27: #{multi_relation_gnn_forward.3} parent=0 // pred_check_branch
    %43 = sbr.rel (0) target = $region29
  $region28: #{multi_relation_gnn_forward.3} parent=0 // pred_region
    _
  $region29: #{multi_relation_gnn_forward.3} parent=0 // pred_fallthru
    _
  // Predicated region
  $region30: #{multi_relation_gnn_forward.3} parent=0 // pred_check
    _
  $region31: #{multi_relation_gnn_forward.3} parent=0 // pred_check_branch
    %45 = sbr.rel (0) target = $region33
  $region32: #{multi_relation_gnn_forward.3} parent=0 // pred_region
    _
  $region33: #{multi_relation_gnn_forward.3} parent=0 // pred_fallthru
    _
  // Predicated region
  $region34: #{multi_relation_gnn_forward.3} parent=0 // pred_check
    _
  $region35: #{multi_relation_gnn_forward.3} parent=0 // pred_check_branch
    %47 = sbr.rel (0) target = $region37
  $region36: #{multi_relation_gnn_forward.3} parent=0 // pred_region
    _
  $region37: #{multi_relation_gnn_forward.3} parent=0 // pred_fallthru
    _
  // Predicated region
  $region38: #{multi_relation_gnn_forward.3} parent=0 // pred_check
    _
  $region39: #{multi_relation_gnn_forward.3} parent=0 // pred_check_branch
    %49 = sbr.rel (0) target = $region41
  $region40: #{multi_relation_gnn_forward.3} parent=0 // pred_region
    _
  $region41: #{multi_relation_gnn_forward.3} parent=0 // pred_fallthru
    _
  // Predicated region
  $region42: #{multi_relation_gnn_forward.3} parent=0 // pred_check
    _
  $region43: #{multi_relation_gnn_forward.3} parent=0 // pred_check_branch
    %51 = sbr.rel (0) target = $region45
  $region44: #{multi_relation_gnn_forward.3} parent=0 // pred_region
    _
  $region45: #{multi_relation_gnn_forward.3} parent=0 // pred_fallthru
    _
  // Predicated region
  $region46: #{multi_relation_gnn_forward.3} parent=0 // pred_check
    _
  $region47: #{multi_relation_gnn_forward.3} parent=0 // pred_check_branch
    %53 = sbr.rel (0) target = $region49
  $region48: #{multi_relation_gnn_forward.3} parent=0 // pred_region
    _
  $region49: #{multi_relation_gnn_forward.3} parent=0 // pred_fallthru
    _
  // Predicated region
  $region50: #{multi_relation_gnn_forward.3} parent=0 // pred_check
    _
  $region51: #{multi_relation_gnn_forward.3} parent=0 // pred_check_branch
    %55 = sbr.rel (0) target = $region53
  $region52: #{multi_relation_gnn_forward.3} parent=0 // pred_region
    _
  $region53: #{multi_relation_gnn_forward.3} parent=0 // pred_fallthru
    _
  // Predicated region
  $region54: #{multi_relation_gnn_forward.3} parent=0 // pred_check
    _
  $region55: #{multi_relation_gnn_forward.3} parent=0 // pred_check_branch
    %57 = sbr.rel (0) target = $region57
  $region56: #{multi_relation_gnn_forward.3} parent=0 // pred_region
    _
  $region57: #{multi_relation_gnn_forward.3} parent=0 // pred_fallthru
    _
  // Predicated region
  $region58: #{multi_relation_gnn_forward.3} parent=0 // pred_check
    _
  $region59: #{multi_relation_gnn_forward.3} parent=0 // pred_check_branch
    %59 = sbr.rel (0) target = $region61
  $region60: #{multi_relation_gnn_forward.3} parent=0 // pred_region
    _
  $region61: #{multi_relation_gnn_forward.3} parent=0 // pred_fallthru
    _
  // Predicated region
  $region62: #{multi_relation_gnn_forward.3} parent=0 // pred_check
    _
  $region63: #{multi_relation_gnn_forward.3} parent=0 // pred_check_branch
    %61 = sbr.rel (0) target = $region65
  $region64: #{multi_relation_gnn_forward.3} parent=0 // pred_region
    _
  $region65: #{multi_relation_gnn_forward.3} parent=0 // pred_fallthru
    _
  // Predicated region
  $region66: #{multi_relation_gnn_forward.3} parent=0 // pred_check
    _
  $region67: #{multi_relation_gnn_forward.3} parent=0 // pred_check_branch
    %63 = sbr.rel (0) target = $region69
  $region68: #{multi_relation_gnn_forward.3} parent=0 // pred_region
    _
  $region69: #{multi_relation_gnn_forward.3} parent=0 // pred_fallthru
    _
  // Predicated region
  $region70: #{multi_relation_gnn_forward.3} parent=0 // pred_check
    _
  $region71: #{multi_relation_gnn_forward.3} parent=0 // pred_check_branch
    %65 = sbr.rel (0) target = $region73
  $region72: #{multi_relation_gnn_forward.3} parent=0 // pred_region
    _
  $region73: #{multi_relation_gnn_forward.3} parent=0 // pred_fallthru
    _
  // Predicated region
  $region74: #{multi_relation_gnn_forward.3} parent=0 // pred_check
    _
  $region75: #{multi_relation_gnn_forward.3} parent=0 // pred_check_branch
    %67 = sbr.rel (0) target = $region77
  $region76: #{multi_relation_gnn_forward.3} parent=0 // pred_region
    _
  $region77: #{multi_relation_gnn_forward.3} parent=0 // pred_fallthru
    _
  // Predicated region
  $region78: #{multi_relation_gnn_forward.3} parent=0 // pred_check
    _
  $region79: #{multi_relation_gnn_forward.3} parent=0 // pred_check_branch
    %69 = sbr.rel (0) target = $region81
  $region80: #{multi_relation_gnn_forward.3} parent=0 // pred_region
    _
  $region81: #{multi_relation_gnn_forward.3} parent=0 // pred_fallthru
    _
  // Predicated region
  $region82: #{multi_relation_gnn_forward.3} parent=0 // pred_check
    _
  $region83: #{multi_relation_gnn_forward.3} parent=0 // pred_check_branch
    %71 = sbr.rel (0) target = $region85
  $region84: #{multi_relation_gnn_forward.3} parent=0 // pred_region
    _
  $region85: #{multi_relation_gnn_forward.3} parent=0 // pred_fallthru
    _
  // Predicated region
  $region86: #{multi_relation_gnn_forward.3} parent=0 // pred_check
    _
  $region87: #{multi_relation_gnn_forward.3} parent=0 // pred_check_branch
    %73 = sbr.rel (0) target = $region89
  $region88: #{multi_relation_gnn_forward.3} parent=0 // pred_region
    _
  $region89: #{multi_relation_gnn_forward.3} parent=0 // pred_fallthru
    _
  // Predicated region
  $region90: #{multi_relation_gnn_forward.3} parent=0 // pred_check
    _
  $region91: #{multi_relation_gnn_forward.3} parent=0 // pred_check_branch
    %75 = sbr.rel (0) target = $region93
  $region92: #{multi_relation_gnn_forward.3} parent=0 // pred_region
    _
  $region93: #{multi_relation_gnn_forward.3} parent=0 // pred_fallthru
    _
  %p77 = scmp.eq.s32.totalorder 0, 0
  // Predicated region
  $region94: #{multi_relation_gnn_forward.3} parent=0 // pred_check
    %p78 = pneg %p77
  $region95: #{multi_relation_gnn_forward.3} parent=0 // pred_check_branch
    %80 = sbr.rel (%p78) target = $region97
  $region96: #{multi_relation_gnn_forward.3} parent=0 // pred_region
    %v81 = vld [vmem:[%s0] sm:$0xff]
    %v82 = vld [vmem:[%s0 + $0x8] sm:$0xff]
    %v83 = vld [vmem:[%s1] sm:$0xff]
    %vm84 = vcmask 64512
    %v86 = vsel %vm84, %v81, 0
    %v89 = vsel %vm84, %v82, 0
    %91 = vmatpush.msra.mxu0 0.0
    %92 = vmatpush.msra.mxu0 0.0
    %93 = vmatpush.msra.mxu0 0.0
    %94 = vmatpush.msra.mxu0 0.0
    %95 = vmatpush.msra.mxu0 0.0
    %96 = vmatpush.msra.mxu0 0.0
    %97 = vmatpush.msra.mxu0 0.0
    %98 = vmatpush.msra.mxu0 0.0
    %99 = vmatpush.msra.mxu0 0.0
    %100 = vmatpush.msra.mxu0 0.0
    %101 = vmatpush.msra.mxu0 0.0
    %102 = vmatpush.msra.mxu0 0.0
    %103 = vmatpush.msra.mxu0 0.0
    %104 = vmatpush.msra.mxu0 0.0
    %105 = vmatpush.msra.mxu0 0.0
    %106 = vmatpush.msra.mxu0 %v83
    %107 = vmatmul.f32.gmra.mxu0 %v86
    %v108 = vpop.f32.mrf.mxu0
    %v109 = vadd.f32 0.0, %v108
    %110 = vmatmul.f32.gmra.mxu0 %v89
    %v111 = vpop.f32.mrf.mxu0
    %v112 = vadd.f32 0.0, %v111
    %113 = vdwg.mxu0
    %v114 = vpack.c.bf16 %v109, %v109
    %v115 = vpack.c.bf16 %v112, %v112
    %vm116 = vcmask 191488
    %117 = vst.msk [vmem:[#allocation2] sm:$0xf] %vm116, %v114
    %118 = vst.msk [vmem:[#allocation2 + $0x4] sm:$0xf] %vm116, %v115
    %v119 = vld [vmem:[%s2] sm:$0xff]
    %120 = vmatpush.msra.mxu0 0.0
    %121 = vmatpush.msra.mxu0 0.0
    %122 = vmatpush.msra.mxu0 0.0
    %123 = vmatpush.msra.mxu0 0.0
    %124 = vmatpush.msra.mxu0 0.0
    %125 = vmatpush.msra.mxu0 0.0
    %126 = vmatpush.msra.mxu0 0.0
    %127 = vmatpush.msra.mxu0 0.0
    %128 = vmatpush.msra.mxu0 0.0
    %129 = vmatpush.msra.mxu0 0.0
    %130 = vmatpush.msra.mxu0 0.0
    %131 = vmatpush.msra.mxu0 0.0
    %132 = vmatpush.msra.mxu0 0.0
    %133 = vmatpush.msra.mxu0 0.0
    %134 = vmatpush.msra.mxu0 0.0
    %135 = vmatpush.msra.mxu0 %v119
    %136 = vmatmul.f32.gmra.mxu0 %v86
    %v137 = vpop.f32.mrf.mxu0
    %v138 = vadd.f32 0.0, %v137
    %139 = vmatmul.f32.gmra.mxu0 %v89
    %v140 = vpop.f32.mrf.mxu0
    %v141 = vadd.f32 0.0, %v140
    %142 = vdwg.mxu0
    %v143 = vpack.c.bf16 %v138, %v138
    %v144 = vpack.c.bf16 %v141, %v141
    %145 = vst.msk [vmem:[#allocation3] sm:$0xf] %vm116, %v143
    %146 = vst.msk [vmem:[#allocation3 + $0x4] sm:$0xf] %vm116, %v144
    %147 = vst.msk [vmem:[#allocation4] sm:$0xff] %vm84, 0.0
    %148 = vst.msk [vmem:[#allocation4 + $0x8] sm:$0xff] %vm84, 0.0
  $region97: #{multi_relation_gnn_forward.3} parent=0 // pred_fallthru
    _
  %v149 = vld [vmem:[%s6] sm:$0xf]
  %v150 = vld [vmem:[%s6 + $0x4] sm:$0xf]
  %v151 = vld [vmem:[%s6 + $0x8] sm:$0xf]
  %v152 = vld [vmem:[%s6 + $0xc] sm:$0xf]
  %v153 = vld [vmem:[%s6 + $0x10] sm:$0xf]
  %v154 = vld [vmem:[%s6 + $0x14] sm:$0xf]
  %v155 = vld [vmem:[%s6 + $0x18] sm:$0xf]
  %v156 = vld [vmem:[%s6 + $0x1c] sm:$0xf]
  %v157 = vld [vmem:[%s6 + $0x20] sm:$0xf]
  %v158 = vld [vmem:[%s6 + $0x24] sm:$0xf]
  %v159 = vld [vmem:[%s6 + $0x28] sm:$0xf]
  %v160 = vld [vmem:[%s6 + $0x2c] sm:$0xf]
  %v161 = vld [vmem:[%s6 + $0x30] sm:$0xf]
  %v162 = vld [vmem:[%s6 + $0x34] sm:$0xf]
  %v163 = vld [vmem:[%s6 + $0x38] sm:$0xf]
  %v164 = vld [vmem:[%s6 + $0x3c] sm:$0xf]
  %v165 = vld [vmem:[%s6 + $0x40] sm:$0xf]
  %v166 = vld [vmem:[%s6 + $0x44] sm:$0xf]
  %v167 = vld [vmem:[%s6 + $0x48] sm:$0xf]
  %v168 = vld [vmem:[%s6 + $0x4c] sm:$0xf]
  %v169 = vld [vmem:[%s6 + $0x50] sm:$0xf]
  %v170 = vld [vmem:[%s6 + $0x54] sm:$0xf]
  %v171 = vld [vmem:[%s6 + $0x58] sm:$0xf]
  %v172 = vld [vmem:[%s6 + $0x5c] sm:$0xf]
  %v173 = vld [vmem:[%s6 + $0x60] sm:$0xf]
  %v174 = vld [vmem:[%s6 + $0x64] sm:$0xf]
  %v175 = vld [vmem:[%s6 + $0x68] sm:$0xf]
  %v176 = vld [vmem:[%s6 + $0x6c] sm:$0xf]
  %v177 = vld [vmem:[%s6 + $0x70] sm:$0xf]
  %v178 = vld [vmem:[%s6 + $0x74] sm:$0xf]
  %v179 = vld [vmem:[%s6 + $0x78] sm:$0xf]
  %v180 = vld [vmem:[%s6 + $0x7c] sm:$0xf]
  %v181 = vld [vmem:[%s7] sm:$0xf]
  %v182 = vld [vmem:[%s7 + $0x4] sm:$0xf]
  %v183 = vld [vmem:[%s7 + $0x8] sm:$0xf]
  %v184 = vld [vmem:[%s7 + $0xc] sm:$0xf]
  %v185 = vld [vmem:[%s7 + $0x10] sm:$0xf]
  %v186 = vld [vmem:[%s7 + $0x14] sm:$0xf]
  %v187 = vld [vmem:[%s7 + $0x18] sm:$0xf]
  %v188 = vld [vmem:[%s7 + $0x1c] sm:$0xf]
  %v189 = vld [vmem:[%s7 + $0x20] sm:$0xf]
  %v190 = vld [vmem:[%s7 + $0x24] sm:$0xf]
  %v191 = vld [vmem:[%s7 + $0x28] sm:$0xf]
  %v192 = vld [vmem:[%s7 + $0x2c] sm:$0xf]
  %v193 = vld [vmem:[%s7 + $0x30] sm:$0xf]
  %v194 = vld [vmem:[%s7 + $0x34] sm:$0xf]
  %v195 = vld [vmem:[%s7 + $0x38] sm:$0xf]
  %v196 = vld [vmem:[%s7 + $0x3c] sm:$0xf]
  %v197 = vld [vmem:[%s7 + $0x40] sm:$0xf]
  %v198 = vld [vmem:[%s7 + $0x44] sm:$0xf]
  %v199 = vld [vmem:[%s7 + $0x48] sm:$0xf]
  %v200 = vld [vmem:[%s7 + $0x4c] sm:$0xf]
  %v201 = vld [vmem:[%s7 + $0x50] sm:$0xf]
  %v202 = vld [vmem:[%s7 + $0x54] sm:$0xf]
  %v203 = vld [vmem:[%s7 + $0x58] sm:$0xf]
  %v204 = vld [vmem:[%s7 + $0x5c] sm:$0xf]
  %v205 = vld [vmem:[%s7 + $0x60] sm:$0xf]
  %v206 = vld [vmem:[%s7 + $0x64] sm:$0xf]
  %v207 = vld [vmem:[%s7 + $0x68] sm:$0xf]
  %v208 = vld [vmem:[%s7 + $0x6c] sm:$0xf]
  %v209 = vld [vmem:[%s7 + $0x70] sm:$0xf]
  %v210 = vld [vmem:[%s7 + $0x74] sm:$0xf]
  %v211 = vld [vmem:[%s7 + $0x78] sm:$0xf]
  %v212 = vld [vmem:[%s7 + $0x7c] sm:$0xf]
  %v213 = vld [vmem:[#allocation2] sm:$0xf]
  %v214 = vld [vmem:[#allocation2 + $0x4] sm:$0xf]
  %v215 = vld [vmem:[#allocation3] sm:$0xf]
  %v216 = vld [vmem:[#allocation3 + $0x4] sm:$0xf]
  %v249 = vunpack.c.l.b16 %v181
  %v250 = vunpack.c.l.b16 %v182
  %v251 = vunpack.c.l.b16 %v183
  %v252 = vunpack.c.l.b16 %v184
  %v253 = vunpack.c.l.b16 %v185
  %v254 = vunpack.c.l.b16 %v186
  %v255 = vunpack.c.l.b16 %v187
  %v256 = vunpack.c.l.b16 %v188
  %v257 = vunpack.c.l.b16 %v189
  %v258 = vunpack.c.l.b16 %v190
  %v259 = vunpack.c.l.b16 %v191
  %v260 = vunpack.c.l.b16 %v192
  %v261 = vunpack.c.l.b16 %v193
  %v262 = vunpack.c.l.b16 %v194
  %v263 = vunpack.c.l.b16 %v195
  %v264 = vunpack.c.l.b16 %v196
  %v265 = vunpack.c.l.b16 %v197
  %v266 = vunpack.c.l.b16 %v198
  %v267 = vunpack.c.l.b16 %v199
  %v268 = vunpack.c.l.b16 %v200
  %v269 = vunpack.c.l.b16 %v201
  %v270 = vunpack.c.l.b16 %v202
  %v271 = vunpack.c.l.b16 %v203
  %v272 = vunpack.c.l.b16 %v204
  %v273 = vunpack.c.l.b16 %v205
  %v274 = vunpack.c.l.b16 %v206
  %v275 = vunpack.c.l.b16 %v207
  %v276 = vunpack.c.l.b16 %v208
  %v277 = vunpack.c.l.b16 %v209
  %v278 = vunpack.c.l.b16 %v210
  %v279 = vunpack.c.l.b16 %v211
  %v280 = vunpack.c.l.b16 %v212
  %v281 = vpack.c.b16 %v250, %v249
  %v282 = vpack.c.b16 %v252, %v251
  %v283 = vpack.c.b16 %v254, %v253
  %v284 = vpack.c.b16 %v256, %v255
  %v285 = vpack.c.b16 %v258, %v257
  %v286 = vpack.c.b16 %v260, %v259
  %v287 = vpack.c.b16 %v262, %v261
  %v288 = vpack.c.b16 %v264, %v263
  %v289 = vpack.c.b16 %v266, %v265
  %v290 = vpack.c.b16 %v268, %v267
  %v291 = vpack.c.b16 %v270, %v269
  %v292 = vpack.c.b16 %v272, %v271
  %v293 = vpack.c.b16 %v274, %v273
  %v294 = vpack.c.b16 %v276, %v275
  %v295 = vpack.c.b16 %v278, %v277
  %v296 = vpack.c.b16 %v280, %v279
  %v299 = vunpack.c.l.b16 %v215
  %v300 = vunpack.c.l.b16 %v216
  %v301 = vpack.c.b16 %v300, %v299
  %vm303 = vcmask 130048
  %v305 = vsel %vm303, %v281, 0
  %v308 = vsel %vm303, %v282, 0
  %v311 = vsel %vm303, %v283, 0
  %v314 = vsel %vm303, %v284, 0
  %v317 = vsel %vm303, %v285, 0
  %v320 = vsel %vm303, %v286, 0
  %v323 = vsel %vm303, %v287, 0
  %v326 = vsel %vm303, %v288, 0
  %v329 = vsel %vm303, %v289, 0
  %v332 = vsel %vm303, %v290, 0
  %v335 = vsel %vm303, %v291, 0
  %v338 = vsel %vm303, %v292, 0
  %v341 = vsel %vm303, %v293, 0
  %v344 = vsel %vm303, %v294, 0
  %v347 = vsel %vm303, %v295, 0
  %v350 = vsel %vm303, %v296, 0
  %352 = vmatpush.bf16.msra.mxu0 0
  %353 = vmatpush.bf16.msra.mxu0 0
  %354 = vmatpush.bf16.msra.mxu0 0
  %355 = vmatpush.bf16.msra.mxu0 0
  %356 = vmatpush.bf16.msra.mxu0 0
  %357 = vmatpush.bf16.msra.mxu0 0
  %358 = vmatpush.bf16.msra.mxu0 0
  %359 = vmatpush.bf16.msra.mxu0 %v301
  %360 = vmatmul.bf16.gmra.mxu0 %v305
  %v361 = vpop.f32.mrf.mxu0
  %v362 = vadd.f32 0.0, %v361
  %v363 = vpop.f32.mrf.mxu0
  %v364 = vadd.f32 0.0, %v363
  %365 = vmatmul.bf16.gmra.mxu0 %v308
  %v366 = vpop.f32.mrf.mxu0
  %v367 = vadd.f32 0.0, %v366
  %v368 = vpop.f32.mrf.mxu0
  %v369 = vadd.f32 0.0, %v368
  %370 = vmatmul.bf16.gmra.mxu0 %v311
  %v371 = vpop.f32.mrf.mxu0
  %v372 = vadd.f32 0.0, %v371
  %v373 = vpop.f32.mrf.mxu0
  %v374 = vadd.f32 0.0, %v373
  %375 = vmatmul.bf16.gmra.mxu0 %v314
  %v376 = vpop.f32.mrf.mxu0
  %v377 = vadd.f32 0.0, %v376
  %v378 = vpop.f32.mrf.mxu0
  %v379 = vadd.f32 0.0, %v378
  %380 = vmatmul.bf16.gmra.mxu0 %v317
  %v381 = vpop.f32.mrf.mxu0
  %v382 = vadd.f32 0.0, %v381
  %v383 = vpop.f32.mrf.mxu0
  %v384 = vadd.f32 0.0, %v383
  %385 = vmatmul.bf16.gmra.mxu0 %v320
  %v386 = vpop.f32.mrf.mxu0
  %v387 = vadd.f32 0.0, %v386
  %v388 = vpop.f32.mrf.mxu0
  %v389 = vadd.f32 0.0, %v388
  %390 = vmatmul.bf16.gmra.mxu0 %v323
  %v391 = vpop.f32.mrf.mxu0
  %v392 = vadd.f32 0.0, %v391
  %v393 = vpop.f32.mrf.mxu0
  %v394 = vadd.f32 0.0, %v393
  %395 = vmatmul.bf16.gmra.mxu0 %v326
  %v396 = vpop.f32.mrf.mxu0
  %v397 = vadd.f32 0.0, %v396
  %v398 = vpop.f32.mrf.mxu0
  %v399 = vadd.f32 0.0, %v398
  %400 = vmatmul.bf16.gmra.mxu0 %v329
  %v401 = vpop.f32.mrf.mxu0
  %v402 = vadd.f32 0.0, %v401
  %v403 = vpop.f32.mrf.mxu0
  %v404 = vadd.f32 0.0, %v403
  %405 = vmatmul.bf16.gmra.mxu0 %v332
  %v406 = vpop.f32.mrf.mxu0
  %v407 = vadd.f32 0.0, %v406
  %v408 = vpop.f32.mrf.mxu0
  %v409 = vadd.f32 0.0, %v408
  %410 = vmatmul.bf16.gmra.mxu0 %v335
  %v411 = vpop.f32.mrf.mxu0
  %v412 = vadd.f32 0.0, %v411
  %v413 = vpop.f32.mrf.mxu0
  %v414 = vadd.f32 0.0, %v413
  %415 = vmatmul.bf16.gmra.mxu0 %v338
  %v416 = vpop.f32.mrf.mxu0
  %v417 = vadd.f32 0.0, %v416
  %v418 = vpop.f32.mrf.mxu0
  %v419 = vadd.f32 0.0, %v418
  %420 = vmatmul.bf16.gmra.mxu0 %v341
  %v421 = vpop.f32.mrf.mxu0
  %v422 = vadd.f32 0.0, %v421
  %v423 = vpop.f32.mrf.mxu0
  %v424 = vadd.f32 0.0, %v423
  %425 = vmatmul.bf16.gmra.mxu0 %v344
  %v426 = vpop.f32.mrf.mxu0
  %v427 = vadd.f32 0.0, %v426
  %v428 = vpop.f32.mrf.mxu0
  %v429 = vadd.f32 0.0, %v428
  %430 = vmatmul.bf16.gmra.mxu0 %v347
  %v431 = vpop.f32.mrf.mxu0
  %v432 = vadd.f32 0.0, %v431
  %v433 = vpop.f32.mrf.mxu0
  %v434 = vadd.f32 0.0, %v433
  %435 = vmatmul.bf16.gmra.mxu0 %v350
  %v436 = vpop.f32.mrf.mxu0
  %v437 = vadd.f32 0.0, %v436
  %v438 = vpop.f32.mrf.mxu0
  %v439 = vadd.f32 0.0, %v438
  %440 = vdwg.mxu0
  %v473 = vunpack.c.l.b16 %v149
  %v474 = vunpack.c.l.b16 %v150
  %v475 = vunpack.c.l.b16 %v151
  %v476 = vunpack.c.l.b16 %v152
  %v477 = vunpack.c.l.b16 %v153
  %v478 = vunpack.c.l.b16 %v154
  %v479 = vunpack.c.l.b16 %v155
  %v480 = vunpack.c.l.b16 %v156
  %v481 = vunpack.c.l.b16 %v157
  %v482 = vunpack.c.l.b16 %v158
  %v483 = vunpack.c.l.b16 %v159
  %v484 = vunpack.c.l.b16 %v160
  %v485 = vunpack.c.l.b16 %v161
  %v486 = vunpack.c.l.b16 %v162
  %v487 = vunpack.c.l.b16 %v163
  %v488 = vunpack.c.l.b16 %v164
  %v489 = vunpack.c.l.b16 %v165
  %v490 = vunpack.c.l.b16 %v166
  %v491 = vunpack.c.l.b16 %v167
  %v492 = vunpack.c.l.b16 %v168
  %v493 = vunpack.c.l.b16 %v169
  %v494 = vunpack.c.l.b16 %v170
  %v495 = vunpack.c.l.b16 %v171
  %v496 = vunpack.c.l.b16 %v172
  %v497 = vunpack.c.l.b16 %v173
  %v498 = vunpack.c.l.b16 %v174
  %v499 = vunpack.c.l.b16 %v175
  %v500 = vunpack.c.l.b16 %v176
  %v501 = vunpack.c.l.b16 %v177
  %v502 = vunpack.c.l.b16 %v178
  %v503 = vunpack.c.l.b16 %v179
  %v504 = vunpack.c.l.b16 %v180
  %v505 = vpack.c.b16 %v474, %v473
  %v506 = vpack.c.b16 %v476, %v475
  %v507 = vpack.c.b16 %v478, %v477
  %v508 = vpack.c.b16 %v480, %v479
  %v509 = vpack.c.b16 %v482, %v481
  %v510 = vpack.c.b16 %v484, %v483
  %v511 = vpack.c.b16 %v486, %v485
  %v512 = vpack.c.b16 %v488, %v487
  %v513 = vpack.c.b16 %v490, %v489
  %v514 = vpack.c.b16 %v492, %v491
  %v515 = vpack.c.b16 %v494, %v493
  %v516 = vpack.c.b16 %v496, %v495
  %v517 = vpack.c.b16 %v498, %v497
  %v518 = vpack.c.b16 %v500, %v499
  %v519 = vpack.c.b16 %v502, %v501
  %v520 = vpack.c.b16 %v504, %v503
  %v523 = vunpack.c.l.b16 %v213
  %v524 = vunpack.c.l.b16 %v214
  %v525 = vpack.c.b16 %v524, %v523
  %v528 = vsel %vm303, %v505, 0
  %v531 = vsel %vm303, %v506, 0
  %v534 = vsel %vm303, %v507, 0
  %v537 = vsel %vm303, %v508, 0
  %v540 = vsel %vm303, %v509, 0
  %v543 = vsel %vm303, %v510, 0
  %v546 = vsel %vm303, %v511, 0
  %v549 = vsel %vm303, %v512, 0
  %v552 = vsel %vm303, %v513, 0
  %v555 = vsel %vm303, %v514, 0
  %v558 = vsel %vm303, %v515, 0
  %v561 = vsel %vm303, %v516, 0
  %v564 = vsel %vm303, %v517, 0
  %v567 = vsel %vm303, %v518, 0
  %v570 = vsel %vm303, %v519, 0
  %v573 = vsel %vm303, %v520, 0
  %575 = vmatpush.bf16.msra.mxu0 0
  %576 = vmatpush.bf16.msra.mxu0 0
  %577 = vmatpush.bf16.msra.mxu0 0
  %578 = vmatpush.bf16.msra.mxu0 0
  %579 = vmatpush.bf16.msra.mxu0 0
  %580 = vmatpush.bf16.msra.mxu0 0
  %581 = vmatpush.bf16.msra.mxu0 0
  %582 = vmatpush.bf16.msra.mxu0 %v525
  %583 = vmatmul.bf16.gmra.mxu0 %v528
  %v584 = vpop.f32.mrf.mxu0
  %v585 = vadd.f32 %v362, %v584
  %v586 = vpop.f32.mrf.mxu0
  %v587 = vadd.f32 %v364, %v586
  %588 = vmatmul.bf16.gmra.mxu0 %v531
  %v589 = vpop.f32.mrf.mxu0
  %v590 = vadd.f32 %v367, %v589
  %v591 = vpop.f32.mrf.mxu0
  %v592 = vadd.f32 %v369, %v591
  %593 = vmatmul.bf16.gmra.mxu0 %v534
  %v594 = vpop.f32.mrf.mxu0
  %v595 = vadd.f32 %v372, %v594
  %v596 = vpop.f32.mrf.mxu0
  %v597 = vadd.f32 %v374, %v596
  %598 = vmatmul.bf16.gmra.mxu0 %v537
  %v599 = vpop.f32.mrf.mxu0
  %v600 = vadd.f32 %v377, %v599
  %v601 = vpop.f32.mrf.mxu0
  %v602 = vadd.f32 %v379, %v601
  %603 = vmatmul.bf16.gmra.mxu0 %v540
  %v604 = vpop.f32.mrf.mxu0
  %v605 = vadd.f32 %v382, %v604
  %v606 = vpop.f32.mrf.mxu0
  %v607 = vadd.f32 %v384, %v606
  %608 = vmatmul.bf16.gmra.mxu0 %v543
  %v609 = vpop.f32.mrf.mxu0
  %v610 = vadd.f32 %v387, %v609
  %v611 = vpop.f32.mrf.mxu0
  %v612 = vadd.f32 %v389, %v611
  %613 = vmatmul.bf16.gmra.mxu0 %v546
  %v614 = vpop.f32.mrf.mxu0
  %v615 = vadd.f32 %v392, %v614
  %v616 = vpop.f32.mrf.mxu0
  %v617 = vadd.f32 %v394, %v616
  %618 = vmatmul.bf16.gmra.mxu0 %v549
  %v619 = vpop.f32.mrf.mxu0
  %v620 = vadd.f32 %v397, %v619
  %v621 = vpop.f32.mrf.mxu0
  %v622 = vadd.f32 %v399, %v621
  %623 = vmatmul.bf16.gmra.mxu0 %v552
  %v624 = vpop.f32.mrf.mxu0
  %v625 = vadd.f32 %v402, %v624
  %v626 = vpop.f32.mrf.mxu0
  %v627 = vadd.f32 %v404, %v626
  %628 = vmatmul.bf16.gmra.mxu0 %v555
  %v629 = vpop.f32.mrf.mxu0
  %v630 = vadd.f32 %v407, %v629
  %v631 = vpop.f32.mrf.mxu0
  %v632 = vadd.f32 %v409, %v631
  %633 = vmatmul.bf16.gmra.mxu0 %v558
  %v634 = vpop.f32.mrf.mxu0
  %v635 = vadd.f32 %v412, %v634
  %v636 = vpop.f32.mrf.mxu0
  %v637 = vadd.f32 %v414, %v636
  %638 = vmatmul.bf16.gmra.mxu0 %v561
  %v639 = vpop.f32.mrf.mxu0
  %v640 = vadd.f32 %v417, %v639
  %v641 = vpop.f32.mrf.mxu0
  %v642 = vadd.f32 %v419, %v641
  %643 = vmatmul.bf16.gmra.mxu0 %v564
  %v644 = vpop.f32.mrf.mxu0
  %v645 = vadd.f32 %v422, %v644
  %v646 = vpop.f32.mrf.mxu0
  %v647 = vadd.f32 %v424, %v646
  %648 = vmatmul.bf16.gmra.mxu0 %v567
  %v649 = vpop.f32.mrf.mxu0
  %v650 = vadd.f32 %v427, %v649
  %v651 = vpop.f32.mrf.mxu0
  %v652 = vadd.f32 %v429, %v651
  %653 = vmatmul.bf16.gmra.mxu0 %v570
  %v654 = vpop.f32.mrf.mxu0
  %v655 = vadd.f32 %v432, %v654
  %v656 = vpop.f32.mrf.mxu0
  %v657 = vadd.f32 %v434, %v656
  %658 = vmatmul.bf16.gmra.mxu0 %v573
  %v659 = vpop.f32.mrf.mxu0
  %v660 = vadd.f32 %v437, %v659
  %v661 = vpop.f32.mrf.mxu0
  %v662 = vadd.f32 %v439, %v661
  %663 = vdwg.mxu0
  %v664 = vld [vmem:[%s3] sm:$0x1]
  %v666 = vperm.slane %v664, 0
  %v668 = vadd.f32 %v585, %v666
  %v669 = vadd.f32 %v587, %v666
  %v670 = vadd.f32 %v590, %v666
  %v671 = vadd.f32 %v592, %v666
  %v672 = vadd.f32 %v595, %v666
  %v673 = vadd.f32 %v597, %v666
  %v674 = vadd.f32 %v600, %v666
  %v675 = vadd.f32 %v602, %v666
  %v676 = vadd.f32 %v605, %v666
  %v677 = vadd.f32 %v607, %v666
  %v678 = vadd.f32 %v610, %v666
  %v679 = vadd.f32 %v612, %v666
  %v680 = vadd.f32 %v615, %v666
  %v681 = vadd.f32 %v617, %v666
  %v682 = vadd.f32 %v620, %v666
  %v683 = vadd.f32 %v622, %v666
  %v684 = vadd.f32 %v625, %v666
  %v685 = vadd.f32 %v627, %v666
  %v686 = vadd.f32 %v630, %v666
  %v687 = vadd.f32 %v632, %v666
  %v688 = vadd.f32 %v635, %v666
  %v689 = vadd.f32 %v637, %v666
  %v690 = vadd.f32 %v640, %v666
  %v691 = vadd.f32 %v642, %v666
  %v692 = vadd.f32 %v645, %v666
  %v693 = vadd.f32 %v647, %v666
  %v694 = vadd.f32 %v650, %v666
  %v695 = vadd.f32 %v652, %v666
  %v696 = vadd.f32 %v655, %v666
  %v697 = vadd.f32 %v657, %v666
  %v698 = vadd.f32 %v660, %v666
  %v699 = vadd.f32 %v662, %v666
  %v700 = vld [vmem:[%s8] sm:$0xff]
  %v701 = vld [vmem:[%s8 + $0x8] sm:$0xff]
  %v702 = vld [vmem:[%s8 + $0x10] sm:$0xff]
  %v703 = vld [vmem:[%s8 + $0x18] sm:$0xff]
  %v704 = vld [vmem:[%s8 + $0x20] sm:$0xff]
  %v705 = vld [vmem:[%s8 + $0x28] sm:$0xff]
  %v706 = vld [vmem:[%s8 + $0x30] sm:$0xff]
  %v707 = vld [vmem:[%s8 + $0x38] sm:$0xff]
  %v708 = vld [vmem:[%s8 + $0x40] sm:$0xff]
  %v709 = vld [vmem:[%s8 + $0x48] sm:$0xff]
  %v710 = vld [vmem:[%s8 + $0x50] sm:$0xff]
  %v711 = vld [vmem:[%s8 + $0x58] sm:$0xff]
  %v712 = vld [vmem:[%s8 + $0x60] sm:$0xff]
  %v713 = vld [vmem:[%s8 + $0x68] sm:$0xff]
  %v714 = vld [vmem:[%s8 + $0x70] sm:$0xff]
  %v715 = vld [vmem:[%s8 + $0x78] sm:$0xff]
  %v716 = vld [vmem:[%s8 + $0x80] sm:$0xff]
  %v717 = vld [vmem:[%s8 + $0x88] sm:$0xff]
  %v718 = vld [vmem:[%s8 + $0x90] sm:$0xff]
  %v719 = vld [vmem:[%s8 + $0x98] sm:$0xff]
  %v720 = vld [vmem:[%s8 + $0xa0] sm:$0xff]
  %v721 = vld [vmem:[%s8 + $0xa8] sm:$0xff]
  %v722 = vld [vmem:[%s8 + $0xb0] sm:$0xff]
  %v723 = vld [vmem:[%s8 + $0xb8] sm:$0xff]
  %v724 = vld [vmem:[%s8 + $0xc0] sm:$0xff]
  %v725 = vld [vmem:[%s8 + $0xc8] sm:$0xff]
  %v726 = vld [vmem:[%s8 + $0xd0] sm:$0xff]
  %v727 = vld [vmem:[%s8 + $0xd8] sm:$0xff]
  %v728 = vld [vmem:[%s8 + $0xe0] sm:$0xff]
  %v729 = vld [vmem:[%s8 + $0xe8] sm:$0xff]
  %v730 = vld [vmem:[%s8 + $0xf0] sm:$0xff]
  %v731 = vld [vmem:[%s8 + $0xf8] sm:$0xff]
  %v732 = vld [vmem:[%s4] sm:$0x1]
  %v734 = vperm.slane %v732, 0
  %v736 = vmul.f32 %v700, %v734
  %v737 = vmul.f32 %v701, %v734
  %v738 = vmul.f32 %v702, %v734
  %v739 = vmul.f32 %v703, %v734
  %v740 = vmul.f32 %v704, %v734
  %v741 = vmul.f32 %v705, %v734
  %v742 = vmul.f32 %v706, %v734
  %v743 = vmul.f32 %v707, %v734
  %v744 = vmul.f32 %v708, %v734
  %v745 = vmul.f32 %v709, %v734
  %v746 = vmul.f32 %v710, %v734
  %v747 = vmul.f32 %v711, %v734
  %v748 = vmul.f32 %v712, %v734
  %v749 = vmul.f32 %v713, %v734
  %v750 = vmul.f32 %v714, %v734
  %v751 = vmul.f32 %v715, %v734
  %v752 = vmul.f32 %v716, %v734
  %v753 = vmul.f32 %v717, %v734
  %v754 = vmul.f32 %v718, %v734
  %v755 = vmul.f32 %v719, %v734
  %v756 = vmul.f32 %v720, %v734
  %v757 = vmul.f32 %v721, %v734
  %v758 = vmul.f32 %v722, %v734
  %v759 = vmul.f32 %v723, %v734
  %v760 = vmul.f32 %v724, %v734
  %v761 = vmul.f32 %v725, %v734
  %v762 = vmul.f32 %v726, %v734
  %v763 = vmul.f32 %v727, %v734
  %v764 = vmul.f32 %v728, %v734
  %v765 = vmul.f32 %v729, %v734
  %v766 = vmul.f32 %v730, %v734
  %v767 = vmul.f32 %v731, %v734
  %vm768 = vcmask 97280
  %v769 = vsel %vm768, %v736, 0.0
  %770 = vadd.xlane.f32.xlu0 %v769
  %v771 = vpop.xlane.xlu0 %770
  %v772 = vsel %vm768, %v737, 0.0
  %773 = vadd.xlane.f32.xlu0 %v772
  %v774 = vpop.xlane.xlu0 %773
  %v775 = vsel %vm768, %v738, 0.0
  %776 = vadd.xlane.f32.xlu0 %v775
  %v777 = vpop.xlane.xlu0 %776
  %v778 = vsel %vm768, %v739, 0.0
  %779 = vadd.xlane.f32.xlu0 %v778
  %v780 = vpop.xlane.xlu0 %779
  %v781 = vsel %vm768, %v740, 0.0
  %782 = vadd.xlane.f32.xlu0 %v781
  %v783 = vpop.xlane.xlu0 %782
  %v784 = vsel %vm768, %v741, 0.0
  %785 = vadd.xlane.f32.xlu0 %v784
  %v786 = vpop.xlane.xlu0 %785
  %v787 = vsel %vm768, %v742, 0.0
  %788 = vadd.xlane.f32.xlu0 %v787
  %v789 = vpop.xlane.xlu0 %788
  %v790 = vsel %vm768, %v743, 0.0
  %791 = vadd.xlane.f32.xlu0 %v790
  %v792 = vpop.xlane.xlu0 %791
  %v793 = vsel %vm768, %v744, 0.0
  %794 = vadd.xlane.f32.xlu0 %v793
  %v795 = vpop.xlane.xlu0 %794
  %v796 = vsel %vm768, %v745, 0.0
  %797 = vadd.xlane.f32.xlu0 %v796
  %v798 = vpop.xlane.xlu0 %797
  %v799 = vsel %vm768, %v746, 0.0
  %800 = vadd.xlane.f32.xlu0 %v799
  %v801 = vpop.xlane.xlu0 %800
  %v802 = vsel %vm768, %v747, 0.0
  %803 = vadd.xlane.f32.xlu0 %v802
  %v804 = vpop.xlane.xlu0 %803
  %v805 = vsel %vm768, %v748, 0.0
  %806 = vadd.xlane.f32.xlu0 %v805
  %v807 = vpop.xlane.xlu0 %806
  %v808 = vsel %vm768, %v749, 0.0
  %809 = vadd.xlane.f32.xlu0 %v808
  %v810 = vpop.xlane.xlu0 %809
  %v811 = vsel %vm768, %v750, 0.0
  %812 = vadd.xlane.f32.xlu0 %v811
  %v813 = vpop.xlane.xlu0 %812
  %v814 = vsel %vm768, %v751, 0.0
  %815 = vadd.xlane.f32.xlu0 %v814
  %v816 = vpop.xlane.xlu0 %815
  %v817 = vsel %vm768, %v752, 0.0
  %818 = vadd.xlane.f32.xlu0 %v817
  %v819 = vpop.xlane.xlu0 %818
  %v820 = vsel %vm768, %v753, 0.0
  %821 = vadd.xlane.f32.xlu0 %v820
  %v822 = vpop.xlane.xlu0 %821
  %v823 = vsel %vm768, %v754, 0.0
  %824 = vadd.xlane.f32.xlu0 %v823
  %v825 = vpop.xlane.xlu0 %824
  %v826 = vsel %vm768, %v755, 0.0
  %827 = vadd.xlane.f32.xlu0 %v826
  %v828 = vpop.xlane.xlu0 %827
  %v829 = vsel %vm768, %v756, 0.0
  %830 = vadd.xlane.f32.xlu0 %v829
  %v831 = vpop.xlane.xlu0 %830
  %v832 = vsel %vm768, %v757, 0.0
  %833 = vadd.xlane.f32.xlu0 %v832
  %v834 = vpop.xlane.xlu0 %833
  %v835 = vsel %vm768, %v758, 0.0
  %836 = vadd.xlane.f32.xlu0 %v835
  %v837 = vpop.xlane.xlu0 %836
  %v838 = vsel %vm768, %v759, 0.0
  %839 = vadd.xlane.f32.xlu0 %v838
  %v840 = vpop.xlane.xlu0 %839
  %v841 = vsel %vm768, %v760, 0.0
  %842 = vadd.xlane.f32.xlu0 %v841
  %v843 = vpop.xlane.xlu0 %842
  %v844 = vsel %vm768, %v761, 0.0
  %845 = vadd.xlane.f32.xlu0 %v844
  %v846 = vpop.xlane.xlu0 %845
  %v847 = vsel %vm768, %v762, 0.0
  %848 = vadd.xlane.f32.xlu0 %v847
  %v849 = vpop.xlane.xlu0 %848
  %v850 = vsel %vm768, %v763, 0.0
  %851 = vadd.xlane.f32.xlu0 %v850
  %v852 = vpop.xlane.xlu0 %851
  %v853 = vsel %vm768, %v764, 0.0
  %854 = vadd.xlane.f32.xlu0 %v853
  %v855 = vpop.xlane.xlu0 %854
  %v856 = vsel %vm768, %v765, 0.0
  %857 = vadd.xlane.f32.xlu0 %v856
  %v858 = vpop.xlane.xlu0 %857
  %v859 = vsel %vm768, %v766, 0.0
  %860 = vadd.xlane.f32.xlu0 %v859
  %v861 = vpop.xlane.xlu0 %860
  %v862 = vsel %vm768, %v767, 0.0
  %863 = vadd.xlane.f32.xlu0 %v862
  %v864 = vpop.xlane.xlu0 %863
  %v865 = vld [vmem:[#allocation5] sm:$0x1]
  %v866 = vsub.f32 0.0, %v771
  %v867 = vsub.f32 0.0, %v774
  %v868 = vsub.f32 0.0, %v777
  %v869 = vsub.f32 0.0, %v780
  %v870 = vsub.f32 0.0, %v783
  %v871 = vsub.f32 0.0, %v786
  %v872 = vsub.f32 0.0, %v789
  %v873 = vsub.f32 0.0, %v792
  %v874 = vsub.f32 0.0, %v795
  %v875 = vsub.f32 0.0, %v798
  %v876 = vsub.f32 0.0, %v801
  %v877 = vsub.f32 0.0, %v804
  %v878 = vsub.f32 0.0, %v807
  %v879 = vsub.f32 0.0, %v810
  %v880 = vsub.f32 0.0, %v813
  %v881 = vsub.f32 0.0, %v816
  %v882 = vsub.f32 0.0, %v819
  %v883 = vsub.f32 0.0, %v822
  %v884 = vsub.f32 0.0, %v825
  %v885 = vsub.f32 0.0, %v828
  %v886 = vsub.f32 0.0, %v831
  %v887 = vsub.f32 0.0, %v834
  %v888 = vsub.f32 0.0, %v837
  %v889 = vsub.f32 0.0, %v840
  %v890 = vsub.f32 0.0, %v843
  %v891 = vsub.f32 0.0, %v846
  %v892 = vsub.f32 0.0, %v849
  %v893 = vsub.f32 0.0, %v852
  %v894 = vsub.f32 0.0, %v855
  %v895 = vsub.f32 0.0, %v858
  %v896 = vsub.f32 0.0, %v861
  %v897 = vsub.f32 0.0, %v864
  %v898 = vmul.f32 %v866, 1.442695
  %v899 = vpow.pop %v898
  %v900 = vmul.f32 %v867, 1.442695
  %v901 = vpow.pop %v900
  %v902 = vmul.f32 %v868, 1.442695
  %v903 = vpow.pop %v902
  %v904 = vmul.f32 %v869, 1.442695
  %v905 = vpow.pop %v904
  %v906 = vmul.f32 %v870, 1.442695
  %v907 = vpow.pop %v906
  %v908 = vmul.f32 %v871, 1.442695
  %v909 = vpow.pop %v908
  %v910 = vmul.f32 %v872, 1.442695
  %v911 = vpow.pop %v910
  %v912 = vmul.f32 %v873, 1.442695
  %v913 = vpow.pop %v912
  %v914 = vmul.f32 %v874, 1.442695
  %v915 = vpow.pop %v914
  %v916 = vmul.f32 %v875, 1.442695
  %v917 = vpow.pop %v916
  %v918 = vmul.f32 %v876, 1.442695
  %v919 = vpow.pop %v918
  %v920 = vmul.f32 %v877, 1.442695
  %v921 = vpow.pop %v920
  %v922 = vmul.f32 %v878, 1.442695
  %v923 = vpow.pop %v922
  %v924 = vmul.f32 %v879, 1.442695
  %v925 = vpow.pop %v924
  %v926 = vmul.f32 %v880, 1.442695
  %v927 = vpow.pop %v926
  %v928 = vmul.f32 %v881, 1.442695
  %v929 = vpow.pop %v928
  %v930 = vmul.f32 %v882, 1.442695
  %v931 = vpow.pop %v930
  %v932 = vmul.f32 %v883, 1.442695
  %v933 = vpow.pop %v932
  %v934 = vmul.f32 %v884, 1.442695
  %v935 = vpow.pop %v934
  %v936 = vmul.f32 %v885, 1.442695
  %v937 = vpow.pop %v936
  %v938 = vmul.f32 %v886, 1.442695
  %v939 = vpow.pop %v938
  %v940 = vmul.f32 %v887, 1.442695
  %v941 = vpow.pop %v940
  %v942 = vmul.f32 %v888, 1.442695
  %v943 = vpow.pop %v942
  %v944 = vmul.f32 %v889, 1.442695
  %v945 = vpow.pop %v944
  %v946 = vmul.f32 %v890, 1.442695
  %v947 = vpow.pop %v946
  %v948 = vmul.f32 %v891, 1.442695
  %v949 = vpow.pop %v948
  %v950 = vmul.f32 %v892, 1.442695
  %v951 = vpow.pop %v950
  %v952 = vmul.f32 %v893, 1.442695
  %v953 = vpow.pop %v952
  %v954 = vmul.f32 %v894, 1.442695
  %v955 = vpow.pop %v954
  %v956 = vmul.f32 %v895, 1.442695
  %v957 = vpow.pop %v956
  %v958 = vmul.f32 %v896, 1.442695
  %v959 = vpow.pop %v958
  %v960 = vmul.f32 %v897, 1.442695
  %v961 = vpow.pop %v960
  %v963 = vperm.slane %v865, 0
  %v965 = vmul.f32 %v963, %v899
  %v966 = vmul.f32 %v963, %v901
  %v967 = vmul.f32 %v963, %v903
  %v968 = vmul.f32 %v963, %v905
  %v969 = vmul.f32 %v963, %v907
  %v970 = vmul.f32 %v963, %v909
  %v971 = vmul.f32 %v963, %v911
  %v972 = vmul.f32 %v963, %v913
  %v973 = vmul.f32 %v963, %v915
  %v974 = vmul.f32 %v963, %v917
  %v975 = vmul.f32 %v963, %v919
  %v976 = vmul.f32 %v963, %v921
  %v977 = vmul.f32 %v963, %v923
  %v978 = vmul.f32 %v963, %v925
  %v979 = vmul.f32 %v963, %v927
  %v980 = vmul.f32 %v963, %v929
  %v981 = vmul.f32 %v963, %v931
  %v982 = vmul.f32 %v963, %v933
  %v983 = vmul.f32 %v963, %v935
  %v984 = vmul.f32 %v963, %v937
  %v985 = vmul.f32 %v963, %v939
  %v986 = vmul.f32 %v963, %v941
  %v987 = vmul.f32 %v963, %v943
  %v988 = vmul.f32 %v963, %v945
  %v989 = vmul.f32 %v963, %v947
  %v990 = vmul.f32 %v963, %v949
  %v991 = vmul.f32 %v963, %v951
  %v992 = vmul.f32 %v963, %v953
  %v993 = vmul.f32 %v963, %v955
  %v994 = vmul.f32 %v963, %v957
  %v995 = vmul.f32 %v963, %v959
  %v996 = vmul.f32 %v963, %v961
  %v997 = vld [vmem:[%s9] sm:$0xff]
  %v998 = vld [vmem:[%s9 + $0x8] sm:$0xff]
  %v999 = vld [vmem:[%s9 + $0x10] sm:$0xff]
  %v1000 = vld [vmem:[%s9 + $0x18] sm:$0xff]
  %v1001 = vld [vmem:[%s9 + $0x20] sm:$0xff]
  %v1002 = vld [vmem:[%s9 + $0x28] sm:$0xff]
  %v1003 = vld [vmem:[%s9 + $0x30] sm:$0xff]
  %v1004 = vld [vmem:[%s9 + $0x38] sm:$0xff]
  %v1005 = vld [vmem:[%s9 + $0x40] sm:$0xff]
  %v1006 = vld [vmem:[%s9 + $0x48] sm:$0xff]
  %v1007 = vld [vmem:[%s9 + $0x50] sm:$0xff]
  %v1008 = vld [vmem:[%s9 + $0x58] sm:$0xff]
  %v1009 = vld [vmem:[%s9 + $0x60] sm:$0xff]
  %v1010 = vld [vmem:[%s9 + $0x68] sm:$0xff]
  %v1011 = vld [vmem:[%s9 + $0x70] sm:$0xff]
  %v1012 = vld [vmem:[%s9 + $0x78] sm:$0xff]
  %v1013 = vld [vmem:[%s9 + $0x80] sm:$0xff]
  %v1014 = vld [vmem:[%s9 + $0x88] sm:$0xff]
  %v1015 = vld [vmem:[%s9 + $0x90] sm:$0xff]
  %v1016 = vld [vmem:[%s9 + $0x98] sm:$0xff]
  %v1017 = vld [vmem:[%s9 + $0xa0] sm:$0xff]
  %v1018 = vld [vmem:[%s9 + $0xa8] sm:$0xff]
  %v1019 = vld [vmem:[%s9 + $0xb0] sm:$0xff]
  %v1020 = vld [vmem:[%s9 + $0xb8] sm:$0xff]
  %v1021 = vld [vmem:[%s9 + $0xc0] sm:$0xff]
  %v1022 = vld [vmem:[%s9 + $0xc8] sm:$0xff]
  %v1023 = vld [vmem:[%s9 + $0xd0] sm:$0xff]
  %v1024 = vld [vmem:[%s9 + $0xd8] sm:$0xff]
  %v1025 = vld [vmem:[%s9 + $0xe0] sm:$0xff]
  %v1026 = vld [vmem:[%s9 + $0xe8] sm:$0xff]
  %v1027 = vld [vmem:[%s9 + $0xf0] sm:$0xff]
  %v1028 = vld [vmem:[%s9 + $0xf8] sm:$0xff]
  %1030 = vset.pattern.permute.xlu0 0
  %1031 = vperm.xlu0 %1030, %v997
  %v1032 = vpop.permute.xlu0 %1031
  %1035 = vset.pattern.permute.xlu0 0
  %1036 = vperm.xlu0 %1035, %v998
  %v1037 = vpop.permute.xlu0 %1036
  %1040 = vset.pattern.permute.xlu0 0
  %1041 = vperm.xlu0 %1040, %v999
  %v1042 = vpop.permute.xlu0 %1041
  %1045 = vset.pattern.permute.xlu0 0
  %1046 = vperm.xlu0 %1045, %v1000
  %v1047 = vpop.permute.xlu0 %1046
  %1050 = vset.pattern.permute.xlu0 0
  %1051 = vperm.xlu0 %1050, %v1001
  %v1052 = vpop.permute.xlu0 %1051
  %1055 = vset.pattern.permute.xlu0 0
  %1056 = vperm.xlu0 %1055, %v1002
  %v1057 = vpop.permute.xlu0 %1056
  %1060 = vset.pattern.permute.xlu0 0
  %1061 = vperm.xlu0 %1060, %v1003
  %v1062 = vpop.permute.xlu0 %1061
  %1065 = vset.pattern.permute.xlu0 0
  %1066 = vperm.xlu0 %1065, %v1004
  %v1067 = vpop.permute.xlu0 %1066
  %1070 = vset.pattern.permute.xlu0 0
  %1071 = vperm.xlu0 %1070, %v1005
  %v1072 = vpop.permute.xlu0 %1071
  %1075 = vset.pattern.permute.xlu0 0
  %1076 = vperm.xlu0 %1075, %v1006
  %v1077 = vpop.permute.xlu0 %1076
  %1080 = vset.pattern.permute.xlu0 0
  %1081 = vperm.xlu0 %1080, %v1007
  %v1082 = vpop.permute.xlu0 %1081
  %1085 = vset.pattern.permute.xlu0 0
  %1086 = vperm.xlu0 %1085, %v1008
  %v1087 = vpop.permute.xlu0 %1086
  %1090 = vset.pattern.permute.xlu0 0
  %1091 = vperm.xlu0 %1090, %v1009
  %v1092 = vpop.permute.xlu0 %1091
  %1095 = vset.pattern.permute.xlu0 0
  %1096 = vperm.xlu0 %1095, %v1010
  %v1097 = vpop.permute.xlu0 %1096
  %1100 = vset.pattern.permute.xlu0 0
  %1101 = vperm.xlu0 %1100, %v1011
  %v1102 = vpop.permute.xlu0 %1101
  %1105 = vset.pattern.permute.xlu0 0
  %1106 = vperm.xlu0 %1105, %v1012
  %v1107 = vpop.permute.xlu0 %1106
  %1110 = vset.pattern.permute.xlu0 0
  %1111 = vperm.xlu0 %1110, %v1013
  %v1112 = vpop.permute.xlu0 %1111
  %1115 = vset.pattern.permute.xlu0 0
  %1116 = vperm.xlu0 %1115, %v1014
  %v1117 = vpop.permute.xlu0 %1116
  %1120 = vset.pattern.permute.xlu0 0
  %1121 = vperm.xlu0 %1120, %v1015
  %v1122 = vpop.permute.xlu0 %1121
  %1125 = vset.pattern.permute.xlu0 0
  %1126 = vperm.xlu0 %1125, %v1016
  %v1127 = vpop.permute.xlu0 %1126
  %1130 = vset.pattern.permute.xlu0 0
  %1131 = vperm.xlu0 %1130, %v1017
  %v1132 = vpop.permute.xlu0 %1131
  %1135 = vset.pattern.permute.xlu0 0
  %1136 = vperm.xlu0 %1135, %v1018
  %v1137 = vpop.permute.xlu0 %1136
  %1140 = vset.pattern.permute.xlu0 0
  %1141 = vperm.xlu0 %1140, %v1019
  %v1142 = vpop.permute.xlu0 %1141
  %1145 = vset.pattern.permute.xlu0 0
  %1146 = vperm.xlu0 %1145, %v1020
  %v1147 = vpop.permute.xlu0 %1146
  %1150 = vset.pattern.permute.xlu0 0
  %1151 = vperm.xlu0 %1150, %v1021
  %v1152 = vpop.permute.xlu0 %1151
  %1155 = vset.pattern.permute.xlu0 0
  %1156 = vperm.xlu0 %1155, %v1022
  %v1157 = vpop.permute.xlu0 %1156
  %1160 = vset.pattern.permute.xlu0 0
  %1161 = vperm.xlu0 %1160, %v1023
  %v1162 = vpop.permute.xlu0 %1161
  %1165 = vset.pattern.permute.xlu0 0
  %1166 = vperm.xlu0 %1165, %v1024
  %v1167 = vpop.permute.xlu0 %1166
  %1170 = vset.pattern.permute.xlu0 0
  %1171 = vperm.xlu0 %1170, %v1025
  %v1172 = vpop.permute.xlu0 %1171
  %1175 = vset.pattern.permute.xlu0 0
  %1176 = vperm.xlu0 %1175, %v1026
  %v1177 = vpop.permute.xlu0 %1176
  %1180 = vset.pattern.permute.xlu0 0
  %1181 = vperm.xlu0 %1180, %v1027
  %v1182 = vpop.permute.xlu0 %1181
  %1185 = vset.pattern.permute.xlu0 0
  %1186 = vperm.xlu0 %1185, %v1028
  %v1187 = vpop.permute.xlu0 %1186
  %v1189 = vmul.f32 %v1032, %v668
  %v1190 = vmul.f32 %v1037, %v669
  %v1191 = vmul.f32 %v1042, %v670
  %v1192 = vmul.f32 %v1047, %v671
  %v1193 = vmul.f32 %v1052, %v672
  %v1194 = vmul.f32 %v1057, %v673
  %v1195 = vmul.f32 %v1062, %v674
  %v1196 = vmul.f32 %v1067, %v675
  %v1197 = vmul.f32 %v1072, %v676
  %v1198 = vmul.f32 %v1077, %v677
  %v1199 = vmul.f32 %v1082, %v678
  %v1200 = vmul.f32 %v1087, %v679
  %v1201 = vmul.f32 %v1092, %v680
  %v1202 = vmul.f32 %v1097, %v681
  %v1203 = vmul.f32 %v1102, %v682
  %v1204 = vmul.f32 %v1107, %v683
  %v1205 = vmul.f32 %v1112, %v684
  %v1206 = vmul.f32 %v1117, %v685
  %v1207 = vmul.f32 %v1122, %v686
  %v1208 = vmul.f32 %v1127, %v687
  %v1209 = vmul.f32 %v1132, %v688
  %v1210 = vmul.f32 %v1137, %v689
  %v1211 = vmul.f32 %v1142, %v690
  %v1212 = vmul.f32 %v1147, %v691
  %v1213 = vmul.f32 %v1152, %v692
  %v1214 = vmul.f32 %v1157, %v693
  %v1215 = vmul.f32 %v1162, %v694
  %v1216 = vmul.f32 %v1167, %v695
  %v1217 = vmul.f32 %v1172, %v696
  %v1218 = vmul.f32 %v1177, %v697
  %v1219 = vmul.f32 %v1182, %v698
  %v1220 = vmul.f32 %v1187, %v699
  %v1221 = vadd.f32 %v1189, 0.0
  %v1222 = vadd.f32 %v1190, 0.0
  %v1223 = vadd.f32 %v1191, 0.0
  %v1224 = vadd.f32 %v1192, 0.0
  %v1225 = vadd.f32 %v1193, 0.0
  %v1226 = vadd.f32 %v1194, 0.0
  %v1227 = vadd.f32 %v1195, 0.0
  %v1228 = vadd.f32 %v1196, 0.0
  %v1229 = vadd.f32 %v1197, 0.0
  %v1230 = vadd.f32 %v1198, 0.0
  %v1231 = vadd.f32 %v1199, 0.0
  %v1232 = vadd.f32 %v1200, 0.0
  %v1233 = vadd.f32 %v1201, 0.0
  %v1234 = vadd.f32 %v1202, 0.0
  %v1235 = vadd.f32 %v1203, 0.0
  %v1236 = vadd.f32 %v1204, 0.0
  %v1237 = vadd.f32 %v1205, 0.0
  %v1238 = vadd.f32 %v1206, 0.0
  %v1239 = vadd.f32 %v1207, 0.0
  %v1240 = vadd.f32 %v1208, 0.0
  %v1241 = vadd.f32 %v1209, 0.0
  %v1242 = vadd.f32 %v1210, 0.0
  %v1243 = vadd.f32 %v1211, 0.0
  %v1244 = vadd.f32 %v1212, 0.0
  %v1245 = vadd.f32 %v1213, 0.0
  %v1246 = vadd.f32 %v1214, 0.0
  %v1247 = vadd.f32 %v1215, 0.0
  %v1248 = vadd.f32 %v1216, 0.0
  %v1249 = vadd.f32 %v1217, 0.0
  %v1250 = vadd.f32 %v1218, 0.0
  %v1251 = vadd.f32 %v1219, 0.0
  %v1252 = vadd.f32 %v1220, 0.0
  %1253 = vset.pattern.permute.xlu0 1
  %1254 = vperm.xlu0 %1253, %v997
  %v1255 = vpop.permute.xlu0 %1254
  %1257 = vset.pattern.permute.xlu0 1
  %1258 = vperm.xlu0 %1257, %v998
  %v1259 = vpop.permute.xlu0 %1258
  %1261 = vset.pattern.permute.xlu0 1
  %1262 = vperm.xlu0 %1261, %v999
  %v1263 = vpop.permute.xlu0 %1262
  %1265 = vset.pattern.permute.xlu0 1
  %1266 = vperm.xlu0 %1265, %v1000
  %v1267 = vpop.permute.xlu0 %1266
  %1269 = vset.pattern.permute.xlu0 1
  %1270 = vperm.xlu0 %1269, %v1001
  %v1271 = vpop.permute.xlu0 %1270
  %1273 = vset.pattern.permute.xlu0 1
  %1274 = vperm.xlu0 %1273, %v1002
  %v1275 = vpop.permute.xlu0 %1274
  %1277 = vset.pattern.permute.xlu0 1
  %1278 = vperm.xlu0 %1277, %v1003
  %v1279 = vpop.permute.xlu0 %1278
  %1281 = vset.pattern.permute.xlu0 1
  %1282 = vperm.xlu0 %1281, %v1004
  %v1283 = vpop.permute.xlu0 %1282
  %1285 = vset.pattern.permute.xlu0 1
  %1286 = vperm.xlu0 %1285, %v1005
  %v1287 = vpop.permute.xlu0 %1286
  %1289 = vset.pattern.permute.xlu0 1
  %1290 = vperm.xlu0 %1289, %v1006
  %v1291 = vpop.permute.xlu0 %1290
  %1293 = vset.pattern.permute.xlu0 1
  %1294 = vperm.xlu0 %1293, %v1007
  %v1295 = vpop.permute.xlu0 %1294
  %1297 = vset.pattern.permute.xlu0 1
  %1298 = vperm.xlu0 %1297, %v1008
  %v1299 = vpop.permute.xlu0 %1298
  %1301 = vset.pattern.permute.xlu0 1
  %1302 = vperm.xlu0 %1301, %v1009
  %v1303 = vpop.permute.xlu0 %1302
  %1305 = vset.pattern.permute.xlu0 1
  %1306 = vperm.xlu0 %1305, %v1010
  %v1307 = vpop.permute.xlu0 %1306
  %1309 = vset.pattern.permute.xlu0 1
  %1310 = vperm.xlu0 %1309, %v1011
  %v1311 = vpop.permute.xlu0 %1310
  %1313 = vset.pattern.permute.xlu0 1
  %1314 = vperm.xlu0 %1313, %v1012
  %v1315 = vpop.permute.xlu0 %1314
  %1317 = vset.pattern.permute.xlu0 1
  %1318 = vperm.xlu0 %1317, %v1013
  %v1319 = vpop.permute.xlu0 %1318
  %1321 = vset.pattern.permute.xlu0 1
  %1322 = vperm.xlu0 %1321, %v1014
  %v1323 = vpop.permute.xlu0 %1322
  %1325 = vset.pattern.permute.xlu0 1
  %1326 = vperm.xlu0 %1325, %v1015
  %v1327 = vpop.permute.xlu0 %1326
  %1329 = vset.pattern.permute.xlu0 1
  %1330 = vperm.xlu0 %1329, %v1016
  %v1331 = vpop.permute.xlu0 %1330
  %1333 = vset.pattern.permute.xlu0 1
  %1334 = vperm.xlu0 %1333, %v1017
  %v1335 = vpop.permute.xlu0 %1334
  %1337 = vset.pattern.permute.xlu0 1
  %1338 = vperm.xlu0 %1337, %v1018
  %v1339 = vpop.permute.xlu0 %1338
  %1341 = vset.pattern.permute.xlu0 1
  %1342 = vperm.xlu0 %1341, %v1019
  %v1343 = vpop.permute.xlu0 %1342
  %1345 = vset.pattern.permute.xlu0 1
  %1346 = vperm.xlu0 %1345, %v1020
  %v1347 = vpop.permute.xlu0 %1346
  %1349 = vset.pattern.permute.xlu0 1
  %1350 = vperm.xlu0 %1349, %v1021
  %v1351 = vpop.permute.xlu0 %1350
  %1353 = vset.pattern.permute.xlu0 1
  %1354 = vperm.xlu0 %1353, %v1022
  %v1355 = vpop.permute.xlu0 %1354
  %1357 = vset.pattern.permute.xlu0 1
  %1358 = vperm.xlu0 %1357, %v1023
  %v1359 = vpop.permute.xlu0 %1358
  %1361 = vset.pattern.permute.xlu0 1
  %1362 = vperm.xlu0 %1361, %v1024
  %v1363 = vpop.permute.xlu0 %1362
  %1365 = vset.pattern.permute.xlu0 1
  %1366 = vperm.xlu0 %1365, %v1025
  %v1367 = vpop.permute.xlu0 %1366
  %1369 = vset.pattern.permute.xlu0 1
  %1370 = vperm.xlu0 %1369, %v1026
  %v1371 = vpop.permute.xlu0 %1370
  %1373 = vset.pattern.permute.xlu0 1
  %1374 = vperm.xlu0 %1373, %v1027
  %v1375 = vpop.permute.xlu0 %1374
  %1377 = vset.pattern.permute.xlu0 1
  %1378 = vperm.xlu0 %1377, %v1028
  %v1379 = vpop.permute.xlu0 %1378
  %v1381 = vmul.f32 %v1255, %v668
  %v1382 = vmul.f32 %v1259, %v669
  %v1383 = vmul.f32 %v1263, %v670
  %v1384 = vmul.f32 %v1267, %v671
  %v1385 = vmul.f32 %v1271, %v672
  %v1386 = vmul.f32 %v1275, %v673
  %v1387 = vmul.f32 %v1279, %v674
  %v1388 = vmul.f32 %v1283, %v675
  %v1389 = vmul.f32 %v1287, %v676
  %v1390 = vmul.f32 %v1291, %v677
  %v1391 = vmul.f32 %v1295, %v678
  %v1392 = vmul.f32 %v1299, %v679
  %v1393 = vmul.f32 %v1303, %v680
  %v1394 = vmul.f32 %v1307, %v681
  %v1395 = vmul.f32 %v1311, %v682
  %v1396 = vmul.f32 %v1315, %v683
  %v1397 = vmul.f32 %v1319, %v684
  %v1398 = vmul.f32 %v1323, %v685
  %v1399 = vmul.f32 %v1327, %v686
  %v1400 = vmul.f32 %v1331, %v687
  %v1401 = vmul.f32 %v1335, %v688
  %v1402 = vmul.f32 %v1339, %v689
  %v1403 = vmul.f32 %v1343, %v690
  %v1404 = vmul.f32 %v1347, %v691
  %v1405 = vmul.f32 %v1351, %v692
  %v1406 = vmul.f32 %v1355, %v693
  %v1407 = vmul.f32 %v1359, %v694
  %v1408 = vmul.f32 %v1363, %v695
  %v1409 = vmul.f32 %v1367, %v696
  %v1410 = vmul.f32 %v1371, %v697
  %v1411 = vmul.f32 %v1375, %v698
  %v1412 = vmul.f32 %v1379, %v699
  %1445 = vrot.lane.b32.xlu0 %v1381, 120
  %v1446 = vpop.permute.xlu0 %1445
  %1447 = vrot.lane.b32.xlu0 %v1382, 120
  %v1448 = vpop.permute.xlu0 %1447
  %1449 = vrot.lane.b32.xlu0 %v1383, 120
  %v1450 = vpop.permute.xlu0 %1449
  %1451 = vrot.lane.b32.xlu0 %v1384, 120
  %v1452 = vpop.permute.xlu0 %1451
  %1453 = vrot.lane.b32.xlu0 %v1385, 120
  %v1454 = vpop.permute.xlu0 %1453
  %1455 = vrot.lane.b32.xlu0 %v1386, 120
  %v1456 = vpop.permute.xlu0 %1455
  %1457 = vrot.lane.b32.xlu0 %v1387, 120
  %v1458 = vpop.permute.xlu0 %1457
  %1459 = vrot.lane.b32.xlu0 %v1388, 120
  %v1460 = vpop.permute.xlu0 %1459
  %1461 = vrot.lane.b32.xlu0 %v1389, 120
  %v1462 = vpop.permute.xlu0 %1461
  %1463 = vrot.lane.b32.xlu0 %v1390, 120
  %v1464 = vpop.permute.xlu0 %1463
  %1465 = vrot.lane.b32.xlu0 %v1391, 120
  %v1466 = vpop.permute.xlu0 %1465
  %1467 = vrot.lane.b32.xlu0 %v1392, 120
  %v1468 = vpop.permute.xlu0 %1467
  %1469 = vrot.lane.b32.xlu0 %v1393, 120
  %v1470 = vpop.permute.xlu0 %1469
  %1471 = vrot.lane.b32.xlu0 %v1394, 120
  %v1472 = vpop.permute.xlu0 %1471
  %1473 = vrot.lane.b32.xlu0 %v1395, 120
  %v1474 = vpop.permute.xlu0 %1473
  %1475 = vrot.lane.b32.xlu0 %v1396, 120
  %v1476 = vpop.permute.xlu0 %1475
  %1477 = vrot.lane.b32.xlu0 %v1397, 120
  %v1478 = vpop.permute.xlu0 %1477
  %1479 = vrot.lane.b32.xlu0 %v1398, 120
  %v1480 = vpop.permute.xlu0 %1479
  %1481 = vrot.lane.b32.xlu0 %v1399, 120
  %v1482 = vpop.permute.xlu0 %1481
  %1483 = vrot.lane.b32.xlu0 %v1400, 120
  %v1484 = vpop.permute.xlu0 %1483
  %1485 = vrot.lane.b32.xlu0 %v1401, 120
  %v1486 = vpop.permute.xlu0 %1485
  %1487 = vrot.lane.b32.xlu0 %v1402, 120
  %v1488 = vpop.permute.xlu0 %1487
  %1489 = vrot.lane.b32.xlu0 %v1403, 120
  %v1490 = vpop.permute.xlu0 %1489
  %1491 = vrot.lane.b32.xlu0 %v1404, 120
  %v1492 = vpop.permute.xlu0 %1491
  %1493 = vrot.lane.b32.xlu0 %v1405, 120
  %v1494 = vpop.permute.xlu0 %1493
  %1495 = vrot.lane.b32.xlu0 %v1406, 120
  %v1496 = vpop.permute.xlu0 %1495
  %1497 = vrot.lane.b32.xlu0 %v1407, 120
  %v1498 = vpop.permute.xlu0 %1497
  %1499 = vrot.lane.b32.xlu0 %v1408, 120
  %v1500 = vpop.permute.xlu0 %1499
  %1501 = vrot.lane.b32.xlu0 %v1409, 120
  %v1502 = vpop.permute.xlu0 %1501
  %1503 = vrot.lane.b32.xlu0 %v1410, 120
  %v1504 = vpop.permute.xlu0 %1503
  %1505 = vrot.lane.b32.xlu0 %v1411, 120
  %v1506 = vpop.permute.xlu0 %1505
  %1507 = vrot.lane.b32.xlu0 %v1412, 120
  %v1508 = vpop.permute.xlu0 %1507
  %v1541 = vadd.f32 %v1221, %v1446
  %v1542 = vadd.f32 %v1222, %v1448
  %v1543 = vadd.f32 %v1223, %v1450
  %v1544 = vadd.f32 %v1224, %v1452
  %v1545 = vadd.f32 %v1225, %v1454
  %v1546 = vadd.f32 %v1226, %v1456
  %v1547 = vadd.f32 %v1227, %v1458
  %v1548 = vadd.f32 %v1228, %v1460
  %v1549 = vadd.f32 %v1229, %v1462
  %v1550 = vadd.f32 %v1230, %v1464
  %v1551 = vadd.f32 %v1231, %v1466
  %v1552 = vadd.f32 %v1232, %v1468
  %v1553 = vadd.f32 %v1233, %v1470
  %v1554 = vadd.f32 %v1234, %v1472
  %v1555 = vadd.f32 %v1235, %v1474
  %v1556 = vadd.f32 %v1236, %v1476
  %v1557 = vadd.f32 %v1237, %v1478
  %v1558 = vadd.f32 %v1238, %v1480
  %v1559 = vadd.f32 %v1239, %v1482
  %v1560 = vadd.f32 %v1240, %v1484
  %v1561 = vadd.f32 %v1241, %v1486
  %v1562 = vadd.f32 %v1242, %v1488
  %v1563 = vadd.f32 %v1243, %v1490
  %v1564 = vadd.f32 %v1244, %v1492
  %v1565 = vadd.f32 %v1245, %v1494
  %v1566 = vadd.f32 %v1246, %v1496
  %v1567 = vadd.f32 %v1247, %v1498
  %v1568 = vadd.f32 %v1248, %v1500
  %v1569 = vadd.f32 %v1249, %v1502
  %v1570 = vadd.f32 %v1250, %v1504
  %v1571 = vadd.f32 %v1251, %v1506
  %v1572 = vadd.f32 %v1252, %v1508
  %1573 = vset.pattern.permute.xlu0 2
  %1574 = vperm.xlu0 %1573, %v997
  %v1575 = vpop.permute.xlu0 %1574
  %1577 = vset.pattern.permute.xlu0 2
  %1578 = vperm.xlu0 %1577, %v998
  %v1579 = vpop.permute.xlu0 %1578
  %1581 = vset.pattern.permute.xlu0 2
  %1582 = vperm.xlu0 %1581, %v999
  %v1583 = vpop.permute.xlu0 %1582
  %1585 = vset.pattern.permute.xlu0 2
  %1586 = vperm.xlu0 %1585, %v1000
  %v1587 = vpop.permute.xlu0 %1586
  %1589 = vset.pattern.permute.xlu0 2
  %1590 = vperm.xlu0 %1589, %v1001
  %v1591 = vpop.permute.xlu0 %1590
  %1593 = vset.pattern.permute.xlu0 2
  %1594 = vperm.xlu0 %1593, %v1002
  %v1595 = vpop.permute.xlu0 %1594
  %1597 = vset.pattern.permute.xlu0 2
  %1598 = vperm.xlu0 %1597, %v1003
  %v1599 = vpop.permute.xlu0 %1598
  %1601 = vset.pattern.permute.xlu0 2
  %1602 = vperm.xlu0 %1601, %v1004
  %v1603 = vpop.permute.xlu0 %1602
  %1605 = vset.pattern.permute.xlu0 2
  %1606 = vperm.xlu0 %1605, %v1005
  %v1607 = vpop.permute.xlu0 %1606
  %1609 = vset.pattern.permute.xlu0 2
  %1610 = vperm.xlu0 %1609, %v1006
  %v1611 = vpop.permute.xlu0 %1610
  %1613 = vset.pattern.permute.xlu0 2
  %1614 = vperm.xlu0 %1613, %v1007
  %v1615 = vpop.permute.xlu0 %1614
  %1617 = vset.pattern.permute.xlu0 2
  %1618 = vperm.xlu0 %1617, %v1008
  %v1619 = vpop.permute.xlu0 %1618
  %1621 = vset.pattern.permute.xlu0 2
  %1622 = vperm.xlu0 %1621, %v1009
  %v1623 = vpop.permute.xlu0 %1622
  %1625 = vset.pattern.permute.xlu0 2
  %1626 = vperm.xlu0 %1625, %v1010
  %v1627 = vpop.permute.xlu0 %1626
  %1629 = vset.pattern.permute.xlu0 2
  %1630 = vperm.xlu0 %1629, %v1011
  %v1631 = vpop.permute.xlu0 %1630
  %1633 = vset.pattern.permute.xlu0 2
  %1634 = vperm.xlu0 %1633, %v1012
  %v1635 = vpop.permute.xlu0 %1634
  %1637 = vset.pattern.permute.xlu0 2
  %1638 = vperm.xlu0 %1637, %v1013
  %v1639 = vpop.permute.xlu0 %1638
  %1641 = vset.pattern.permute.xlu0 2
  %1642 = vperm.xlu0 %1641, %v1014
  %v1643 = vpop.permute.xlu0 %1642
  %1645 = vset.pattern.permute.xlu0 2
  %1646 = vperm.xlu0 %1645, %v1015
  %v1647 = vpop.permute.xlu0 %1646
  %1649 = vset.pattern.permute.xlu0 2
  %1650 = vperm.xlu0 %1649, %v1016
  %v1651 = vpop.permute.xlu0 %1650
  %1653 = vset.pattern.permute.xlu0 2
  %1654 = vperm.xlu0 %1653, %v1017
  %v1655 = vpop.permute.xlu0 %1654
  %1657 = vset.pattern.permute.xlu0 2
  %1658 = vperm.xlu0 %1657, %v1018
  %v1659 = vpop.permute.xlu0 %1658
  %1661 = vset.pattern.permute.xlu0 2
  %1662 = vperm.xlu0 %1661, %v1019
  %v1663 = vpop.permute.xlu0 %1662
  %1665 = vset.pattern.permute.xlu0 2
  %1666 = vperm.xlu0 %1665, %v1020
  %v1667 = vpop.permute.xlu0 %1666
  %1669 = vset.pattern.permute.xlu0 2
  %1670 = vperm.xlu0 %1669, %v1021
  %v1671 = vpop.permute.xlu0 %1670
  %1673 = vset.pattern.permute.xlu0 2
  %1674 = vperm.xlu0 %1673, %v1022
  %v1675 = vpop.permute.xlu0 %1674
  %1677 = vset.pattern.permute.xlu0 2
  %1678 = vperm.xlu0 %1677, %v1023
  %v1679 = vpop.permute.xlu0 %1678
  %1681 = vset.pattern.permute.xlu0 2
  %1682 = vperm.xlu0 %1681, %v1024
  %v1683 = vpop.permute.xlu0 %1682
  %1685 = vset.pattern.permute.xlu0 2
  %1686 = vperm.xlu0 %1685, %v1025
  %v1687 = vpop.permute.xlu0 %1686
  %1689 = vset.pattern.permute.xlu0 2
  %1690 = vperm.xlu0 %1689, %v1026
  %v1691 = vpop.permute.xlu0 %1690
  %1693 = vset.pattern.permute.xlu0 2
  %1694 = vperm.xlu0 %1693, %v1027
  %v1695 = vpop.permute.xlu0 %1694
  %1697 = vset.pattern.permute.xlu0 2
  %1698 = vperm.xlu0 %1697, %v1028
  %v1699 = vpop.permute.xlu0 %1698
  %v1701 = vmul.f32 %v1575, %v668
  %v1702 = vmul.f32 %v1579, %v669
  %v1703 = vmul.f32 %v1583, %v670
  %v1704 = vmul.f32 %v1587, %v671
  %v1705 = vmul.f32 %v1591, %v672
  %v1706 = vmul.f32 %v1595, %v673
  %v1707 = vmul.f32 %v1599, %v674
  %v1708 = vmul.f32 %v1603, %v675
  %v1709 = vmul.f32 %v1607, %v676
  %v1710 = vmul.f32 %v1611, %v677
  %v1711 = vmul.f32 %v1615, %v678
  %v1712 = vmul.f32 %v1619, %v679
  %v1713 = vmul.f32 %v1623, %v680
  %v1714 = vmul.f32 %v1627, %v681
  %v1715 = vmul.f32 %v1631, %v682
  %v1716 = vmul.f32 %v1635, %v683
  %v1717 = vmul.f32 %v1639, %v684
  %v1718 = vmul.f32 %v1643, %v685
  %v1719 = vmul.f32 %v1647, %v686
  %v1720 = vmul.f32 %v1651, %v687
  %v1721 = vmul.f32 %v1655, %v688
  %v1722 = vmul.f32 %v1659, %v689
  %v1723 = vmul.f32 %v1663, %v690
  %v1724 = vmul.f32 %v1667, %v691
  %v1725 = vmul.f32 %v1671, %v692
  %v1726 = vmul.f32 %v1675, %v693
  %v1727 = vmul.f32 %v1679, %v694
  %v1728 = vmul.f32 %v1683, %v695
  %v1729 = vmul.f32 %v1687, %v696
  %v1730 = vmul.f32 %v1691, %v697
  %v1731 = vmul.f32 %v1695, %v698
  %v1732 = vmul.f32 %v1699, %v699
  %1765 = vrot.lane.b32.xlu0 %v1701, 112
  %v1766 = vpop.permute.xlu0 %1765
  %1767 = vrot.lane.b32.xlu0 %v1702, 112
  %v1768 = vpop.permute.xlu0 %1767
  %1769 = vrot.lane.b32.xlu0 %v1703, 112
  %v1770 = vpop.permute.xlu0 %1769
  %1771 = vrot.lane.b32.xlu0 %v1704, 112
  %v1772 = vpop.permute.xlu0 %1771
  %1773 = vrot.lane.b32.xlu0 %v1705, 112
  %v1774 = vpop.permute.xlu0 %1773
  %1775 = vrot.lane.b32.xlu0 %v1706, 112
  %v1776 = vpop.permute.xlu0 %1775
  %1777 = vrot.lane.b32.xlu0 %v1707, 112
  %v1778 = vpop.permute.xlu0 %1777
  %1779 = vrot.lane.b32.xlu0 %v1708, 112
  %v1780 = vpop.permute.xlu0 %1779
  %1781 = vrot.lane.b32.xlu0 %v1709, 112
  %v1782 = vpop.permute.xlu0 %1781
  %1783 = vrot.lane.b32.xlu0 %v1710, 112
  %v1784 = vpop.permute.xlu0 %1783
  %1785 = vrot.lane.b32.xlu0 %v1711, 112
  %v1786 = vpop.permute.xlu0 %1785
  %1787 = vrot.lane.b32.xlu0 %v1712, 112
  %v1788 = vpop.permute.xlu0 %1787
  %1789 = vrot.lane.b32.xlu0 %v1713, 112
  %v1790 = vpop.permute.xlu0 %1789
  %1791 = vrot.lane.b32.xlu0 %v1714, 112
  %v1792 = vpop.permute.xlu0 %1791
  %1793 = vrot.lane.b32.xlu0 %v1715, 112
  %v1794 = vpop.permute.xlu0 %1793
  %1795 = vrot.lane.b32.xlu0 %v1716, 112
  %v1796 = vpop.permute.xlu0 %1795
  %1797 = vrot.lane.b32.xlu0 %v1717, 112
  %v1798 = vpop.permute.xlu0 %1797
  %1799 = vrot.lane.b32.xlu0 %v1718, 112
  %v1800 = vpop.permute.xlu0 %1799
  %1801 = vrot.lane.b32.xlu0 %v1719, 112
  %v1802 = vpop.permute.xlu0 %1801
  %1803 = vrot.lane.b32.xlu0 %v1720, 112
  %v1804 = vpop.permute.xlu0 %1803
  %1805 = vrot.lane.b32.xlu0 %v1721, 112
  %v1806 = vpop.permute.xlu0 %1805
  %1807 = vrot.lane.b32.xlu0 %v1722, 112
  %v1808 = vpop.permute.xlu0 %1807
  %1809 = vrot.lane.b32.xlu0 %v1723, 112
  %v1810 = vpop.permute.xlu0 %1809
  %1811 = vrot.lane.b32.xlu0 %v1724, 112
  %v1812 = vpop.permute.xlu0 %1811
  %1813 = vrot.lane.b32.xlu0 %v1725, 112
  %v1814 = vpop.permute.xlu0 %1813
  %1815 = vrot.lane.b32.xlu0 %v1726, 112
  %v1816 = vpop.permute.xlu0 %1815
  %1817 = vrot.lane.b32.xlu0 %v1727, 112
  %v1818 = vpop.permute.xlu0 %1817
  %1819 = vrot.lane.b32.xlu0 %v1728, 112
  %v1820 = vpop.permute.xlu0 %1819
  %1821 = vrot.lane.b32.xlu0 %v1729, 112
  %v1822 = vpop.permute.xlu0 %1821
  %1823 = vrot.lane.b32.xlu0 %v1730, 112
  %v1824 = vpop.permute.xlu0 %1823
  %1825 = vrot.lane.b32.xlu0 %v1731, 112
  %v1826 = vpop.permute.xlu0 %1825
  %1827 = vrot.lane.b32.xlu0 %v1732, 112
  %v1828 = vpop.permute.xlu0 %1827
  %v1861 = vadd.f32 %v1541, %v1766
  %v1862 = vadd.f32 %v1542, %v1768
  %v1863 = vadd.f32 %v1543, %v1770
  %v1864 = vadd.f32 %v1544, %v1772
  %v1865 = vadd.f32 %v1545, %v1774
  %v1866 = vadd.f32 %v1546, %v1776
  %v1867 = vadd.f32 %v1547, %v1778
  %v1868 = vadd.f32 %v1548, %v1780
  %v1869 = vadd.f32 %v1549, %v1782
  %v1870 = vadd.f32 %v1550, %v1784
  %v1871 = vadd.f32 %v1551, %v1786
  %v1872 = vadd.f32 %v1552, %v1788
  %v1873 = vadd.f32 %v1553, %v1790
  %v1874 = vadd.f32 %v1554, %v1792
  %v1875 = vadd.f32 %v1555, %v1794
  %v1876 = vadd.f32 %v1556, %v1796
  %v1877 = vadd.f32 %v1557, %v1798
  %v1878 = vadd.f32 %v1558, %v1800
  %v1879 = vadd.f32 %v1559, %v1802
  %v1880 = vadd.f32 %v1560, %v1804
  %v1881 = vadd.f32 %v1561, %v1806
  %v1882 = vadd.f32 %v1562, %v1808
  %v1883 = vadd.f32 %v1563, %v1810
  %v1884 = vadd.f32 %v1564, %v1812
  %v1885 = vadd.f32 %v1565, %v1814
  %v1886 = vadd.f32 %v1566, %v1816
  %v1887 = vadd.f32 %v1567, %v1818
  %v1888 = vadd.f32 %v1568, %v1820
  %v1889 = vadd.f32 %v1569, %v1822
  %v1890 = vadd.f32 %v1570, %v1824
  %v1891 = vadd.f32 %v1571, %v1826
  %v1892 = vadd.f32 %v1572, %v1828
  %v1893 = vld [vmem:[#allocation4] sm:$0xff]
  %v1894 = vld [vmem:[#allocation4 + $0x8] sm:$0xff]
  %1896 = vset.pattern.permute.xlu0 0
  %1897 = vperm.xlu0 %1896, %v965
  %v1898 = vpop.permute.xlu0 %1897
  %1901 = vset.pattern.permute.xlu0 0
  %1902 = vperm.xlu0 %1901, %v966
  %v1903 = vpop.permute.xlu0 %1902
  %1906 = vset.pattern.permute.xlu0 0
  %1907 = vperm.xlu0 %1906, %v967
  %v1908 = vpop.permute.xlu0 %1907
  %1911 = vset.pattern.permute.xlu0 0
  %1912 = vperm.xlu0 %1911, %v968
  %v1913 = vpop.permute.xlu0 %1912
  %1916 = vset.pattern.permute.xlu0 0
  %1917 = vperm.xlu0 %1916, %v969
  %v1918 = vpop.permute.xlu0 %1917
  %1921 = vset.pattern.permute.xlu0 0
  %1922 = vperm.xlu0 %1921, %v970
  %v1923 = vpop.permute.xlu0 %1922
  %1926 = vset.pattern.permute.xlu0 0
  %1927 = vperm.xlu0 %1926, %v971
  %v1928 = vpop.permute.xlu0 %1927
  %1931 = vset.pattern.permute.xlu0 0
  %1932 = vperm.xlu0 %1931, %v972
  %v1933 = vpop.permute.xlu0 %1932
  %1936 = vset.pattern.permute.xlu0 0
  %1937 = vperm.xlu0 %1936, %v973
  %v1938 = vpop.permute.xlu0 %1937
  %1941 = vset.pattern.permute.xlu0 0
  %1942 = vperm.xlu0 %1941, %v974
  %v1943 = vpop.permute.xlu0 %1942
  %1946 = vset.pattern.permute.xlu0 0
  %1947 = vperm.xlu0 %1946, %v975
  %v1948 = vpop.permute.xlu0 %1947
  %1951 = vset.pattern.permute.xlu0 0
  %1952 = vperm.xlu0 %1951, %v976
  %v1953 = vpop.permute.xlu0 %1952
  %1956 = vset.pattern.permute.xlu0 0
  %1957 = vperm.xlu0 %1956, %v977
  %v1958 = vpop.permute.xlu0 %1957
  %1961 = vset.pattern.permute.xlu0 0
  %1962 = vperm.xlu0 %1961, %v978
  %v1963 = vpop.permute.xlu0 %1962
  %1966 = vset.pattern.permute.xlu0 0
  %1967 = vperm.xlu0 %1966, %v979
  %v1968 = vpop.permute.xlu0 %1967
  %1971 = vset.pattern.permute.xlu0 0
  %1972 = vperm.xlu0 %1971, %v980
  %v1973 = vpop.permute.xlu0 %1972
  %1976 = vset.pattern.permute.xlu0 0
  %1977 = vperm.xlu0 %1976, %v981
  %v1978 = vpop.permute.xlu0 %1977
  %1981 = vset.pattern.permute.xlu0 0
  %1982 = vperm.xlu0 %1981, %v982
  %v1983 = vpop.permute.xlu0 %1982
  %1986 = vset.pattern.permute.xlu0 0
  %1987 = vperm.xlu0 %1986, %v983
  %v1988 = vpop.permute.xlu0 %1987
  %1991 = vset.pattern.permute.xlu0 0
  %1992 = vperm.xlu0 %1991, %v984
  %v1993 = vpop.permute.xlu0 %1992
  %1996 = vset.pattern.permute.xlu0 0
  %1997 = vperm.xlu0 %1996, %v985
  %v1998 = vpop.permute.xlu0 %1997
  %2001 = vset.pattern.permute.xlu0 0
  %2002 = vperm.xlu0 %2001, %v986
  %v2003 = vpop.permute.xlu0 %2002
  %2006 = vset.pattern.permute.xlu0 0
  %2007 = vperm.xlu0 %2006, %v987
  %v2008 = vpop.permute.xlu0 %2007
  %2011 = vset.pattern.permute.xlu0 0
  %2012 = vperm.xlu0 %2011, %v988
  %v2013 = vpop.permute.xlu0 %2012
  %2016 = vset.pattern.permute.xlu0 0
  %2017 = vperm.xlu0 %2016, %v989
  %v2018 = vpop.permute.xlu0 %2017
  %2021 = vset.pattern.permute.xlu0 0
  %2022 = vperm.xlu0 %2021, %v990
  %v2023 = vpop.permute.xlu0 %2022
  %2026 = vset.pattern.permute.xlu0 0
  %2027 = vperm.xlu0 %2026, %v991
  %v2028 = vpop.permute.xlu0 %2027
  %2031 = vset.pattern.permute.xlu0 0
  %2032 = vperm.xlu0 %2031, %v992
  %v2033 = vpop.permute.xlu0 %2032
  %2036 = vset.pattern.permute.xlu0 0
  %2037 = vperm.xlu0 %2036, %v993
  %v2038 = vpop.permute.xlu0 %2037
  %2041 = vset.pattern.permute.xlu0 0
  %2042 = vperm.xlu0 %2041, %v994
  %v2043 = vpop.permute.xlu0 %2042
  %2046 = vset.pattern.permute.xlu0 0
  %2047 = vperm.xlu0 %2046, %v995
  %v2048 = vpop.permute.xlu0 %2047
  %2051 = vset.pattern.permute.xlu0 0
  %2052 = vperm.xlu0 %2051, %v996
  %v2053 = vpop.permute.xlu0 %2052
  %v2055 = vmul.f32 %v1898, %v1861
  %v2056 = vmul.f32 %v1903, %v1862
  %v2057 = vmul.f32 %v1908, %v1863
  %v2058 = vmul.f32 %v1913, %v1864
  %v2059 = vmul.f32 %v1918, %v1865
  %v2060 = vmul.f32 %v1923, %v1866
  %v2061 = vmul.f32 %v1928, %v1867
  %v2062 = vmul.f32 %v1933, %v1868
  %v2063 = vmul.f32 %v1938, %v1869
  %v2064 = vmul.f32 %v1943, %v1870
  %v2065 = vmul.f32 %v1948, %v1871
  %v2066 = vmul.f32 %v1953, %v1872
  %v2067 = vmul.f32 %v1958, %v1873
  %v2068 = vmul.f32 %v1963, %v1874
  %v2069 = vmul.f32 %v1968, %v1875
  %v2070 = vmul.f32 %v1973, %v1876
  %v2071 = vmul.f32 %v1978, %v1877
  %v2072 = vmul.f32 %v1983, %v1878
  %v2073 = vmul.f32 %v1988, %v1879
  %v2074 = vmul.f32 %v1993, %v1880
  %v2075 = vmul.f32 %v1998, %v1881
  %v2076 = vmul.f32 %v2003, %v1882
  %v2077 = vmul.f32 %v2008, %v1883
  %v2078 = vmul.f32 %v2013, %v1884
  %v2079 = vmul.f32 %v2018, %v1885
  %v2080 = vmul.f32 %v2023, %v1886
  %v2081 = vmul.f32 %v2028, %v1887
  %v2082 = vmul.f32 %v2033, %v1888
  %v2083 = vmul.f32 %v2038, %v1889
  %v2084 = vmul.f32 %v2043, %v1890
  %v2085 = vmul.f32 %v2048, %v1891
  %v2086 = vmul.f32 %v2053, %v1892
  %v2087 = vpack.c.bf16 %v2056, %v2055
  %v2088 = vpack.c.bf16 %v2058, %v2057
  %v2089 = vpack.c.bf16 %v2060, %v2059
  %v2090 = vpack.c.bf16 %v2062, %v2061
  %v2091 = vpack.c.bf16 %v2064, %v2063
  %v2092 = vpack.c.bf16 %v2066, %v2065
  %v2093 = vpack.c.bf16 %v2068, %v2067
  %v2094 = vpack.c.bf16 %v2070, %v2069
  %v2095 = vpack.c.bf16 %v2072, %v2071
  %v2096 = vpack.c.bf16 %v2074, %v2073
  %v2097 = vpack.c.bf16 %v2076, %v2075
  %v2098 = vpack.c.bf16 %v2078, %v2077
  %v2099 = vpack.c.bf16 %v2080, %v2079
  %v2100 = vpack.c.bf16 %v2082, %v2081
  %v2101 = vpack.c.bf16 %v2084, %v2083
  %v2102 = vpack.c.bf16 %v2086, %v2085
  %2119 = vxpose.xlu0.c.b16.start [1/8] %v281, 128
  %2120 = vxpose.xlu0.c.b16.cont [2/8] %v282, 128
  %2121 = vxpose.xlu0.c.b16.cont [3/8] %v283, 128
  %2122 = vxpose.xlu0.c.b16.cont [4/8] %v284, 128
  %2123 = vxpose.xlu0.c.b16.cont [5/8] %v285, 128
  %2124 = vxpose.xlu0.c.b16.cont [6/8] %v286, 128
  %2125 = vxpose.xlu0.c.b16.cont [7/8] %v287, 128
  %2126 = vxpose.xlu0.c.b16.end [8/8] %v288, 128
  %v2127 = vpop.trf.xlu0
  %v2128 = vpop.trf.xlu0
  %v2129 = vpop.trf.xlu0
  %v2130 = vpop.trf.xlu0
  %v2131 = vpop.trf.xlu0
  %v2132 = vpop.trf.xlu0
  %v2133 = vpop.trf.xlu0
  %v2134 = vpop.trf.xlu0
  %2135 = vxpose.xlu0.c.b16.start [1/8] %v289, 128
  %2136 = vxpose.xlu0.c.b16.cont [2/8] %v290, 128
  %2137 = vxpose.xlu0.c.b16.cont [3/8] %v291, 128
  %2138 = vxpose.xlu0.c.b16.cont [4/8] %v292, 128
  %2139 = vxpose.xlu0.c.b16.cont [5/8] %v293, 128
  %2140 = vxpose.xlu0.c.b16.cont [6/8] %v294, 128
  %2141 = vxpose.xlu0.c.b16.cont [7/8] %v295, 128
  %2142 = vxpose.xlu0.c.b16.end [8/8] %v296, 128
  %v2143 = vpop.trf.xlu0
  %v2144 = vpop.trf.xlu0
  %v2145 = vpop.trf.xlu0
  %v2146 = vpop.trf.xlu0
  %v2147 = vpop.trf.xlu0
  %v2148 = vpop.trf.xlu0
  %v2149 = vpop.trf.xlu0
  %v2150 = vpop.trf.xlu0
  %2151 = vmatpush.bf16.msra.mxu0 %v2094
  %2152 = vmatpush.bf16.msra.mxu0 %v2093
  %2153 = vmatpush.bf16.msra.mxu0 %v2092
  %2154 = vmatpush.bf16.msra.mxu0 %v2091
  %2155 = vmatpush.bf16.msra.mxu0 %v2090
  %2156 = vmatpush.bf16.msra.mxu0 %v2089
  %2157 = vmatpush.bf16.msra.mxu0 %v2088
  %2158 = vmatpush.bf16.msra.mxu0 %v2087
  %2159 = vmatmul.bf16.gmra.mxu0 %v2127
  %v2160 = vpop.f32.mrf.mxu0
  %v2161 = vadd.f32 0.0, %v2160
  %v2162 = vpop.f32.mrf.mxu0
  %v2163 = vadd.f32 0.0, %v2162
  %2164 = vdwg.mxu0
  %2165 = vmatpush.bf16.msra.mxu0 %v2102
  %2166 = vmatpush.bf16.msra.mxu0 %v2101
  %2167 = vmatpush.bf16.msra.mxu0 %v2100
  %2168 = vmatpush.bf16.msra.mxu0 %v2099
  %2169 = vmatpush.bf16.msra.mxu0 %v2098
  %2170 = vmatpush.bf16.msra.mxu0 %v2097
  %2171 = vmatpush.bf16.msra.mxu0 %v2096
  %2172 = vmatpush.bf16.msra.mxu0 %v2095
  %2173 = vmatmul.bf16.gmra.mxu0 %v2143
  %v2174 = vpop.f32.mrf.mxu0
  %v2175 = vadd.f32 %v2161, %v2174
  %v2176 = vpop.f32.mrf.mxu0
  %v2177 = vadd.f32 %v2163, %v2176
  %2178 = vdwg.mxu0
  %v2179 = vadd.f32 %v1893, %v2175
  %v2180 = vadd.f32 %v1894, %v2177
  %vm2181 = vcmask 64512
  %2182 = vst.msk [vmem:[#allocation4] sm:$0xff] %vm2181, %v2179
  %2183 = vst.msk [vmem:[#allocation4 + $0x8] sm:$0xff] %vm2181, %v2180
  // Predicated region
  $region98: #{multi_relation_gnn_forward.3} parent=0 // pred_check
    %p2184 = pneg %p77
  $region99: #{multi_relation_gnn_forward.3} parent=0 // pred_check_branch
    %2186 = sbr.rel (%p2184) target = $region101
  $region100: #{multi_relation_gnn_forward.3} parent=0 // pred_region
    %v2187 = vld [vmem:[%s10] sm:$0xff]
    %v2188 = vld [vmem:[%s10 + $0x8] sm:$0xff]
    %v2189 = vld [vmem:[%s11] sm:$0xff]
    %v2190 = vld [vmem:[%s11 + $0x8] sm:$0xff]
    %v2191 = vld [vmem:[%s12] sm:$0xff]
    %v2192 = vld [vmem:[%s12 + $0x8] sm:$0xff]
    %v2193 = vld [vmem:[#allocation4] sm:$0xff]
    %v2194 = vld [vmem:[#allocation4 + $0x8] sm:$0xff]
    %v2195 = vld [vmem:[%s13] sm:$0xff]
    %v2196 = vld [vmem:[%s14] sm:$0x1]
    %v2198 = vperm.slane %v2196, 0
    %v2201 = vsel %vm2181, %v2187, 0
    %v2204 = vsel %vm2181, %v2188, 0
    %2206 = vmatpush.msra.mxu0 0.0
    %2207 = vmatpush.msra.mxu0 0.0
    %2208 = vmatpush.msra.mxu0 0.0
    %2209 = vmatpush.msra.mxu0 0.0
    %2210 = vmatpush.msra.mxu0 0.0
    %2211 = vmatpush.msra.mxu0 0.0
    %2212 = vmatpush.msra.mxu0 0.0
    %2213 = vmatpush.msra.mxu0 0.0
    %2214 = vmatpush.msra.mxu0 0.0
    %2215 = vmatpush.msra.mxu0 0.0
    %2216 = vmatpush.msra.mxu0 0.0
    %2217 = vmatpush.msra.mxu0 0.0
    %2218 = vmatpush.msra.mxu0 0.0
    %2219 = vmatpush.msra.mxu0 0.0
    %2220 = vmatpush.msra.mxu0 0.0
    %2221 = vmatpush.msra.mxu0 %v2195
    %2222 = vmatmul.f32.gmra.mxu0 %v2201
    %v2223 = vpop.f32.mrf.mxu0
    %v2224 = vadd.f32 %v2198, %v2223
    %2225 = vmatmul.f32.gmra.mxu0 %v2204
    %v2226 = vpop.f32.mrf.mxu0
    %v2227 = vadd.f32 %v2198, %v2226
    %2228 = vdwg.mxu0
    %vm2229 = vcmp.gt.f32.partialorder %v2224, 0.0
    %vm2230 = vcmp.gt.f32.partialorder %v2227, 0.0
    %v2231 = vmul.f32 %v2224, 0.01
    %v2232 = vmul.f32 %v2227, 0.01
    %v2233 = vsel %vm2229, %v2224, %v2231
    %v2234 = vsel %vm2230, %v2227, %v2232
    %v2235 = vld [vmem:[%s15] sm:$0xff]
    %v2236 = vld [vmem:[%s16] sm:$0x1]
    %v2238 = vperm.slane %v2236, 0
    %v2241 = vsel %vm2181, %v2189, 0
    %v2244 = vsel %vm2181, %v2190, 0
    %2246 = vmatpush.msra.mxu0 0.0
    %2247 = vmatpush.msra.mxu0 0.0
    %2248 = vmatpush.msra.mxu0 0.0
    %2249 = vmatpush.msra.mxu0 0.0
    %2250 = vmatpush.msra.mxu0 0.0
    %2251 = vmatpush.msra.mxu0 0.0
    %2252 = vmatpush.msra.mxu0 0.0
    %2253 = vmatpush.msra.mxu0 0.0
    %2254 = vmatpush.msra.mxu0 0.0
    %2255 = vmatpush.msra.mxu0 0.0
    %2256 = vmatpush.msra.mxu0 0.0
    %2257 = vmatpush.msra.mxu0 0.0
    %2258 = vmatpush.msra.mxu0 0.0
    %2259 = vmatpush.msra.mxu0 0.0
    %2260 = vmatpush.msra.mxu0 0.0
    %2261 = vmatpush.msra.mxu0 %v2235
    %2262 = vmatmul.f32.gmra.mxu0 %v2241
    %v2263 = vpop.f32.mrf.mxu0
    %v2264 = vadd.f32 %v2238, %v2263
    %2265 = vmatmul.f32.gmra.mxu0 %v2244
    %v2266 = vpop.f32.mrf.mxu0
    %v2267 = vadd.f32 %v2238, %v2266
    %2268 = vdwg.mxu0
    %vm2269 = vcmp.gt.f32.partialorder %v2264, 0.0
    %vm2270 = vcmp.gt.f32.partialorder %v2267, 0.0
    %v2271 = vmul.f32 %v2264, 0.01
    %v2272 = vmul.f32 %v2267, 0.01
    %v2273 = vsel %vm2269, %v2264, %v2271
    %v2274 = vsel %vm2270, %v2267, %v2272
    %v2275 = vadd.f32 %v2233, %v2273
    %v2276 = vadd.f32 %v2234, %v2274
    %v2277 = vld [vmem:[%s17] sm:$0xff]
    %v2278 = vld [vmem:[%s18] sm:$0x1]
    %v2280 = vperm.slane %v2278, 0
    %v2283 = vsel %vm2181, %v2191, 0
    %v2286 = vsel %vm2181, %v2192, 0
    %2288 = vmatpush.msra.mxu0 0.0
    %2289 = vmatpush.msra.mxu0 0.0
    %2290 = vmatpush.msra.mxu0 0.0
    %2291 = vmatpush.msra.mxu0 0.0
    %2292 = vmatpush.msra.mxu0 0.0
    %2293 = vmatpush.msra.mxu0 0.0
    %2294 = vmatpush.msra.mxu0 0.0
    %2295 = vmatpush.msra.mxu0 0.0
    %2296 = vmatpush.msra.mxu0 0.0
    %2297 = vmatpush.msra.mxu0 0.0
    %2298 = vmatpush.msra.mxu0 0.0
    %2299 = vmatpush.msra.mxu0 0.0
    %2300 = vmatpush.msra.mxu0 0.0
    %2301 = vmatpush.msra.mxu0 0.0
    %2302 = vmatpush.msra.mxu0 0.0
    %2303 = vmatpush.msra.mxu0 %v2277
    %2304 = vmatmul.f32.gmra.mxu0 %v2283
    %v2305 = vpop.f32.mrf.mxu0
    %v2306 = vadd.f32 %v2280, %v2305
    %2307 = vmatmul.f32.gmra.mxu0 %v2286
    %v2308 = vpop.f32.mrf.mxu0
    %v2309 = vadd.f32 %v2280, %v2308
    %2310 = vdwg.mxu0
    %vm2311 = vcmp.gt.f32.partialorder %v2306, 0.0
    %vm2312 = vcmp.gt.f32.partialorder %v2309, 0.0
    %v2313 = vmul.f32 %v2306, 0.01
    %v2314 = vmul.f32 %v2309, 0.01
    %v2315 = vsel %vm2311, %v2306, %v2313
    %v2316 = vsel %vm2312, %v2309, %v2314
    %v2317 = vadd.f32 %v2275, %v2315
    %v2318 = vadd.f32 %v2276, %v2316
    %v2319 = vld [vmem:[%s19] sm:$0xff]
    %v2320 = vld [vmem:[%s20] sm:$0x1]
    %v2322 = vperm.slane %v2320, 0
    %v2325 = vsel %vm2181, %v2193, 0
    %v2328 = vsel %vm2181, %v2194, 0
    %2330 = vmatpush.msra.mxu0 0.0
    %2331 = vmatpush.msra.mxu0 0.0
    %2332 = vmatpush.msra.mxu0 0.0
    %2333 = vmatpush.msra.mxu0 0.0
    %2334 = vmatpush.msra.mxu0 0.0
    %2335 = vmatpush.msra.mxu0 0.0
    %2336 = vmatpush.msra.mxu0 0.0
    %2337 = vmatpush.msra.mxu0 0.0
    %2338 = vmatpush.msra.mxu0 0.0
    %2339 = vmatpush.msra.mxu0 0.0
    %2340 = vmatpush.msra.mxu0 0.0
    %2341 = vmatpush.msra.mxu0 0.0
    %2342 = vmatpush.msra.mxu0 0.0
    %2343 = vmatpush.msra.mxu0 0.0
    %2344 = vmatpush.msra.mxu0 0.0
    %2345 = vmatpush.msra.mxu0 %v2319
    %2346 = vmatmul.f32.gmra.mxu0 %v2325
    %v2347 = vpop.f32.mrf.mxu0
    %v2348 = vadd.f32 %v2322, %v2347
    %2349 = vmatmul.f32.gmra.mxu0 %v2328
    %v2350 = vpop.f32.mrf.mxu0
    %v2351 = vadd.f32 %v2322, %v2350
    %2352 = vdwg.mxu0
    %vm2353 = vcmp.gt.f32.partialorder %v2348, 0.0
    %vm2354 = vcmp.gt.f32.partialorder %v2351, 0.0
    %v2355 = vmul.f32 %v2348, 0.01
    %v2356 = vmul.f32 %v2351, 0.01
    %v2357 = vsel %vm2353, %v2348, %v2355
    %v2358 = vsel %vm2354, %v2351, %v2356
    %v2359 = vadd.f32 %v2317, %v2357
    %v2360 = vadd.f32 %v2318, %v2358
    %v2361 = vld [vmem:[%s21] sm:$0xff]
    %v2362 = vld [vmem:[%s21 + $0x8] sm:$0xff]
    %2363 = vmatpush.msra.mxu0 0.0
    %2364 = vmatpush.msra.mxu0 0.0
    %2365 = vmatpush.msra.mxu0 0.0
    %2366 = vmatpush.msra.mxu0 0.0
    %2367 = vmatpush.msra.mxu0 0.0
    %2368 = vmatpush.msra.mxu0 0.0
    %2369 = vmatpush.msra.mxu0 0.0
    %2370 = vmatpush.msra.mxu0 0.0
    %2371 = vmatpush.msra.mxu0 0.0
    %2372 = vmatpush.msra.mxu0 0.0
    %2373 = vmatpush.msra.mxu0 0.0
    %2374 = vmatpush.msra.mxu0 0.0
    %2375 = vmatpush.msra.mxu0 0.0
    %2376 = vmatpush.msra.mxu0 0.0
    %2377 = vmatpush.msra.mxu0 0.0
    %2378 = vmatpush.msra.mxu0 %v2362
    %2379 = vmatmul.f32.gmra.mxu0 %v2241
    %v2380 = vpop.f32.mrf.mxu0
    %v2381 = vadd.f32 0.0, %v2380
    %2382 = vmatmul.f32.gmra.mxu0 %v2244
    %v2383 = vpop.f32.mrf.mxu0
    %v2384 = vadd.f32 0.0, %v2383
    %2385 = vdwg.mxu0
    %2386 = vmatpush.msra.mxu0 0.0
    %2387 = vmatpush.msra.mxu0 0.0
    %2388 = vmatpush.msra.mxu0 0.0
    %2389 = vmatpush.msra.mxu0 0.0
    %2390 = vmatpush.msra.mxu0 0.0
    %2391 = vmatpush.msra.mxu0 0.0
    %2392 = vmatpush.msra.mxu0 0.0
    %2393 = vmatpush.msra.mxu0 0.0
    %2394 = vmatpush.msra.mxu0 0.0
    %2395 = vmatpush.msra.mxu0 0.0
    %2396 = vmatpush.msra.mxu0 0.0
    %2397 = vmatpush.msra.mxu0 0.0
    %2398 = vmatpush.msra.mxu0 0.0
    %2399 = vmatpush.msra.mxu0 0.0
    %2400 = vmatpush.msra.mxu0 0.0
    %2401 = vmatpush.msra.mxu0 %v2361
    %2402 = vmatmul.f32.gmra.mxu0 %v2201
    %v2403 = vpop.f32.mrf.mxu0
    %v2404 = vadd.f32 %v2381, %v2403
    %2405 = vmatmul.f32.gmra.mxu0 %v2204
    %v2406 = vpop.f32.mrf.mxu0
    %v2407 = vadd.f32 %v2384, %v2406
    %2408 = vdwg.mxu0
    %v2409 = vld [vmem:[%s21 + $0x10] sm:$0xff]
    %2410 = vmatpush.msra.mxu0 0.0
    %2411 = vmatpush.msra.mxu0 0.0
    %2412 = vmatpush.msra.mxu0 0.0
    %2413 = vmatpush.msra.mxu0 0.0
    %2414 = vmatpush.msra.mxu0 0.0
    %2415 = vmatpush.msra.mxu0 0.0
    %2416 = vmatpush.msra.mxu0 0.0
    %2417 = vmatpush.msra.mxu0 0.0
    %2418 = vmatpush.msra.mxu0 0.0
    %2419 = vmatpush.msra.mxu0 0.0
    %2420 = vmatpush.msra.mxu0 0.0
    %2421 = vmatpush.msra.mxu0 0.0
    %2422 = vmatpush.msra.mxu0 0.0
    %2423 = vmatpush.msra.mxu0 0.0
    %2424 = vmatpush.msra.mxu0 0.0
    %2425 = vmatpush.msra.mxu0 %v2409
    %2426 = vmatmul.f32.gmra.mxu0 %v2283
    %v2427 = vpop.f32.mrf.mxu0
    %v2428 = vadd.f32 0.0, %v2427
    %2429 = vmatmul.f32.gmra.mxu0 %v2286
    %v2430 = vpop.f32.mrf.mxu0
    %v2431 = vadd.f32 0.0, %v2430
    %2432 = vdwg.mxu0
    %v2433 = vadd.f32 %v2404, %v2428
    %v2434 = vadd.f32 %v2407, %v2431
    %v2435 = vld [vmem:[%s21 + $0x18] sm:$0xff]
    %2436 = vmatpush.msra.mxu0 0.0
    %2437 = vmatpush.msra.mxu0 0.0
    %2438 = vmatpush.msra.mxu0 0.0
    %2439 = vmatpush.msra.mxu0 0.0
    %2440 = vmatpush.msra.mxu0 0.0
    %2441 = vmatpush.msra.mxu0 0.0
    %2442 = vmatpush.msra.mxu0 0.0
    %2443 = vmatpush.msra.mxu0 0.0
    %2444 = vmatpush.msra.mxu0 0.0
    %2445 = vmatpush.msra.mxu0 0.0
    %2446 = vmatpush.msra.mxu0 0.0
    %2447 = vmatpush.msra.mxu0 0.0
    %2448 = vmatpush.msra.mxu0 0.0
    %2449 = vmatpush.msra.mxu0 0.0
    %2450 = vmatpush.msra.mxu0 0.0
    %2451 = vmatpush.msra.mxu0 %v2435
    %2452 = vmatmul.f32.gmra.mxu0 %v2325
    %v2453 = vpop.f32.mrf.mxu0
    %v2454 = vadd.f32 0.0, %v2453
    %2455 = vmatmul.f32.gmra.mxu0 %v2328
    %v2456 = vpop.f32.mrf.mxu0
    %v2457 = vadd.f32 0.0, %v2456
    %2458 = vdwg.mxu0
    %v2459 = vadd.f32 %v2433, %v2454
    %v2460 = vadd.f32 %v2434, %v2457
    %v2461 = vld [vmem:[%s22] sm:$0x1]
    %v2463 = vperm.slane %v2461, 0
    %v2465 = vadd.f32 %v2459, %v2463
    %v2466 = vadd.f32 %v2460, %v2463
    %vm2467 = vcmp.gt.f32.partialorder %v2465, 0.0
    %vm2468 = vcmp.gt.f32.partialorder %v2466, 0.0
    %v2469 = vmul.f32 %v2465, 0.01
    %v2470 = vmul.f32 %v2466, 0.01
    %v2471 = vsel %vm2467, %v2465, %v2469
    %v2472 = vsel %vm2468, %v2466, %v2470
    %v2473 = vadd.f32 %v2359, %v2471
    %v2474 = vadd.f32 %v2360, %v2472
    %vm2475 = vcmask 31744
    %2476 = vst.msk [vmem:[%s23] sm:$0xff] %vm2475, %v2473
    %2477 = vst.msk [vmem:[%s23 + $0x8] sm:$0xff] %vm2475, %v2474
  $region101: #{multi_relation_gnn_forward.3} parent=0 // pred_fallthru
    _
  // Predicated region
  $region102: #{multi_relation_gnn_forward.3} parent=0 // pred_check
    _
  $region103: #{multi_relation_gnn_forward.3} parent=0 // pred_check_branch
    %2479 = sbr.rel (0) target = $region105
  $region104: #{multi_relation_gnn_forward.3} parent=0 // pred_region
    _
  $region105: #{multi_relation_gnn_forward.3} parent=0 // pred_fallthru
    _
  // Predicated region
  $region106: #{multi_relation_gnn_forward.3} parent=0 // pred_check
    _
  $region107: #{multi_relation_gnn_forward.3} parent=0 // pred_check_branch
    %2481 = sbr.rel (0) target = $region109
  $region108: #{multi_relation_gnn_forward.3} parent=0 // pred_region
    _
  $region109: #{multi_relation_gnn_forward.3} parent=0 // pred_fallthru
    _

// kernel: multi_relation_gnn_forward.2
$region0: #{multi_relation_gnn_forward.2}
  #allocation0 [shape = 'u32[]', space=smem, size = 0x4, offset = 0x4, fixed_abs, tag = 'smem constant byte address 0x4 - core index']
  #allocation1 [shape = 'u32[72,128]{1,0:T(1,128)}', space=vmem, size = 0x9000, scoped, tag = 'internal scratch']
  #allocation2 [shape = 'bf16[16,48]{1,0:T(8,128)(2,1)}', space=vmem, size = 0x1000, scoped, tag = 'scratch operand']
  #allocation3 [shape = 'bf16[16,48]{1,0:T(8,128)(2,1)}', space=vmem, size = 0x1000, scoped, tag = 'scratch operand']
  #allocation4 [shape = 'bf16[16,8]{1,0:T(8,128)(2,1)}', space=vmem, size = 0x1000, scoped, tag = 'scratch operand']
  #allocation5 [shape = 'bf16[16,1]{1,0:T(8,128)(2,1)}', space=vmem, size = 0x1000, scoped, tag = 'scratch operand']
  #allocation6 [shape = 'f32[16,1]{1,0:T(8,128)}', space=vmem, size = 0x2000, scoped, tag = 'scratch operand']
  #allocation7 [shape = 'f32[16,8]{1,0:T(8,128)}', space=vmem, size = 0x2000, scoped, tag = 'scratch operand']
  #allocation8 [shape = 'f32[1,1]{1,0:T(1,128)}', space=vmem, size = 0x200, scoped, tag = 'scratch operand']
  #allocation9 [shape = 'f32[1,1]{1,0:T(1,128)S(1)}', space=vmem, size = 0x200, scoped, tag = 'scoped memory for multi_relation_gnn_forward.2']
  %s0 = inlined_call_operand.vmem [shape: f32[16,8], index: 0, kind: input, shape index: {}]
  %s1 = inlined_call_operand.vmem [shape: f32[8,8], index: 1, kind: input, shape index: {}]
  %s2 = inlined_call_operand.vmem [shape: f32[1,8], index: 2, kind: input, shape index: {}]
  %s3 = inlined_call_operand.vmem [shape: f32[8,8], index: 3, kind: input, shape index: {}]
  %s4 = inlined_call_operand.vmem [shape: f32[1,8], index: 4, kind: input, shape index: {}]
  %s5 = inlined_call_operand.vmem [shape: f32[1,8], index: 5, kind: input, shape index: {}]
  %s6 = inlined_call_operand.vmem [shape: f32[1,8], index: 6, kind: input, shape index: {}]
  %s7 = inlined_call_operand.vmem [shape: f32[8,48], index: 7, kind: input, shape index: {}]
  %s8 = inlined_call_operand.vmem [shape: f32[8,48], index: 8, kind: input, shape index: {}]
  %s9 = inlined_call_operand.vmem [shape: f32[1,48], index: 9, kind: input, shape index: {}]
  %s10 = inlined_call_operand.vmem [shape: f32[1,12], index: 10, kind: input, shape index: {}]
  %s11 = inlined_call_operand.<no memory space> [shape: f32[1,1], index: 11, kind: input, shape index: {}]
  %s12 = inlined_call_operand.vmem [shape: bf16[256,16], index: 12, kind: input, shape index: {}]
  %s13 = inlined_call_operand.vmem [shape: bf16[256,16], index: 13, kind: input, shape index: {}]
  %s14 = inlined_call_operand.vmem [shape: f32[256,12], index: 14, kind: input, shape index: {}]
  %s15 = inlined_call_operand.vmem [shape: f32[256,3], index: 15, kind: input, shape index: {}]
  %s16 = inlined_call_operand.vmem [shape: f32[16,8], index: 16, kind: output, shape index: {0}]
  %s17 = inlined_call_operand.vmem [shape: f32[16,8], index: 17, kind: output, shape index: {1}]
  %s18 = inlined_call_operand.vmem [shape: f32[16,8], index: 18, kind: output, shape index: {2}]
  %s19 = inlined_call_operand.vmem [shape: f32[16,8], index: 19, kind: output, shape index: {3}]
  %20 = xla_tuple %s16, %s17, %s18, %s19
  %s21 = sld [smem:[#allocation0]]
  $region106: #{multi_relation_gnn_forward.2} parent=0
    _
  %s23 = ssub.s32 1, %s21
  %s24 = scalar_select 0, %s23, %s21
  %v25 = vstv %s11
  %26 = vst [vmem:[#allocation9] sm:$0x1] %v25
  // Predicated region
  $region2: #{multi_relation_gnn_forward.2} parent=0 // pred_check
    _
  $region3: #{multi_relation_gnn_forward.2} parent=0 // pred_check_branch
    %28 = sbr.rel (0) target = $region5
  $region4: #{multi_relation_gnn_forward.2} parent=0 // pred_region
    _
  $region5: #{multi_relation_gnn_forward.2} parent=0 // pred_fallthru
    _
  // Predicated region
  $region6: #{multi_relation_gnn_forward.2} parent=0 // pred_check
    _
  $region7: #{multi_relation_gnn_forward.2} parent=0 // pred_check_branch
    %30 = sbr.rel (0) target = $region9
  $region8: #{multi_relation_gnn_forward.2} parent=0 // pred_region
    _
  $region9: #{multi_relation_gnn_forward.2} parent=0 // pred_fallthru
    _
  // Predicated region
  $region10: #{multi_relation_gnn_forward.2} parent=0 // pred_check
    _
  $region11: #{multi_relation_gnn_forward.2} parent=0 // pred_check_branch
    %32 = sbr.rel (0) target = $region13
  $region12: #{multi_relation_gnn_forward.2} parent=0 // pred_region
    _
  $region13: #{multi_relation_gnn_forward.2} parent=0 // pred_fallthru
    _
  // Predicated region
  $region14: #{multi_relation_gnn_forward.2} parent=0 // pred_check
    _
  $region15: #{multi_relation_gnn_forward.2} parent=0 // pred_check_branch
    %34 = sbr.rel (0) target = $region17
  $region16: #{multi_relation_gnn_forward.2} parent=0 // pred_region
    _
  $region17: #{multi_relation_gnn_forward.2} parent=0 // pred_fallthru
    _
  // Predicated region
  $region18: #{multi_relation_gnn_forward.2} parent=0 // pred_check
    _
  $region19: #{multi_relation_gnn_forward.2} parent=0 // pred_check_branch
    %36 = sbr.rel (0) target = $region21
  $region20: #{multi_relation_gnn_forward.2} parent=0 // pred_region
    _
  $region21: #{multi_relation_gnn_forward.2} parent=0 // pred_fallthru
    _
  // Predicated region
  $region22: #{multi_relation_gnn_forward.2} parent=0 // pred_check
    _
  $region23: #{multi_relation_gnn_forward.2} parent=0 // pred_check_branch
    %38 = sbr.rel (0) target = $region25
  $region24: #{multi_relation_gnn_forward.2} parent=0 // pred_region
    _
  $region25: #{multi_relation_gnn_forward.2} parent=0 // pred_fallthru
    _
  // Predicated region
  $region26: #{multi_relation_gnn_forward.2} parent=0 // pred_check
    _
  $region27: #{multi_relation_gnn_forward.2} parent=0 // pred_check_branch
    %40 = sbr.rel (0) target = $region29
  $region28: #{multi_relation_gnn_forward.2} parent=0 // pred_region
    _
  $region29: #{multi_relation_gnn_forward.2} parent=0 // pred_fallthru
    _
  // Predicated region
  $region30: #{multi_relation_gnn_forward.2} parent=0 // pred_check
    _
  $region31: #{multi_relation_gnn_forward.2} parent=0 // pred_check_branch
    %42 = sbr.rel (0) target = $region33
  $region32: #{multi_relation_gnn_forward.2} parent=0 // pred_region
    _
  $region33: #{multi_relation_gnn_forward.2} parent=0 // pred_fallthru
    _
  // Predicated region
  $region34: #{multi_relation_gnn_forward.2} parent=0 // pred_check
    _
  $region35: #{multi_relation_gnn_forward.2} parent=0 // pred_check_branch
    %44 = sbr.rel (0) target = $region37
  $region36: #{multi_relation_gnn_forward.2} parent=0 // pred_region
    _
  $region37: #{multi_relation_gnn_forward.2} parent=0 // pred_fallthru
    _
  // Predicated region
  $region38: #{multi_relation_gnn_forward.2} parent=0 // pred_check
    _
  $region39: #{multi_relation_gnn_forward.2} parent=0 // pred_check_branch
    %46 = sbr.rel (0) target = $region41
  $region40: #{multi_relation_gnn_forward.2} parent=0 // pred_region
    _
  $region41: #{multi_relation_gnn_forward.2} parent=0 // pred_fallthru
    _
  // Predicated region
  $region42: #{multi_relation_gnn_forward.2} parent=0 // pred_check
    _
  $region43: #{multi_relation_gnn_forward.2} parent=0 // pred_check_branch
    %48 = sbr.rel (0) target = $region45
  $region44: #{multi_relation_gnn_forward.2} parent=0 // pred_region
    _
  $region45: #{multi_relation_gnn_forward.2} parent=0 // pred_fallthru
    _
  // Predicated region
  $region46: #{multi_relation_gnn_forward.2} parent=0 // pred_check
    _
  $region47: #{multi_relation_gnn_forward.2} parent=0 // pred_check_branch
    %50 = sbr.rel (0) target = $region49
  $region48: #{multi_relation_gnn_forward.2} parent=0 // pred_region
    _
  $region49: #{multi_relation_gnn_forward.2} parent=0 // pred_fallthru
    _
  // Predicated region
  $region50: #{multi_relation_gnn_forward.2} parent=0 // pred_check
    _
  $region51: #{multi_relation_gnn_forward.2} parent=0 // pred_check_branch
    %52 = sbr.rel (0) target = $region53
  $region52: #{multi_relation_gnn_forward.2} parent=0 // pred_region
    _
  $region53: #{multi_relation_gnn_forward.2} parent=0 // pred_fallthru
    _
  // Predicated region
  $region54: #{multi_relation_gnn_forward.2} parent=0 // pred_check
    _
  $region55: #{multi_relation_gnn_forward.2} parent=0 // pred_check_branch
    %54 = sbr.rel (0) target = $region57
  $region56: #{multi_relation_gnn_forward.2} parent=0 // pred_region
    _
  $region57: #{multi_relation_gnn_forward.2} parent=0 // pred_fallthru
    _
  // Predicated region
  $region58: #{multi_relation_gnn_forward.2} parent=0 // pred_check
    _
  $region59: #{multi_relation_gnn_forward.2} parent=0 // pred_check_branch
    %56 = sbr.rel (0) target = $region61
  $region60: #{multi_relation_gnn_forward.2} parent=0 // pred_region
    _
  $region61: #{multi_relation_gnn_forward.2} parent=0 // pred_fallthru
    _
  // Predicated region
  $region62: #{multi_relation_gnn_forward.2} parent=0 // pred_check
    _
  $region63: #{multi_relation_gnn_forward.2} parent=0 // pred_check_branch
    %58 = sbr.rel (0) target = $region65
  $region64: #{multi_relation_gnn_forward.2} parent=0 // pred_region
    _
  $region65: #{multi_relation_gnn_forward.2} parent=0 // pred_fallthru
    _
  %p60 = scmp.eq.s32.totalorder 0, 0
  // Predicated region
  $region66: #{multi_relation_gnn_forward.2} parent=0 // pred_check
    %p61 = pneg %p60
  $region67: #{multi_relation_gnn_forward.2} parent=0 // pred_check_branch
    %63 = sbr.rel (%p61) target = $region69
  $region68: #{multi_relation_gnn_forward.2} parent=0 // pred_region
    %v64 = vld [vmem:[%s0] sm:$0xff]
    %v65 = vld [vmem:[%s0 + $0x8] sm:$0xff]
    %v66 = vld [vmem:[%s1] sm:$0xff]
    %v67 = vld [vmem:[%s2] sm:$0x1]
    %v69 = vperm.slane %v67, 0
    %vm71 = vcmask 64512
    %v73 = vsel %vm71, %v64, 0
    %v76 = vsel %vm71, %v65, 0
    %78 = vmatpush.msra.mxu0 0.0
    %79 = vmatpush.msra.mxu0 0.0
    %80 = vmatpush.msra.mxu0 0.0
    %81 = vmatpush.msra.mxu0 0.0
    %82 = vmatpush.msra.mxu0 0.0
    %83 = vmatpush.msra.mxu0 0.0
    %84 = vmatpush.msra.mxu0 0.0
    %85 = vmatpush.msra.mxu0 0.0
    %86 = vmatpush.msra.mxu0 0.0
    %87 = vmatpush.msra.mxu0 0.0
    %88 = vmatpush.msra.mxu0 0.0
    %89 = vmatpush.msra.mxu0 0.0
    %90 = vmatpush.msra.mxu0 0.0
    %91 = vmatpush.msra.mxu0 0.0
    %92 = vmatpush.msra.mxu0 0.0
    %93 = vmatpush.msra.mxu0 %v66
    %94 = vmatmul.f32.gmra.mxu0 %v73
    %v95 = vpop.f32.mrf.mxu0
    %v96 = vadd.f32 %v69, %v95
    %97 = vmatmul.f32.gmra.mxu0 %v76
    %v98 = vpop.f32.mrf.mxu0
    %v99 = vadd.f32 %v69, %v98
    %100 = vdwg.mxu0
    %101 = vst.msk [vmem:[%s16] sm:$0xff] %vm71, %v96
    %102 = vst.msk [vmem:[%s16 + $0x8] sm:$0xff] %vm71, %v99
    %v103 = vld [vmem:[%s7] sm:$0xff]
    %v105 = vsel %vm71, %v96, 0
    %v108 = vsel %vm71, %v99, 0
    %110 = vmatpush.msra.mxu0 0.0
    %111 = vmatpush.msra.mxu0 0.0
    %112 = vmatpush.msra.mxu0 0.0
    %113 = vmatpush.msra.mxu0 0.0
    %114 = vmatpush.msra.mxu0 0.0
    %115 = vmatpush.msra.mxu0 0.0
    %116 = vmatpush.msra.mxu0 0.0
    %117 = vmatpush.msra.mxu0 0.0
    %118 = vmatpush.msra.mxu0 0.0
    %119 = vmatpush.msra.mxu0 0.0
    %120 = vmatpush.msra.mxu0 0.0
    %121 = vmatpush.msra.mxu0 0.0
    %122 = vmatpush.msra.mxu0 0.0
    %123 = vmatpush.msra.mxu0 0.0
    %124 = vmatpush.msra.mxu0 0.0
    %125 = vmatpush.msra.mxu0 %v103
    %126 = vmatmul.f32.gmra.mxu0 %v105
    %v127 = vpop.f32.mrf.mxu0
    %v128 = vadd.f32 0.0, %v127
    %129 = vmatmul.f32.gmra.mxu0 %v108
    %v130 = vpop.f32.mrf.mxu0
    %v131 = vadd.f32 0.0, %v130
    %132 = vdwg.mxu0
    %v133 = vpack.c.bf16 %v128, %v128
    %v134 = vpack.c.bf16 %v131, %v131
    %vm135 = vcmask 388096
    %136 = vst.msk [vmem:[#allocation2] sm:$0xf] %vm135, %v133
    %137 = vst.msk [vmem:[#allocation2 + $0x4] sm:$0xf] %vm135, %v134
    %v138 = vld [vmem:[%s8] sm:$0xff]
    %139 = vmatpush.msra.mxu0 0.0
    %140 = vmatpush.msra.mxu0 0.0
    %141 = vmatpush.msra.mxu0 0.0
    %142 = vmatpush.msra.mxu0 0.0
    %143 = vmatpush.msra.mxu0 0.0
    %144 = vmatpush.msra.mxu0 0.0
    %145 = vmatpush.msra.mxu0 0.0
    %146 = vmatpush.msra.mxu0 0.0
    %147 = vmatpush.msra.mxu0 0.0
    %148 = vmatpush.msra.mxu0 0.0
    %149 = vmatpush.msra.mxu0 0.0
    %150 = vmatpush.msra.mxu0 0.0
    %151 = vmatpush.msra.mxu0 0.0
    %152 = vmatpush.msra.mxu0 0.0
    %153 = vmatpush.msra.mxu0 0.0
    %154 = vmatpush.msra.mxu0 %v138
    %155 = vmatmul.f32.gmra.mxu0 %v105
    %v156 = vpop.f32.mrf.mxu0
    %v157 = vadd.f32 0.0, %v156
    %158 = vmatmul.f32.gmra.mxu0 %v108
    %v159 = vpop.f32.mrf.mxu0
    %v160 = vadd.f32 0.0, %v159
    %161 = vdwg.mxu0
    %v162 = vpack.c.bf16 %v157, %v157
    %v163 = vpack.c.bf16 %v160, %v160
    %164 = vst.msk [vmem:[#allocation3] sm:$0xf] %vm135, %v162
    %165 = vst.msk [vmem:[#allocation3 + $0x4] sm:$0xf] %vm135, %v163
    %v166 = vld [vmem:[%s0] sm:$0xff]
    %v167 = vld [vmem:[%s0 + $0x8] sm:$0xff]
    %v168 = vld [vmem:[%s3] sm:$0xff]
    %v170 = vsel %vm71, %v166, 0
    %v173 = vsel %vm71, %v167, 0
    %175 = vmatpush.msra.mxu0 0.0
    %176 = vmatpush.msra.mxu0 0.0
    %177 = vmatpush.msra.mxu0 0.0
    %178 = vmatpush.msra.mxu0 0.0
    %179 = vmatpush.msra.mxu0 0.0
    %180 = vmatpush.msra.mxu0 0.0
    %181 = vmatpush.msra.mxu0 0.0
    %182 = vmatpush.msra.mxu0 0.0
    %183 = vmatpush.msra.mxu0 0.0
    %184 = vmatpush.msra.mxu0 0.0
    %185 = vmatpush.msra.mxu0 0.0
    %186 = vmatpush.msra.mxu0 0.0
    %187 = vmatpush.msra.mxu0 0.0
    %188 = vmatpush.msra.mxu0 0.0
    %189 = vmatpush.msra.mxu0 0.0
    %190 = vmatpush.msra.mxu0 %v168
    %191 = vmatmul.f32.gmra.mxu0 %v170
    %v192 = vpop.f32.mrf.mxu0
    %v193 = vadd.f32 0.0, %v192
    %194 = vmatmul.f32.gmra.mxu0 %v173
    %v195 = vpop.f32.mrf.mxu0
    %v196 = vadd.f32 0.0, %v195
    %197 = vdwg.mxu0
    %v198 = vpack.c.bf16 %v193, %v193
    %v199 = vpack.c.bf16 %v196, %v196
    %vm200 = vcmask 60416
    %201 = vst.msk [vmem:[#allocation4] sm:$0xf] %vm200, %v198
    %202 = vst.msk [vmem:[#allocation4 + $0x4] sm:$0xf] %vm200, %v199
    %v203 = vld [vmem:[%s5] sm:$0x1]
    %v205 = vperm.slane %v203, 0
    %v207 = vmul.f32 %v193, %v205
    %v208 = vmul.f32 %v196, %v205
    %v209 = vsel %vm71, %v207, 0.0
    %210 = vadd.xlane.f32.xlu0 %v209
    %v211 = vpop.xlane.xlu0 %210
    %v212 = vsel %vm71, %v208, 0.0
    %213 = vadd.xlane.f32.xlu0 %v212
    %v214 = vpop.xlane.xlu0 %213
    %v215 = vpack.c.bf16 %v211, %v211
    %v216 = vpack.c.bf16 %v214, %v214
    %vm217 = vcmask 3072
    %218 = vst.msk [vmem:[#allocation5] sm:$0xf] %vm217, %v215
    %219 = vst.msk [vmem:[#allocation5 + $0x4] sm:$0xf] %vm217, %v216
    %vm220 = vcmask 7168
    %221 = vst.msk [vmem:[#allocation6] sm:$0xff] %vm220, 0.0
    %222 = vst.msk [vmem:[#allocation6 + $0x8] sm:$0xff] %vm220, 0.0
    %223 = vst.msk [vmem:[#allocation7] sm:$0xff] %vm71, 0.0
    %224 = vst.msk [vmem:[#allocation7 + $0x8] sm:$0xff] %vm71, 0.0
    %225 = vst.msk [vmem:[%s18] sm:$0xff] %vm71, 0.0
    %226 = vst.msk [vmem:[%s18 + $0x8] sm:$0xff] %vm71, 0.0
    %227 = vst.msk [vmem:[%s19] sm:$0xff] %vm71, 0.0
    %228 = vst.msk [vmem:[%s19 + $0x8] sm:$0xff] %vm71, 0.0
    %vm229 = vcmask 0
    %230 = vst.msk [vmem:[#allocation8] sm:$0x1] %vm229, -1e+30
  $region69: #{multi_relation_gnn_forward.2} parent=0 // pred_fallthru
    _
  %v231 = vld [vmem:[%s12] sm:$0xf]
  %v232 = vld [vmem:[%s12 + $0x4] sm:$0xf]
  %v233 = vld [vmem:[%s12 + $0x8] sm:$0xf]
  %v234 = vld [vmem:[%s12 + $0xc] sm:$0xf]
  %v235 = vld [vmem:[%s12 + $0x10] sm:$0xf]
  %v236 = vld [vmem:[%s12 + $0x14] sm:$0xf]
  %v237 = vld [vmem:[%s12 + $0x18] sm:$0xf]
  %v238 = vld [vmem:[%s12 + $0x1c] sm:$0xf]
  %v239 = vld [vmem:[%s12 + $0x20] sm:$0xf]
  %v240 = vld [vmem:[%s12 + $0x24] sm:$0xf]
  %v241 = vld [vmem:[%s12 + $0x28] sm:$0xf]
  %v242 = vld [vmem:[%s12 + $0x2c] sm:$0xf]
  %v243 = vld [vmem:[%s12 + $0x30] sm:$0xf]
  %v244 = vld [vmem:[%s12 + $0x34] sm:$0xf]
  %v245 = vld [vmem:[%s12 + $0x38] sm:$0xf]
  %v246 = vld [vmem:[%s12 + $0x3c] sm:$0xf]
  %v247 = vld [vmem:[%s12 + $0x40] sm:$0xf]
  %v248 = vld [vmem:[%s12 + $0x44] sm:$0xf]
  %v249 = vld [vmem:[%s12 + $0x48] sm:$0xf]
  %v250 = vld [vmem:[%s12 + $0x4c] sm:$0xf]
  %v251 = vld [vmem:[%s12 + $0x50] sm:$0xf]
  %v252 = vld [vmem:[%s12 + $0x54] sm:$0xf]
  %v253 = vld [vmem:[%s12 + $0x58] sm:$0xf]
  %v254 = vld [vmem:[%s12 + $0x5c] sm:$0xf]
  %v255 = vld [vmem:[%s12 + $0x60] sm:$0xf]
  %v256 = vld [vmem:[%s12 + $0x64] sm:$0xf]
  %v257 = vld [vmem:[%s12 + $0x68] sm:$0xf]
  %v258 = vld [vmem:[%s12 + $0x6c] sm:$0xf]
  %v259 = vld [vmem:[%s12 + $0x70] sm:$0xf]
  %v260 = vld [vmem:[%s12 + $0x74] sm:$0xf]
  %v261 = vld [vmem:[%s12 + $0x78] sm:$0xf]
  %v262 = vld [vmem:[%s12 + $0x7c] sm:$0xf]
  %v263 = vld [vmem:[%s13] sm:$0xf]
  %v264 = vld [vmem:[%s13 + $0x4] sm:$0xf]
  %v265 = vld [vmem:[%s13 + $0x8] sm:$0xf]
  %v266 = vld [vmem:[%s13 + $0xc] sm:$0xf]
  %v267 = vld [vmem:[%s13 + $0x10] sm:$0xf]
  %v268 = vld [vmem:[%s13 + $0x14] sm:$0xf]
  %v269 = vld [vmem:[%s13 + $0x18] sm:$0xf]
  %v270 = vld [vmem:[%s13 + $0x1c] sm:$0xf]
  %v271 = vld [vmem:[%s13 + $0x20] sm:$0xf]
  %v272 = vld [vmem:[%s13 + $0x24] sm:$0xf]
  %v273 = vld [vmem:[%s13 + $0x28] sm:$0xf]
  %v274 = vld [vmem:[%s13 + $0x2c] sm:$0xf]
  %v275 = vld [vmem:[%s13 + $0x30] sm:$0xf]
  %v276 = vld [vmem:[%s13 + $0x34] sm:$0xf]
  %v277 = vld [vmem:[%s13 + $0x38] sm:$0xf]
  %v278 = vld [vmem:[%s13 + $0x3c] sm:$0xf]
  %v279 = vld [vmem:[%s13 + $0x40] sm:$0xf]
  %v280 = vld [vmem:[%s13 + $0x44] sm:$0xf]
  %v281 = vld [vmem:[%s13 + $0x48] sm:$0xf]
  %v282 = vld [vmem:[%s13 + $0x4c] sm:$0xf]
  %v283 = vld [vmem:[%s13 + $0x50] sm:$0xf]
  %v284 = vld [vmem:[%s13 + $0x54] sm:$0xf]
  %v285 = vld [vmem:[%s13 + $0x58] sm:$0xf]
  %v286 = vld [vmem:[%s13 + $0x5c] sm:$0xf]
  %v287 = vld [vmem:[%s13 + $0x60] sm:$0xf]
  %v288 = vld [vmem:[%s13 + $0x64] sm:$0xf]
  %v289 = vld [vmem:[%s13 + $0x68] sm:$0xf]
  %v290 = vld [vmem:[%s13 + $0x6c] sm:$0xf]
  %v291 = vld [vmem:[%s13 + $0x70] sm:$0xf]
  %v292 = vld [vmem:[%s13 + $0x74] sm:$0xf]
  %v293 = vld [vmem:[%s13 + $0x78] sm:$0xf]
  %v294 = vld [vmem:[%s13 + $0x7c] sm:$0xf]
  %v295 = vld [vmem:[#allocation2] sm:$0xf]
  %v296 = vld [vmem:[#allocation2 + $0x4] sm:$0xf]
  %v297 = vld [vmem:[#allocation3] sm:$0xf]
  %v298 = vld [vmem:[#allocation3 + $0x4] sm:$0xf]
  %v331 = vunpack.c.l.b16 %v263
  %v332 = vunpack.c.l.b16 %v264
  %v333 = vunpack.c.l.b16 %v265
  %v334 = vunpack.c.l.b16 %v266
  %v335 = vunpack.c.l.b16 %v267
  %v336 = vunpack.c.l.b16 %v268
  %v337 = vunpack.c.l.b16 %v269
  %v338 = vunpack.c.l.b16 %v270
  %v339 = vunpack.c.l.b16 %v271
  %v340 = vunpack.c.l.b16 %v272
  %v341 = vunpack.c.l.b16 %v273
  %v342 = vunpack.c.l.b16 %v274
  %v343 = vunpack.c.l.b16 %v275
  %v344 = vunpack.c.l.b16 %v276
  %v345 = vunpack.c.l.b16 %v277
  %v346 = vunpack.c.l.b16 %v278
  %v347 = vunpack.c.l.b16 %v279
  %v348 = vunpack.c.l.b16 %v280
  %v349 = vunpack.c.l.b16 %v281
  %v350 = vunpack.c.l.b16 %v282
  %v351 = vunpack.c.l.b16 %v283
  %v352 = vunpack.c.l.b16 %v284
  %v353 = vunpack.c.l.b16 %v285
  %v354 = vunpack.c.l.b16 %v286
  %v355 = vunpack.c.l.b16 %v287
  %v356 = vunpack.c.l.b16 %v288
  %v357 = vunpack.c.l.b16 %v289
  %v358 = vunpack.c.l.b16 %v290
  %v359 = vunpack.c.l.b16 %v291
  %v360 = vunpack.c.l.b16 %v292
  %v361 = vunpack.c.l.b16 %v293
  %v362 = vunpack.c.l.b16 %v294
  %v363 = vpack.c.b16 %v332, %v331
  %v364 = vpack.c.b16 %v334, %v333
  %v365 = vpack.c.b16 %v336, %v335
  %v366 = vpack.c.b16 %v338, %v337
  %v367 = vpack.c.b16 %v340, %v339
  %v368 = vpack.c.b16 %v342, %v341
  %v369 = vpack.c.b16 %v344, %v343
  %v370 = vpack.c.b16 %v346, %v345
  %v371 = vpack.c.b16 %v348, %v347
  %v372 = vpack.c.b16 %v350, %v349
  %v373 = vpack.c.b16 %v352, %v351
  %v374 = vpack.c.b16 %v354, %v353
  %v375 = vpack.c.b16 %v356, %v355
  %v376 = vpack.c.b16 %v358, %v357
  %v377 = vpack.c.b16 %v360, %v359
  %v378 = vpack.c.b16 %v362, %v361
  %v381 = vunpack.c.l.b16 %v297
  %v382 = vunpack.c.l.b16 %v298
  %v383 = vpack.c.b16 %v382, %v381
  %vm385 = vcmask 130048
  %v387 = vsel %vm385, %v363, 0
  %v390 = vsel %vm385, %v364, 0
  %v393 = vsel %vm385, %v365, 0
  %v396 = vsel %vm385, %v366, 0
  %v399 = vsel %vm385, %v367, 0
  %v402 = vsel %vm385, %v368, 0
  %v405 = vsel %vm385, %v369, 0
  %v408 = vsel %vm385, %v370, 0
  %v411 = vsel %vm385, %v371, 0
  %v414 = vsel %vm385, %v372, 0
  %v417 = vsel %vm385, %v373, 0
  %v420 = vsel %vm385, %v374, 0
  %v423 = vsel %vm385, %v375, 0
  %v426 = vsel %vm385, %v376, 0
  %v429 = vsel %vm385, %v377, 0
  %v432 = vsel %vm385, %v378, 0
  %434 = vmatpush.bf16.msra.mxu0 0
  %435 = vmatpush.bf16.msra.mxu0 0
  %436 = vmatpush.bf16.msra.mxu0 0
  %437 = vmatpush.bf16.msra.mxu0 0
  %438 = vmatpush.bf16.msra.mxu0 0
  %439 = vmatpush.bf16.msra.mxu0 0
  %440 = vmatpush.bf16.msra.mxu0 0
  %441 = vmatpush.bf16.msra.mxu0 %v383
  %442 = vmatmul.bf16.gmra.mxu0 %v387
  %v443 = vpop.f32.mrf.mxu0
  %v444 = vadd.f32 0.0, %v443
  %v445 = vpop.f32.mrf.mxu0
  %v446 = vadd.f32 0.0, %v445
  %447 = vmatmul.bf16.gmra.mxu0 %v390
  %v448 = vpop.f32.mrf.mxu0
  %v449 = vadd.f32 0.0, %v448
  %v450 = vpop.f32.mrf.mxu0
  %v451 = vadd.f32 0.0, %v450
  %452 = vmatmul.bf16.gmra.mxu0 %v393
  %v453 = vpop.f32.mrf.mxu0
  %v454 = vadd.f32 0.0, %v453
  %v455 = vpop.f32.mrf.mxu0
  %v456 = vadd.f32 0.0, %v455
  %457 = vmatmul.bf16.gmra.mxu0 %v396
  %v458 = vpop.f32.mrf.mxu0
  %v459 = vadd.f32 0.0, %v458
  %v460 = vpop.f32.mrf.mxu0
  %v461 = vadd.f32 0.0, %v460
  %462 = vmatmul.bf16.gmra.mxu0 %v399
  %v463 = vpop.f32.mrf.mxu0
  %v464 = vadd.f32 0.0, %v463
  %v465 = vpop.f32.mrf.mxu0
  %v466 = vadd.f32 0.0, %v465
  %467 = vmatmul.bf16.gmra.mxu0 %v402
  %v468 = vpop.f32.mrf.mxu0
  %v469 = vadd.f32 0.0, %v468
  %v470 = vpop.f32.mrf.mxu0
  %v471 = vadd.f32 0.0, %v470
  %472 = vmatmul.bf16.gmra.mxu0 %v405
  %v473 = vpop.f32.mrf.mxu0
  %v474 = vadd.f32 0.0, %v473
  %v475 = vpop.f32.mrf.mxu0
  %v476 = vadd.f32 0.0, %v475
  %477 = vmatmul.bf16.gmra.mxu0 %v408
  %v478 = vpop.f32.mrf.mxu0
  %v479 = vadd.f32 0.0, %v478
  %v480 = vpop.f32.mrf.mxu0
  %v481 = vadd.f32 0.0, %v480
  %482 = vmatmul.bf16.gmra.mxu0 %v411
  %v483 = vpop.f32.mrf.mxu0
  %v484 = vadd.f32 0.0, %v483
  %v485 = vpop.f32.mrf.mxu0
  %v486 = vadd.f32 0.0, %v485
  %487 = vmatmul.bf16.gmra.mxu0 %v414
  %v488 = vpop.f32.mrf.mxu0
  %v489 = vadd.f32 0.0, %v488
  %v490 = vpop.f32.mrf.mxu0
  %v491 = vadd.f32 0.0, %v490
  %492 = vmatmul.bf16.gmra.mxu0 %v417
  %v493 = vpop.f32.mrf.mxu0
  %v494 = vadd.f32 0.0, %v493
  %v495 = vpop.f32.mrf.mxu0
  %v496 = vadd.f32 0.0, %v495
  %497 = vmatmul.bf16.gmra.mxu0 %v420
  %v498 = vpop.f32.mrf.mxu0
  %v499 = vadd.f32 0.0, %v498
  %v500 = vpop.f32.mrf.mxu0
  %v501 = vadd.f32 0.0, %v500
  %502 = vmatmul.bf16.gmra.mxu0 %v423
  %v503 = vpop.f32.mrf.mxu0
  %v504 = vadd.f32 0.0, %v503
  %v505 = vpop.f32.mrf.mxu0
  %v506 = vadd.f32 0.0, %v505
  %507 = vmatmul.bf16.gmra.mxu0 %v426
  %v508 = vpop.f32.mrf.mxu0
  %v509 = vadd.f32 0.0, %v508
  %v510 = vpop.f32.mrf.mxu0
  %v511 = vadd.f32 0.0, %v510
  %512 = vmatmul.bf16.gmra.mxu0 %v429
  %v513 = vpop.f32.mrf.mxu0
  %v514 = vadd.f32 0.0, %v513
  %v515 = vpop.f32.mrf.mxu0
  %v516 = vadd.f32 0.0, %v515
  %517 = vmatmul.bf16.gmra.mxu0 %v432
  %v518 = vpop.f32.mrf.mxu0
  %v519 = vadd.f32 0.0, %v518
  %v520 = vpop.f32.mrf.mxu0
  %v521 = vadd.f32 0.0, %v520
  %522 = vdwg.mxu0
  %v555 = vunpack.c.l.b16 %v231
  %v556 = vunpack.c.l.b16 %v232
  %v557 = vunpack.c.l.b16 %v233
  %v558 = vunpack.c.l.b16 %v234
  %v559 = vunpack.c.l.b16 %v235
  %v560 = vunpack.c.l.b16 %v236
  %v561 = vunpack.c.l.b16 %v237
  %v562 = vunpack.c.l.b16 %v238
  %v563 = vunpack.c.l.b16 %v239
  %v564 = vunpack.c.l.b16 %v240
  %v565 = vunpack.c.l.b16 %v241
  %v566 = vunpack.c.l.b16 %v242
  %v567 = vunpack.c.l.b16 %v243
  %v568 = vunpack.c.l.b16 %v244
  %v569 = vunpack.c.l.b16 %v245
  %v570 = vunpack.c.l.b16 %v246
  %v571 = vunpack.c.l.b16 %v247
  %v572 = vunpack.c.l.b16 %v248
  %v573 = vunpack.c.l.b16 %v249
  %v574 = vunpack.c.l.b16 %v250
  %v575 = vunpack.c.l.b16 %v251
  %v576 = vunpack.c.l.b16 %v252
  %v577 = vunpack.c.l.b16 %v253
  %v578 = vunpack.c.l.b16 %v254
  %v579 = vunpack.c.l.b16 %v255
  %v580 = vunpack.c.l.b16 %v256
  %v581 = vunpack.c.l.b16 %v257
  %v582 = vunpack.c.l.b16 %v258
  %v583 = vunpack.c.l.b16 %v259
  %v584 = vunpack.c.l.b16 %v260
  %v585 = vunpack.c.l.b16 %v261
  %v586 = vunpack.c.l.b16 %v262
  %v587 = vpack.c.b16 %v556, %v555
  %v588 = vpack.c.b16 %v558, %v557
  %v589 = vpack.c.b16 %v560, %v559
  %v590 = vpack.c.b16 %v562, %v561
  %v591 = vpack.c.b16 %v564, %v563
  %v592 = vpack.c.b16 %v566, %v565
  %v593 = vpack.c.b16 %v568, %v567
  %v594 = vpack.c.b16 %v570, %v569
  %v595 = vpack.c.b16 %v572, %v571
  %v596 = vpack.c.b16 %v574, %v573
  %v597 = vpack.c.b16 %v576, %v575
  %v598 = vpack.c.b16 %v578, %v577
  %v599 = vpack.c.b16 %v580, %v579
  %v600 = vpack.c.b16 %v582, %v581
  %v601 = vpack.c.b16 %v584, %v583
  %v602 = vpack.c.b16 %v586, %v585
  %v605 = vunpack.c.l.b16 %v295
  %v606 = vunpack.c.l.b16 %v296
  %v607 = vpack.c.b16 %v606, %v605
  %v610 = vsel %vm385, %v587, 0
  %v613 = vsel %vm385, %v588, 0
  %v616 = vsel %vm385, %v589, 0
  %v619 = vsel %vm385, %v590, 0
  %v622 = vsel %vm385, %v591, 0
  %v625 = vsel %vm385, %v592, 0
  %v628 = vsel %vm385, %v593, 0
  %v631 = vsel %vm385, %v594, 0
  %v634 = vsel %vm385, %v595, 0
  %v637 = vsel %vm385, %v596, 0
  %v640 = vsel %vm385, %v597, 0
  %v643 = vsel %vm385, %v598, 0
  %v646 = vsel %vm385, %v599, 0
  %v649 = vsel %vm385, %v600, 0
  %v652 = vsel %vm385, %v601, 0
  %v655 = vsel %vm385, %v602, 0
  %657 = vmatpush.bf16.msra.mxu0 0
  %658 = vmatpush.bf16.msra.mxu0 0
  %659 = vmatpush.bf16.msra.mxu0 0
  %660 = vmatpush.bf16.msra.mxu0 0
  %661 = vmatpush.bf16.msra.mxu0 0
  %662 = vmatpush.bf16.msra.mxu0 0
  %663 = vmatpush.bf16.msra.mxu0 0
  %664 = vmatpush.bf16.msra.mxu0 %v607
  %665 = vmatmul.bf16.gmra.mxu0 %v610
  %v666 = vpop.f32.mrf.mxu0
  %v667 = vadd.f32 %v444, %v666
  %v668 = vpop.f32.mrf.mxu0
  %v669 = vadd.f32 %v446, %v668
  %670 = vmatmul.bf16.gmra.mxu0 %v613
  %v671 = vpop.f32.mrf.mxu0
  %v672 = vadd.f32 %v449, %v671
  %v673 = vpop.f32.mrf.mxu0
  %v674 = vadd.f32 %v451, %v673
  %675 = vmatmul.bf16.gmra.mxu0 %v616
  %v676 = vpop.f32.mrf.mxu0
  %v677 = vadd.f32 %v454, %v676
  %v678 = vpop.f32.mrf.mxu0
  %v679 = vadd.f32 %v456, %v678
  %680 = vmatmul.bf16.gmra.mxu0 %v619
  %v681 = vpop.f32.mrf.mxu0
  %v682 = vadd.f32 %v459, %v681
  %v683 = vpop.f32.mrf.mxu0
  %v684 = vadd.f32 %v461, %v683
  %685 = vmatmul.bf16.gmra.mxu0 %v622
  %v686 = vpop.f32.mrf.mxu0
  %v687 = vadd.f32 %v464, %v686
  %v688 = vpop.f32.mrf.mxu0
  %v689 = vadd.f32 %v466, %v688
  %690 = vmatmul.bf16.gmra.mxu0 %v625
  %v691 = vpop.f32.mrf.mxu0
  %v692 = vadd.f32 %v469, %v691
  %v693 = vpop.f32.mrf.mxu0
  %v694 = vadd.f32 %v471, %v693
  %695 = vmatmul.bf16.gmra.mxu0 %v628
  %v696 = vpop.f32.mrf.mxu0
  %v697 = vadd.f32 %v474, %v696
  %v698 = vpop.f32.mrf.mxu0
  %v699 = vadd.f32 %v476, %v698
  %700 = vmatmul.bf16.gmra.mxu0 %v631
  %v701 = vpop.f32.mrf.mxu0
  %v702 = vadd.f32 %v479, %v701
  %v703 = vpop.f32.mrf.mxu0
  %v704 = vadd.f32 %v481, %v703
  %705 = vmatmul.bf16.gmra.mxu0 %v634
  %v706 = vpop.f32.mrf.mxu0
  %v707 = vadd.f32 %v484, %v706
  %v708 = vpop.f32.mrf.mxu0
  %v709 = vadd.f32 %v486, %v708
  %710 = vmatmul.bf16.gmra.mxu0 %v637
  %v711 = vpop.f32.mrf.mxu0
  %v712 = vadd.f32 %v489, %v711
  %v713 = vpop.f32.mrf.mxu0
  %v714 = vadd.f32 %v491, %v713
  %715 = vmatmul.bf16.gmra.mxu0 %v640
  %v716 = vpop.f32.mrf.mxu0
  %v717 = vadd.f32 %v494, %v716
  %v718 = vpop.f32.mrf.mxu0
  %v719 = vadd.f32 %v496, %v718
  %720 = vmatmul.bf16.gmra.mxu0 %v643
  %v721 = vpop.f32.mrf.mxu0
  %v722 = vadd.f32 %v499, %v721
  %v723 = vpop.f32.mrf.mxu0
  %v724 = vadd.f32 %v501, %v723
  %725 = vmatmul.bf16.gmra.mxu0 %v646
  %v726 = vpop.f32.mrf.mxu0
  %v727 = vadd.f32 %v504, %v726
  %v728 = vpop.f32.mrf.mxu0
  %v729 = vadd.f32 %v506, %v728
  %730 = vmatmul.bf16.gmra.mxu0 %v649
  %v731 = vpop.f32.mrf.mxu0
  %v732 = vadd.f32 %v509, %v731
  %v733 = vpop.f32.mrf.mxu0
  %v734 = vadd.f32 %v511, %v733
  %735 = vmatmul.bf16.gmra.mxu0 %v652
  %v736 = vpop.f32.mrf.mxu0
  %v737 = vadd.f32 %v514, %v736
  %v738 = vpop.f32.mrf.mxu0
  %v739 = vadd.f32 %v516, %v738
  %740 = vmatmul.bf16.gmra.mxu0 %v655
  %v741 = vpop.f32.mrf.mxu0
  %v742 = vadd.f32 %v519, %v741
  %v743 = vpop.f32.mrf.mxu0
  %v744 = vadd.f32 %v521, %v743
  %745 = vdwg.mxu0
  %v746 = vld [vmem:[%s9] sm:$0x1]
  %v748 = vperm.slane %v746, 0
  %v750 = vadd.f32 %v667, %v748
  %v751 = vadd.f32 %v669, %v748
  %v752 = vadd.f32 %v672, %v748
  %v753 = vadd.f32 %v674, %v748
  %v754 = vadd.f32 %v677, %v748
  %v755 = vadd.f32 %v679, %v748
  %v756 = vadd.f32 %v682, %v748
  %v757 = vadd.f32 %v684, %v748
  %v758 = vadd.f32 %v687, %v748
  %v759 = vadd.f32 %v689, %v748
  %v760 = vadd.f32 %v692, %v748
  %v761 = vadd.f32 %v694, %v748
  %v762 = vadd.f32 %v697, %v748
  %v763 = vadd.f32 %v699, %v748
  %v764 = vadd.f32 %v702, %v748
  %v765 = vadd.f32 %v704, %v748
  %v766 = vadd.f32 %v707, %v748
  %v767 = vadd.f32 %v709, %v748
  %v768 = vadd.f32 %v712, %v748
  %v769 = vadd.f32 %v714, %v748
  %v770 = vadd.f32 %v717, %v748
  %v771 = vadd.f32 %v719, %v748
  %v772 = vadd.f32 %v722, %v748
  %v773 = vadd.f32 %v724, %v748
  %v774 = vadd.f32 %v727, %v748
  %v775 = vadd.f32 %v729, %v748
  %v776 = vadd.f32 %v732, %v748
  %v777 = vadd.f32 %v734, %v748
  %v778 = vadd.f32 %v737, %v748
  %v779 = vadd.f32 %v739, %v748
  %v780 = vadd.f32 %v742, %v748
  %v781 = vadd.f32 %v744, %v748
  %v782 = vld [vmem:[%s14] sm:$0xff]
  %v783 = vld [vmem:[%s14 + $0x8] sm:$0xff]
  %v784 = vld [vmem:[%s14 + $0x10] sm:$0xff]
  %v785 = vld [vmem:[%s14 + $0x18] sm:$0xff]
  %v786 = vld [vmem:[%s14 + $0x20] sm:$0xff]
  %v787 = vld [vmem:[%s14 + $0x28] sm:$0xff]
  %v788 = vld [vmem:[%s14 + $0x30] sm:$0xff]
  %v789 = vld [vmem:[%s14 + $0x38] sm:$0xff]
  %v790 = vld [vmem:[%s14 + $0x40] sm:$0xff]
  %v791 = vld [vmem:[%s14 + $0x48] sm:$0xff]
  %v792 = vld [vmem:[%s14 + $0x50] sm:$0xff]
  %v793 = vld [vmem:[%s14 + $0x58] sm:$0xff]
  %v794 = vld [vmem:[%s14 + $0x60] sm:$0xff]
  %v795 = vld [vmem:[%s14 + $0x68] sm:$0xff]
  %v796 = vld [vmem:[%s14 + $0x70] sm:$0xff]
  %v797 = vld [vmem:[%s14 + $0x78] sm:$0xff]
  %v798 = vld [vmem:[%s14 + $0x80] sm:$0xff]
  %v799 = vld [vmem:[%s14 + $0x88] sm:$0xff]
  %v800 = vld [vmem:[%s14 + $0x90] sm:$0xff]
  %v801 = vld [vmem:[%s14 + $0x98] sm:$0xff]
  %v802 = vld [vmem:[%s14 + $0xa0] sm:$0xff]
  %v803 = vld [vmem:[%s14 + $0xa8] sm:$0xff]
  %v804 = vld [vmem:[%s14 + $0xb0] sm:$0xff]
  %v805 = vld [vmem:[%s14 + $0xb8] sm:$0xff]
  %v806 = vld [vmem:[%s14 + $0xc0] sm:$0xff]
  %v807 = vld [vmem:[%s14 + $0xc8] sm:$0xff]
  %v808 = vld [vmem:[%s14 + $0xd0] sm:$0xff]
  %v809 = vld [vmem:[%s14 + $0xd8] sm:$0xff]
  %v810 = vld [vmem:[%s14 + $0xe0] sm:$0xff]
  %v811 = vld [vmem:[%s14 + $0xe8] sm:$0xff]
  %v812 = vld [vmem:[%s14 + $0xf0] sm:$0xff]
  %v813 = vld [vmem:[%s14 + $0xf8] sm:$0xff]
  %v814 = vld [vmem:[%s10] sm:$0x1]
  %v816 = vperm.slane %v814, 0
  %v818 = vmul.f32 %v782, %v816
  %v819 = vmul.f32 %v783, %v816
  %v820 = vmul.f32 %v784, %v816
  %v821 = vmul.f32 %v785, %v816
  %v822 = vmul.f32 %v786, %v816
  %v823 = vmul.f32 %v787, %v816
  %v824 = vmul.f32 %v788, %v816
  %v825 = vmul.f32 %v789, %v816
  %v826 = vmul.f32 %v790, %v816
  %v827 = vmul.f32 %v791, %v816
  %v828 = vmul.f32 %v792, %v816
  %v829 = vmul.f32 %v793, %v816
  %v830 = vmul.f32 %v794, %v816
  %v831 = vmul.f32 %v795, %v816
  %v832 = vmul.f32 %v796, %v816
  %v833 = vmul.f32 %v797, %v816
  %v834 = vmul.f32 %v798, %v816
  %v835 = vmul.f32 %v799, %v816
  %v836 = vmul.f32 %v800, %v816
  %v837 = vmul.f32 %v801, %v816
  %v838 = vmul.f32 %v802, %v816
  %v839 = vmul.f32 %v803, %v816
  %v840 = vmul.f32 %v804, %v816
  %v841 = vmul.f32 %v805, %v816
  %v842 = vmul.f32 %v806, %v816
  %v843 = vmul.f32 %v807, %v816
  %v844 = vmul.f32 %v808, %v816
  %v845 = vmul.f32 %v809, %v816
  %v846 = vmul.f32 %v810, %v816
  %v847 = vmul.f32 %v811, %v816
  %v848 = vmul.f32 %v812, %v816
  %v849 = vmul.f32 %v813, %v816
  %vm850 = vcmask 97280
  %v851 = vsel %vm850, %v818, 0.0
  %852 = vadd.xlane.f32.xlu0 %v851
  %v853 = vpop.xlane.xlu0 %852
  %v854 = vsel %vm850, %v819, 0.0
  %855 = vadd.xlane.f32.xlu0 %v854
  %v856 = vpop.xlane.xlu0 %855
  %v857 = vsel %vm850, %v820, 0.0
  %858 = vadd.xlane.f32.xlu0 %v857
  %v859 = vpop.xlane.xlu0 %858
  %v860 = vsel %vm850, %v821, 0.0
  %861 = vadd.xlane.f32.xlu0 %v860
  %v862 = vpop.xlane.xlu0 %861
  %v863 = vsel %vm850, %v822, 0.0
  %864 = vadd.xlane.f32.xlu0 %v863
  %v865 = vpop.xlane.xlu0 %864
  %v866 = vsel %vm850, %v823, 0.0
  %867 = vadd.xlane.f32.xlu0 %v866
  %v868 = vpop.xlane.xlu0 %867
  %v869 = vsel %vm850, %v824, 0.0
  %870 = vadd.xlane.f32.xlu0 %v869
  %v871 = vpop.xlane.xlu0 %870
  %v872 = vsel %vm850, %v825, 0.0
  %873 = vadd.xlane.f32.xlu0 %v872
  %v874 = vpop.xlane.xlu0 %873
  %v875 = vsel %vm850, %v826, 0.0
  %876 = vadd.xlane.f32.xlu0 %v875
  %v877 = vpop.xlane.xlu0 %876
  %v878 = vsel %vm850, %v827, 0.0
  %879 = vadd.xlane.f32.xlu0 %v878
  %v880 = vpop.xlane.xlu0 %879
  %v881 = vsel %vm850, %v828, 0.0
  %882 = vadd.xlane.f32.xlu0 %v881
  %v883 = vpop.xlane.xlu0 %882
  %v884 = vsel %vm850, %v829, 0.0
  %885 = vadd.xlane.f32.xlu0 %v884
  %v886 = vpop.xlane.xlu0 %885
  %v887 = vsel %vm850, %v830, 0.0
  %888 = vadd.xlane.f32.xlu0 %v887
  %v889 = vpop.xlane.xlu0 %888
  %v890 = vsel %vm850, %v831, 0.0
  %891 = vadd.xlane.f32.xlu0 %v890
  %v892 = vpop.xlane.xlu0 %891
  %v893 = vsel %vm850, %v832, 0.0
  %894 = vadd.xlane.f32.xlu0 %v893
  %v895 = vpop.xlane.xlu0 %894
  %v896 = vsel %vm850, %v833, 0.0
  %897 = vadd.xlane.f32.xlu0 %v896
  %v898 = vpop.xlane.xlu0 %897
  %v899 = vsel %vm850, %v834, 0.0
  %900 = vadd.xlane.f32.xlu0 %v899
  %v901 = vpop.xlane.xlu0 %900
  %v902 = vsel %vm850, %v835, 0.0
  %903 = vadd.xlane.f32.xlu0 %v902
  %v904 = vpop.xlane.xlu0 %903
  %v905 = vsel %vm850, %v836, 0.0
  %906 = vadd.xlane.f32.xlu0 %v905
  %v907 = vpop.xlane.xlu0 %906
  %v908 = vsel %vm850, %v837, 0.0
  %909 = vadd.xlane.f32.xlu0 %v908
  %v910 = vpop.xlane.xlu0 %909
  %v911 = vsel %vm850, %v838, 0.0
  %912 = vadd.xlane.f32.xlu0 %v911
  %v913 = vpop.xlane.xlu0 %912
  %v914 = vsel %vm850, %v839, 0.0
  %915 = vadd.xlane.f32.xlu0 %v914
  %v916 = vpop.xlane.xlu0 %915
  %v917 = vsel %vm850, %v840, 0.0
  %918 = vadd.xlane.f32.xlu0 %v917
  %v919 = vpop.xlane.xlu0 %918
  %v920 = vsel %vm850, %v841, 0.0
  %921 = vadd.xlane.f32.xlu0 %v920
  %v922 = vpop.xlane.xlu0 %921
  %v923 = vsel %vm850, %v842, 0.0
  %924 = vadd.xlane.f32.xlu0 %v923
  %v925 = vpop.xlane.xlu0 %924
  %v926 = vsel %vm850, %v843, 0.0
  %927 = vadd.xlane.f32.xlu0 %v926
  %v928 = vpop.xlane.xlu0 %927
  %v929 = vsel %vm850, %v844, 0.0
  %930 = vadd.xlane.f32.xlu0 %v929
  %v931 = vpop.xlane.xlu0 %930
  %v932 = vsel %vm850, %v845, 0.0
  %933 = vadd.xlane.f32.xlu0 %v932
  %v934 = vpop.xlane.xlu0 %933
  %v935 = vsel %vm850, %v846, 0.0
  %936 = vadd.xlane.f32.xlu0 %v935
  %v937 = vpop.xlane.xlu0 %936
  %v938 = vsel %vm850, %v847, 0.0
  %939 = vadd.xlane.f32.xlu0 %v938
  %v940 = vpop.xlane.xlu0 %939
  %v941 = vsel %vm850, %v848, 0.0
  %942 = vadd.xlane.f32.xlu0 %v941
  %v943 = vpop.xlane.xlu0 %942
  %v944 = vsel %vm850, %v849, 0.0
  %945 = vadd.xlane.f32.xlu0 %v944
  %v946 = vpop.xlane.xlu0 %945
  %v947 = vld [vmem:[#allocation9] sm:$0x1]
  %v948 = vsub.f32 0.0, %v853
  %v949 = vsub.f32 0.0, %v856
  %v950 = vsub.f32 0.0, %v859
  %v951 = vsub.f32 0.0, %v862
  %v952 = vsub.f32 0.0, %v865
  %v953 = vsub.f32 0.0, %v868
  %v954 = vsub.f32 0.0, %v871
  %v955 = vsub.f32 0.0, %v874
  %v956 = vsub.f32 0.0, %v877
  %v957 = vsub.f32 0.0, %v880
  %v958 = vsub.f32 0.0, %v883
  %v959 = vsub.f32 0.0, %v886
  %v960 = vsub.f32 0.0, %v889
  %v961 = vsub.f32 0.0, %v892
  %v962 = vsub.f32 0.0, %v895
  %v963 = vsub.f32 0.0, %v898
  %v964 = vsub.f32 0.0, %v901
  %v965 = vsub.f32 0.0, %v904
  %v966 = vsub.f32 0.0, %v907
  %v967 = vsub.f32 0.0, %v910
  %v968 = vsub.f32 0.0, %v913
  %v969 = vsub.f32 0.0, %v916
  %v970 = vsub.f32 0.0, %v919
  %v971 = vsub.f32 0.0, %v922
  %v972 = vsub.f32 0.0, %v925
  %v973 = vsub.f32 0.0, %v928
  %v974 = vsub.f32 0.0, %v931
  %v975 = vsub.f32 0.0, %v934
  %v976 = vsub.f32 0.0, %v937
  %v977 = vsub.f32 0.0, %v940
  %v978 = vsub.f32 0.0, %v943
  %v979 = vsub.f32 0.0, %v946
  %v980 = vmul.f32 %v948, 1.442695
  %v981 = vpow.pop %v980
  %v982 = vmul.f32 %v949, 1.442695
  %v983 = vpow.pop %v982
  %v984 = vmul.f32 %v950, 1.442695
  %v985 = vpow.pop %v984
  %v986 = vmul.f32 %v951, 1.442695
  %v987 = vpow.pop %v986
  %v988 = vmul.f32 %v952, 1.442695
  %v989 = vpow.pop %v988
  %v990 = vmul.f32 %v953, 1.442695
  %v991 = vpow.pop %v990
  %v992 = vmul.f32 %v954, 1.442695
  %v993 = vpow.pop %v992
  %v994 = vmul.f32 %v955, 1.442695
  %v995 = vpow.pop %v994
  %v996 = vmul.f32 %v956, 1.442695
  %v997 = vpow.pop %v996
  %v998 = vmul.f32 %v957, 1.442695
  %v999 = vpow.pop %v998
  %v1000 = vmul.f32 %v958, 1.442695
  %v1001 = vpow.pop %v1000
  %v1002 = vmul.f32 %v959, 1.442695
  %v1003 = vpow.pop %v1002
  %v1004 = vmul.f32 %v960, 1.442695
  %v1005 = vpow.pop %v1004
  %v1006 = vmul.f32 %v961, 1.442695
  %v1007 = vpow.pop %v1006
  %v1008 = vmul.f32 %v962, 1.442695
  %v1009 = vpow.pop %v1008
  %v1010 = vmul.f32 %v963, 1.442695
  %v1011 = vpow.pop %v1010
  %v1012 = vmul.f32 %v964, 1.442695
  %v1013 = vpow.pop %v1012
  %v1014 = vmul.f32 %v965, 1.442695
  %v1015 = vpow.pop %v1014
  %v1016 = vmul.f32 %v966, 1.442695
  %v1017 = vpow.pop %v1016
  %v1018 = vmul.f32 %v967, 1.442695
  %v1019 = vpow.pop %v1018
  %v1020 = vmul.f32 %v968, 1.442695
  %v1021 = vpow.pop %v1020
  %v1022 = vmul.f32 %v969, 1.442695
  %v1023 = vpow.pop %v1022
  %v1024 = vmul.f32 %v970, 1.442695
  %v1025 = vpow.pop %v1024
  %v1026 = vmul.f32 %v971, 1.442695
  %v1027 = vpow.pop %v1026
  %v1028 = vmul.f32 %v972, 1.442695
  %v1029 = vpow.pop %v1028
  %v1030 = vmul.f32 %v973, 1.442695
  %v1031 = vpow.pop %v1030
  %v1032 = vmul.f32 %v974, 1.442695
  %v1033 = vpow.pop %v1032
  %v1034 = vmul.f32 %v975, 1.442695
  %v1035 = vpow.pop %v1034
  %v1036 = vmul.f32 %v976, 1.442695
  %v1037 = vpow.pop %v1036
  %v1038 = vmul.f32 %v977, 1.442695
  %v1039 = vpow.pop %v1038
  %v1040 = vmul.f32 %v978, 1.442695
  %v1041 = vpow.pop %v1040
  %v1042 = vmul.f32 %v979, 1.442695
  %v1043 = vpow.pop %v1042
  %v1045 = vperm.slane %v947, 0
  %v1047 = vmul.f32 %v1045, %v981
  %v1048 = vmul.f32 %v1045, %v983
  %v1049 = vmul.f32 %v1045, %v985
  %v1050 = vmul.f32 %v1045, %v987
  %v1051 = vmul.f32 %v1045, %v989
  %v1052 = vmul.f32 %v1045, %v991
  %v1053 = vmul.f32 %v1045, %v993
  %v1054 = vmul.f32 %v1045, %v995
  %v1055 = vmul.f32 %v1045, %v997
  %v1056 = vmul.f32 %v1045, %v999
  %v1057 = vmul.f32 %v1045, %v1001
  %v1058 = vmul.f32 %v1045, %v1003
  %v1059 = vmul.f32 %v1045, %v1005
  %v1060 = vmul.f32 %v1045, %v1007
  %v1061 = vmul.f32 %v1045, %v1009
  %v1062 = vmul.f32 %v1045, %v1011
  %v1063 = vmul.f32 %v1045, %v1013
  %v1064 = vmul.f32 %v1045, %v1015
  %v1065 = vmul.f32 %v1045, %v1017
  %v1066 = vmul.f32 %v1045, %v1019
  %v1067 = vmul.f32 %v1045, %v1021
  %v1068 = vmul.f32 %v1045, %v1023
  %v1069 = vmul.f32 %v1045, %v1025
  %v1070 = vmul.f32 %v1045, %v1027
  %v1071 = vmul.f32 %v1045, %v1029
  %v1072 = vmul.f32 %v1045, %v1031
  %v1073 = vmul.f32 %v1045, %v1033
  %v1074 = vmul.f32 %v1045, %v1035
  %v1075 = vmul.f32 %v1045, %v1037
  %v1076 = vmul.f32 %v1045, %v1039
  %v1077 = vmul.f32 %v1045, %v1041
  %v1078 = vmul.f32 %v1045, %v1043
  %v1079 = vld [vmem:[%s15] sm:$0xff]
  %v1080 = vld [vmem:[%s15 + $0x8] sm:$0xff]
  %v1081 = vld [vmem:[%s15 + $0x10] sm:$0xff]
  %v1082 = vld [vmem:[%s15 + $0x18] sm:$0xff]
  %v1083 = vld [vmem:[%s15 + $0x20] sm:$0xff]
  %v1084 = vld [vmem:[%s15 + $0x28] sm:$0xff]
  %v1085 = vld [vmem:[%s15 + $0x30] sm:$0xff]
  %v1086 = vld [vmem:[%s15 + $0x38] sm:$0xff]
  %v1087 = vld [vmem:[%s15 + $0x40] sm:$0xff]
  %v1088 = vld [vmem:[%s15 + $0x48] sm:$0xff]
  %v1089 = vld [vmem:[%s15 + $0x50] sm:$0xff]
  %v1090 = vld [vmem:[%s15 + $0x58] sm:$0xff]
  %v1091 = vld [vmem:[%s15 + $0x60] sm:$0xff]
  %v1092 = vld [vmem:[%s15 + $0x68] sm:$0xff]
  %v1093 = vld [vmem:[%s15 + $0x70] sm:$0xff]
  %v1094 = vld [vmem:[%s15 + $0x78] sm:$0xff]
  %v1095 = vld [vmem:[%s15 + $0x80] sm:$0xff]
  %v1096 = vld [vmem:[%s15 + $0x88] sm:$0xff]
  %v1097 = vld [vmem:[%s15 + $0x90] sm:$0xff]
  %v1098 = vld [vmem:[%s15 + $0x98] sm:$0xff]
  %v1099 = vld [vmem:[%s15 + $0xa0] sm:$0xff]
  %v1100 = vld [vmem:[%s15 + $0xa8] sm:$0xff]
  %v1101 = vld [vmem:[%s15 + $0xb0] sm:$0xff]
  %v1102 = vld [vmem:[%s15 + $0xb8] sm:$0xff]
  %v1103 = vld [vmem:[%s15 + $0xc0] sm:$0xff]
  %v1104 = vld [vmem:[%s15 + $0xc8] sm:$0xff]
  %v1105 = vld [vmem:[%s15 + $0xd0] sm:$0xff]
  %v1106 = vld [vmem:[%s15 + $0xd8] sm:$0xff]
  %v1107 = vld [vmem:[%s15 + $0xe0] sm:$0xff]
  %v1108 = vld [vmem:[%s15 + $0xe8] sm:$0xff]
  %v1109 = vld [vmem:[%s15 + $0xf0] sm:$0xff]
  %v1110 = vld [vmem:[%s15 + $0xf8] sm:$0xff]
  %1112 = vset.pattern.permute.xlu0 0
  %1113 = vperm.xlu0 %1112, %v1079
  %v1114 = vpop.permute.xlu0 %1113
  %1117 = vset.pattern.permute.xlu0 0
  %1118 = vperm.xlu0 %1117, %v1080
  %v1119 = vpop.permute.xlu0 %1118
  %1122 = vset.pattern.permute.xlu0 0
  %1123 = vperm.xlu0 %1122, %v1081
  %v1124 = vpop.permute.xlu0 %1123
  %1127 = vset.pattern.permute.xlu0 0
  %1128 = vperm.xlu0 %1127, %v1082
  %v1129 = vpop.permute.xlu0 %1128
  %1132 = vset.pattern.permute.xlu0 0
  %1133 = vperm.xlu0 %1132, %v1083
  %v1134 = vpop.permute.xlu0 %1133
  %1137 = vset.pattern.permute.xlu0 0
  %1138 = vperm.xlu0 %1137, %v1084
  %v1139 = vpop.permute.xlu0 %1138
  %1142 = vset.pattern.permute.xlu0 0
  %1143 = vperm.xlu0 %1142, %v1085
  %v1144 = vpop.permute.xlu0 %1143
  %1147 = vset.pattern.permute.xlu0 0
  %1148 = vperm.xlu0 %1147, %v1086
  %v1149 = vpop.permute.xlu0 %1148
  %1152 = vset.pattern.permute.xlu0 0
  %1153 = vperm.xlu0 %1152, %v1087
  %v1154 = vpop.permute.xlu0 %1153
  %1157 = vset.pattern.permute.xlu0 0
  %1158 = vperm.xlu0 %1157, %v1088
  %v1159 = vpop.permute.xlu0 %1158
  %1162 = vset.pattern.permute.xlu0 0
  %1163 = vperm.xlu0 %1162, %v1089
  %v1164 = vpop.permute.xlu0 %1163
  %1167 = vset.pattern.permute.xlu0 0
  %1168 = vperm.xlu0 %1167, %v1090
  %v1169 = vpop.permute.xlu0 %1168
  %1172 = vset.pattern.permute.xlu0 0
  %1173 = vperm.xlu0 %1172, %v1091
  %v1174 = vpop.permute.xlu0 %1173
  %1177 = vset.pattern.permute.xlu0 0
  %1178 = vperm.xlu0 %1177, %v1092
  %v1179 = vpop.permute.xlu0 %1178
  %1182 = vset.pattern.permute.xlu0 0
  %1183 = vperm.xlu0 %1182, %v1093
  %v1184 = vpop.permute.xlu0 %1183
  %1187 = vset.pattern.permute.xlu0 0
  %1188 = vperm.xlu0 %1187, %v1094
  %v1189 = vpop.permute.xlu0 %1188
  %1192 = vset.pattern.permute.xlu0 0
  %1193 = vperm.xlu0 %1192, %v1095
  %v1194 = vpop.permute.xlu0 %1193
  %1197 = vset.pattern.permute.xlu0 0
  %1198 = vperm.xlu0 %1197, %v1096
  %v1199 = vpop.permute.xlu0 %1198
  %1202 = vset.pattern.permute.xlu0 0
  %1203 = vperm.xlu0 %1202, %v1097
  %v1204 = vpop.permute.xlu0 %1203
  %1207 = vset.pattern.permute.xlu0 0
  %1208 = vperm.xlu0 %1207, %v1098
  %v1209 = vpop.permute.xlu0 %1208
  %1212 = vset.pattern.permute.xlu0 0
  %1213 = vperm.xlu0 %1212, %v1099
  %v1214 = vpop.permute.xlu0 %1213
  %1217 = vset.pattern.permute.xlu0 0
  %1218 = vperm.xlu0 %1217, %v1100
  %v1219 = vpop.permute.xlu0 %1218
  %1222 = vset.pattern.permute.xlu0 0
  %1223 = vperm.xlu0 %1222, %v1101
  %v1224 = vpop.permute.xlu0 %1223
  %1227 = vset.pattern.permute.xlu0 0
  %1228 = vperm.xlu0 %1227, %v1102
  %v1229 = vpop.permute.xlu0 %1228
  %1232 = vset.pattern.permute.xlu0 0
  %1233 = vperm.xlu0 %1232, %v1103
  %v1234 = vpop.permute.xlu0 %1233
  %1237 = vset.pattern.permute.xlu0 0
  %1238 = vperm.xlu0 %1237, %v1104
  %v1239 = vpop.permute.xlu0 %1238
  %1242 = vset.pattern.permute.xlu0 0
  %1243 = vperm.xlu0 %1242, %v1105
  %v1244 = vpop.permute.xlu0 %1243
  %1247 = vset.pattern.permute.xlu0 0
  %1248 = vperm.xlu0 %1247, %v1106
  %v1249 = vpop.permute.xlu0 %1248
  %1252 = vset.pattern.permute.xlu0 0
  %1253 = vperm.xlu0 %1252, %v1107
  %v1254 = vpop.permute.xlu0 %1253
  %1257 = vset.pattern.permute.xlu0 0
  %1258 = vperm.xlu0 %1257, %v1108
  %v1259 = vpop.permute.xlu0 %1258
  %1262 = vset.pattern.permute.xlu0 0
  %1263 = vperm.xlu0 %1262, %v1109
  %v1264 = vpop.permute.xlu0 %1263
  %1267 = vset.pattern.permute.xlu0 0
  %1268 = vperm.xlu0 %1267, %v1110
  %v1269 = vpop.permute.xlu0 %1268
  %v1271 = vmul.f32 %v1114, %v750
  %v1272 = vmul.f32 %v1119, %v751
  %v1273 = vmul.f32 %v1124, %v752
  %v1274 = vmul.f32 %v1129, %v753
  %v1275 = vmul.f32 %v1134, %v754
  %v1276 = vmul.f32 %v1139, %v755
  %v1277 = vmul.f32 %v1144, %v756
  %v1278 = vmul.f32 %v1149, %v757
  %v1279 = vmul.f32 %v1154, %v758
  %v1280 = vmul.f32 %v1159, %v759
  %v1281 = vmul.f32 %v1164, %v760
  %v1282 = vmul.f32 %v1169, %v761
  %v1283 = vmul.f32 %v1174, %v762
  %v1284 = vmul.f32 %v1179, %v763
  %v1285 = vmul.f32 %v1184, %v764
  %v1286 = vmul.f32 %v1189, %v765
  %v1287 = vmul.f32 %v1194, %v766
  %v1288 = vmul.f32 %v1199, %v767
  %v1289 = vmul.f32 %v1204, %v768
  %v1290 = vmul.f32 %v1209, %v769
  %v1291 = vmul.f32 %v1214, %v770
  %v1292 = vmul.f32 %v1219, %v771
  %v1293 = vmul.f32 %v1224, %v772
  %v1294 = vmul.f32 %v1229, %v773
  %v1295 = vmul.f32 %v1234, %v774
  %v1296 = vmul.f32 %v1239, %v775
  %v1297 = vmul.f32 %v1244, %v776
  %v1298 = vmul.f32 %v1249, %v777
  %v1299 = vmul.f32 %v1254, %v778
  %v1300 = vmul.f32 %v1259, %v779
  %v1301 = vmul.f32 %v1264, %v780
  %v1302 = vmul.f32 %v1269, %v781
  %v1303 = vadd.f32 %v1271, 0.0
  %v1304 = vadd.f32 %v1272, 0.0
  %v1305 = vadd.f32 %v1273, 0.0
  %v1306 = vadd.f32 %v1274, 0.0
  %v1307 = vadd.f32 %v1275, 0.0
  %v1308 = vadd.f32 %v1276, 0.0
  %v1309 = vadd.f32 %v1277, 0.0
  %v1310 = vadd.f32 %v1278, 0.0
  %v1311 = vadd.f32 %v1279, 0.0
  %v1312 = vadd.f32 %v1280, 0.0
  %v1313 = vadd.f32 %v1281, 0.0
  %v1314 = vadd.f32 %v1282, 0.0
  %v1315 = vadd.f32 %v1283, 0.0
  %v1316 = vadd.f32 %v1284, 0.0
  %v1317 = vadd.f32 %v1285, 0.0
  %v1318 = vadd.f32 %v1286, 0.0
  %v1319 = vadd.f32 %v1287, 0.0
  %v1320 = vadd.f32 %v1288, 0.0
  %v1321 = vadd.f32 %v1289, 0.0
  %v1322 = vadd.f32 %v1290, 0.0
  %v1323 = vadd.f32 %v1291, 0.0
  %v1324 = vadd.f32 %v1292, 0.0
  %v1325 = vadd.f32 %v1293, 0.0
  %v1326 = vadd.f32 %v1294, 0.0
  %v1327 = vadd.f32 %v1295, 0.0
  %v1328 = vadd.f32 %v1296, 0.0
  %v1329 = vadd.f32 %v1297, 0.0
  %v1330 = vadd.f32 %v1298, 0.0
  %v1331 = vadd.f32 %v1299, 0.0
  %v1332 = vadd.f32 %v1300, 0.0
  %v1333 = vadd.f32 %v1301, 0.0
  %v1334 = vadd.f32 %v1302, 0.0
  %1335 = vset.pattern.permute.xlu0 1
  %1336 = vperm.xlu0 %1335, %v1079
  %v1337 = vpop.permute.xlu0 %1336
  %1339 = vset.pattern.permute.xlu0 1
  %1340 = vperm.xlu0 %1339, %v1080
  %v1341 = vpop.permute.xlu0 %1340
  %1343 = vset.pattern.permute.xlu0 1
  %1344 = vperm.xlu0 %1343, %v1081
  %v1345 = vpop.permute.xlu0 %1344
  %1347 = vset.pattern.permute.xlu0 1
  %1348 = vperm.xlu0 %1347, %v1082
  %v1349 = vpop.permute.xlu0 %1348
  %1351 = vset.pattern.permute.xlu0 1
  %1352 = vperm.xlu0 %1351, %v1083
  %v1353 = vpop.permute.xlu0 %1352
  %1355 = vset.pattern.permute.xlu0 1
  %1356 = vperm.xlu0 %1355, %v1084
  %v1357 = vpop.permute.xlu0 %1356
  %1359 = vset.pattern.permute.xlu0 1
  %1360 = vperm.xlu0 %1359, %v1085
  %v1361 = vpop.permute.xlu0 %1360
  %1363 = vset.pattern.permute.xlu0 1
  %1364 = vperm.xlu0 %1363, %v1086
  %v1365 = vpop.permute.xlu0 %1364
  %1367 = vset.pattern.permute.xlu0 1
  %1368 = vperm.xlu0 %1367, %v1087
  %v1369 = vpop.permute.xlu0 %1368
  %1371 = vset.pattern.permute.xlu0 1
  %1372 = vperm.xlu0 %1371, %v1088
  %v1373 = vpop.permute.xlu0 %1372
  %1375 = vset.pattern.permute.xlu0 1
  %1376 = vperm.xlu0 %1375, %v1089
  %v1377 = vpop.permute.xlu0 %1376
  %1379 = vset.pattern.permute.xlu0 1
  %1380 = vperm.xlu0 %1379, %v1090
  %v1381 = vpop.permute.xlu0 %1380
  %1383 = vset.pattern.permute.xlu0 1
  %1384 = vperm.xlu0 %1383, %v1091
  %v1385 = vpop.permute.xlu0 %1384
  %1387 = vset.pattern.permute.xlu0 1
  %1388 = vperm.xlu0 %1387, %v1092
  %v1389 = vpop.permute.xlu0 %1388
  %1391 = vset.pattern.permute.xlu0 1
  %1392 = vperm.xlu0 %1391, %v1093
  %v1393 = vpop.permute.xlu0 %1392
  %1395 = vset.pattern.permute.xlu0 1
  %1396 = vperm.xlu0 %1395, %v1094
  %v1397 = vpop.permute.xlu0 %1396
  %1399 = vset.pattern.permute.xlu0 1
  %1400 = vperm.xlu0 %1399, %v1095
  %v1401 = vpop.permute.xlu0 %1400
  %1403 = vset.pattern.permute.xlu0 1
  %1404 = vperm.xlu0 %1403, %v1096
  %v1405 = vpop.permute.xlu0 %1404
  %1407 = vset.pattern.permute.xlu0 1
  %1408 = vperm.xlu0 %1407, %v1097
  %v1409 = vpop.permute.xlu0 %1408
  %1411 = vset.pattern.permute.xlu0 1
  %1412 = vperm.xlu0 %1411, %v1098
  %v1413 = vpop.permute.xlu0 %1412
  %1415 = vset.pattern.permute.xlu0 1
  %1416 = vperm.xlu0 %1415, %v1099
  %v1417 = vpop.permute.xlu0 %1416
  %1419 = vset.pattern.permute.xlu0 1
  %1420 = vperm.xlu0 %1419, %v1100
  %v1421 = vpop.permute.xlu0 %1420
  %1423 = vset.pattern.permute.xlu0 1
  %1424 = vperm.xlu0 %1423, %v1101
  %v1425 = vpop.permute.xlu0 %1424
  %1427 = vset.pattern.permute.xlu0 1
  %1428 = vperm.xlu0 %1427, %v1102
  %v1429 = vpop.permute.xlu0 %1428
  %1431 = vset.pattern.permute.xlu0 1
  %1432 = vperm.xlu0 %1431, %v1103
  %v1433 = vpop.permute.xlu0 %1432
  %1435 = vset.pattern.permute.xlu0 1
  %1436 = vperm.xlu0 %1435, %v1104
  %v1437 = vpop.permute.xlu0 %1436
  %1439 = vset.pattern.permute.xlu0 1
  %1440 = vperm.xlu0 %1439, %v1105
  %v1441 = vpop.permute.xlu0 %1440
  %1443 = vset.pattern.permute.xlu0 1
  %1444 = vperm.xlu0 %1443, %v1106
  %v1445 = vpop.permute.xlu0 %1444
  %1447 = vset.pattern.permute.xlu0 1
  %1448 = vperm.xlu0 %1447, %v1107
  %v1449 = vpop.permute.xlu0 %1448
  %1451 = vset.pattern.permute.xlu0 1
  %1452 = vperm.xlu0 %1451, %v1108
  %v1453 = vpop.permute.xlu0 %1452
  %1455 = vset.pattern.permute.xlu0 1
  %1456 = vperm.xlu0 %1455, %v1109
  %v1457 = vpop.permute.xlu0 %1456
  %1459 = vset.pattern.permute.xlu0 1
  %1460 = vperm.xlu0 %1459, %v1110
  %v1461 = vpop.permute.xlu0 %1460
  %v1463 = vmul.f32 %v1337, %v750
  %v1464 = vmul.f32 %v1341, %v751
  %v1465 = vmul.f32 %v1345, %v752
  %v1466 = vmul.f32 %v1349, %v753
  %v1467 = vmul.f32 %v1353, %v754
  %v1468 = vmul.f32 %v1357, %v755
  %v1469 = vmul.f32 %v1361, %v756
  %v1470 = vmul.f32 %v1365, %v757
  %v1471 = vmul.f32 %v1369, %v758
  %v1472 = vmul.f32 %v1373, %v759
  %v1473 = vmul.f32 %v1377, %v760
  %v1474 = vmul.f32 %v1381, %v761
  %v1475 = vmul.f32 %v1385, %v762
  %v1476 = vmul.f32 %v1389, %v763
  %v1477 = vmul.f32 %v1393, %v764
  %v1478 = vmul.f32 %v1397, %v765
  %v1479 = vmul.f32 %v1401, %v766
  %v1480 = vmul.f32 %v1405, %v767
  %v1481 = vmul.f32 %v1409, %v768
  %v1482 = vmul.f32 %v1413, %v769
  %v1483 = vmul.f32 %v1417, %v770
  %v1484 = vmul.f32 %v1421, %v771
  %v1485 = vmul.f32 %v1425, %v772
  %v1486 = vmul.f32 %v1429, %v773
  %v1487 = vmul.f32 %v1433, %v774
  %v1488 = vmul.f32 %v1437, %v775
  %v1489 = vmul.f32 %v1441, %v776
  %v1490 = vmul.f32 %v1445, %v777
  %v1491 = vmul.f32 %v1449, %v778
  %v1492 = vmul.f32 %v1453, %v779
  %v1493 = vmul.f32 %v1457, %v780
  %v1494 = vmul.f32 %v1461, %v781
  %1527 = vrot.lane.b32.xlu0 %v1463, 120
  %v1528 = vpop.permute.xlu0 %1527
  %1529 = vrot.lane.b32.xlu0 %v1464, 120
  %v1530 = vpop.permute.xlu0 %1529
  %1531 = vrot.lane.b32.xlu0 %v1465, 120
  %v1532 = vpop.permute.xlu0 %1531
  %1533 = vrot.lane.b32.xlu0 %v1466, 120
  %v1534 = vpop.permute.xlu0 %1533
  %1535 = vrot.lane.b32.xlu0 %v1467, 120
  %v1536 = vpop.permute.xlu0 %1535
  %1537 = vrot.lane.b32.xlu0 %v1468, 120
  %v1538 = vpop.permute.xlu0 %1537
  %1539 = vrot.lane.b32.xlu0 %v1469, 120
  %v1540 = vpop.permute.xlu0 %1539
  %1541 = vrot.lane.b32.xlu0 %v1470, 120
  %v1542 = vpop.permute.xlu0 %1541
  %1543 = vrot.lane.b32.xlu0 %v1471, 120
  %v1544 = vpop.permute.xlu0 %1543
  %1545 = vrot.lane.b32.xlu0 %v1472, 120
  %v1546 = vpop.permute.xlu0 %1545
  %1547 = vrot.lane.b32.xlu0 %v1473, 120
  %v1548 = vpop.permute.xlu0 %1547
  %1549 = vrot.lane.b32.xlu0 %v1474, 120
  %v1550 = vpop.permute.xlu0 %1549
  %1551 = vrot.lane.b32.xlu0 %v1475, 120
  %v1552 = vpop.permute.xlu0 %1551
  %1553 = vrot.lane.b32.xlu0 %v1476, 120
  %v1554 = vpop.permute.xlu0 %1553
  %1555 = vrot.lane.b32.xlu0 %v1477, 120
  %v1556 = vpop.permute.xlu0 %1555
  %1557 = vrot.lane.b32.xlu0 %v1478, 120
  %v1558 = vpop.permute.xlu0 %1557
  %1559 = vrot.lane.b32.xlu0 %v1479, 120
  %v1560 = vpop.permute.xlu0 %1559
  %1561 = vrot.lane.b32.xlu0 %v1480, 120
  %v1562 = vpop.permute.xlu0 %1561
  %1563 = vrot.lane.b32.xlu0 %v1481, 120
  %v1564 = vpop.permute.xlu0 %1563
  %1565 = vrot.lane.b32.xlu0 %v1482, 120
  %v1566 = vpop.permute.xlu0 %1565
  %1567 = vrot.lane.b32.xlu0 %v1483, 120
  %v1568 = vpop.permute.xlu0 %1567
  %1569 = vrot.lane.b32.xlu0 %v1484, 120
  %v1570 = vpop.permute.xlu0 %1569
  %1571 = vrot.lane.b32.xlu0 %v1485, 120
  %v1572 = vpop.permute.xlu0 %1571
  %1573 = vrot.lane.b32.xlu0 %v1486, 120
  %v1574 = vpop.permute.xlu0 %1573
  %1575 = vrot.lane.b32.xlu0 %v1487, 120
  %v1576 = vpop.permute.xlu0 %1575
  %1577 = vrot.lane.b32.xlu0 %v1488, 120
  %v1578 = vpop.permute.xlu0 %1577
  %1579 = vrot.lane.b32.xlu0 %v1489, 120
  %v1580 = vpop.permute.xlu0 %1579
  %1581 = vrot.lane.b32.xlu0 %v1490, 120
  %v1582 = vpop.permute.xlu0 %1581
  %1583 = vrot.lane.b32.xlu0 %v1491, 120
  %v1584 = vpop.permute.xlu0 %1583
  %1585 = vrot.lane.b32.xlu0 %v1492, 120
  %v1586 = vpop.permute.xlu0 %1585
  %1587 = vrot.lane.b32.xlu0 %v1493, 120
  %v1588 = vpop.permute.xlu0 %1587
  %1589 = vrot.lane.b32.xlu0 %v1494, 120
  %v1590 = vpop.permute.xlu0 %1589
  %v1623 = vadd.f32 %v1303, %v1528
  %v1624 = vadd.f32 %v1304, %v1530
  %v1625 = vadd.f32 %v1305, %v1532
  %v1626 = vadd.f32 %v1306, %v1534
  %v1627 = vadd.f32 %v1307, %v1536
  %v1628 = vadd.f32 %v1308, %v1538
  %v1629 = vadd.f32 %v1309, %v1540
  %v1630 = vadd.f32 %v1310, %v1542
  %v1631 = vadd.f32 %v1311, %v1544
  %v1632 = vadd.f32 %v1312, %v1546
  %v1633 = vadd.f32 %v1313, %v1548
  %v1634 = vadd.f32 %v1314, %v1550
  %v1635 = vadd.f32 %v1315, %v1552
  %v1636 = vadd.f32 %v1316, %v1554
  %v1637 = vadd.f32 %v1317, %v1556
  %v1638 = vadd.f32 %v1318, %v1558
  %v1639 = vadd.f32 %v1319, %v1560
  %v1640 = vadd.f32 %v1320, %v1562
  %v1641 = vadd.f32 %v1321, %v1564
  %v1642 = vadd.f32 %v1322, %v1566
  %v1643 = vadd.f32 %v1323, %v1568
  %v1644 = vadd.f32 %v1324, %v1570
  %v1645 = vadd.f32 %v1325, %v1572
  %v1646 = vadd.f32 %v1326, %v1574
  %v1647 = vadd.f32 %v1327, %v1576
  %v1648 = vadd.f32 %v1328, %v1578
  %v1649 = vadd.f32 %v1329, %v1580
  %v1650 = vadd.f32 %v1330, %v1582
  %v1651 = vadd.f32 %v1331, %v1584
  %v1652 = vadd.f32 %v1332, %v1586
  %v1653 = vadd.f32 %v1333, %v1588
  %v1654 = vadd.f32 %v1334, %v1590
  %1655 = vset.pattern.permute.xlu0 2
  %1656 = vperm.xlu0 %1655, %v1079
  %v1657 = vpop.permute.xlu0 %1656
  %1659 = vset.pattern.permute.xlu0 2
  %1660 = vperm.xlu0 %1659, %v1080
  %v1661 = vpop.permute.xlu0 %1660
  %1663 = vset.pattern.permute.xlu0 2
  %1664 = vperm.xlu0 %1663, %v1081
  %v1665 = vpop.permute.xlu0 %1664
  %1667 = vset.pattern.permute.xlu0 2
  %1668 = vperm.xlu0 %1667, %v1082
  %v1669 = vpop.permute.xlu0 %1668
  %1671 = vset.pattern.permute.xlu0 2
  %1672 = vperm.xlu0 %1671, %v1083
  %v1673 = vpop.permute.xlu0 %1672
  %1675 = vset.pattern.permute.xlu0 2
  %1676 = vperm.xlu0 %1675, %v1084
  %v1677 = vpop.permute.xlu0 %1676
  %1679 = vset.pattern.permute.xlu0 2
  %1680 = vperm.xlu0 %1679, %v1085
  %v1681 = vpop.permute.xlu0 %1680
  %1683 = vset.pattern.permute.xlu0 2
  %1684 = vperm.xlu0 %1683, %v1086
  %v1685 = vpop.permute.xlu0 %1684
  %1687 = vset.pattern.permute.xlu0 2
  %1688 = vperm.xlu0 %1687, %v1087
  %v1689 = vpop.permute.xlu0 %1688
  %1691 = vset.pattern.permute.xlu0 2
  %1692 = vperm.xlu0 %1691, %v1088
  %v1693 = vpop.permute.xlu0 %1692
  %1695 = vset.pattern.permute.xlu0 2
  %1696 = vperm.xlu0 %1695, %v1089
  %v1697 = vpop.permute.xlu0 %1696
  %1699 = vset.pattern.permute.xlu0 2
  %1700 = vperm.xlu0 %1699, %v1090
  %v1701 = vpop.permute.xlu0 %1700
  %1703 = vset.pattern.permute.xlu0 2
  %1704 = vperm.xlu0 %1703, %v1091
  %v1705 = vpop.permute.xlu0 %1704
  %1707 = vset.pattern.permute.xlu0 2
  %1708 = vperm.xlu0 %1707, %v1092
  %v1709 = vpop.permute.xlu0 %1708
  %1711 = vset.pattern.permute.xlu0 2
  %1712 = vperm.xlu0 %1711, %v1093
  %v1713 = vpop.permute.xlu0 %1712
  %1715 = vset.pattern.permute.xlu0 2
  %1716 = vperm.xlu0 %1715, %v1094
  %v1717 = vpop.permute.xlu0 %1716
  %1719 = vset.pattern.permute.xlu0 2
  %1720 = vperm.xlu0 %1719, %v1095
  %v1721 = vpop.permute.xlu0 %1720
  %1723 = vset.pattern.permute.xlu0 2
  %1724 = vperm.xlu0 %1723, %v1096
  %v1725 = vpop.permute.xlu0 %1724
  %1727 = vset.pattern.permute.xlu0 2
  %1728 = vperm.xlu0 %1727, %v1097
  %v1729 = vpop.permute.xlu0 %1728
  %1731 = vset.pattern.permute.xlu0 2
  %1732 = vperm.xlu0 %1731, %v1098
  %v1733 = vpop.permute.xlu0 %1732
  %1735 = vset.pattern.permute.xlu0 2
  %1736 = vperm.xlu0 %1735, %v1099
  %v1737 = vpop.permute.xlu0 %1736
  %1739 = vset.pattern.permute.xlu0 2
  %1740 = vperm.xlu0 %1739, %v1100
  %v1741 = vpop.permute.xlu0 %1740
  %1743 = vset.pattern.permute.xlu0 2
  %1744 = vperm.xlu0 %1743, %v1101
  %v1745 = vpop.permute.xlu0 %1744
  %1747 = vset.pattern.permute.xlu0 2
  %1748 = vperm.xlu0 %1747, %v1102
  %v1749 = vpop.permute.xlu0 %1748
  %1751 = vset.pattern.permute.xlu0 2
  %1752 = vperm.xlu0 %1751, %v1103
  %v1753 = vpop.permute.xlu0 %1752
  %1755 = vset.pattern.permute.xlu0 2
  %1756 = vperm.xlu0 %1755, %v1104
  %v1757 = vpop.permute.xlu0 %1756
  %1759 = vset.pattern.permute.xlu0 2
  %1760 = vperm.xlu0 %1759, %v1105
  %v1761 = vpop.permute.xlu0 %1760
  %1763 = vset.pattern.permute.xlu0 2
  %1764 = vperm.xlu0 %1763, %v1106
  %v1765 = vpop.permute.xlu0 %1764
  %1767 = vset.pattern.permute.xlu0 2
  %1768 = vperm.xlu0 %1767, %v1107
  %v1769 = vpop.permute.xlu0 %1768
  %1771 = vset.pattern.permute.xlu0 2
  %1772 = vperm.xlu0 %1771, %v1108
  %v1773 = vpop.permute.xlu0 %1772
  %1775 = vset.pattern.permute.xlu0 2
  %1776 = vperm.xlu0 %1775, %v1109
  %v1777 = vpop.permute.xlu0 %1776
  %1779 = vset.pattern.permute.xlu0 2
  %1780 = vperm.xlu0 %1779, %v1110
  %v1781 = vpop.permute.xlu0 %1780
  %v1783 = vmul.f32 %v1657, %v750
  %v1784 = vmul.f32 %v1661, %v751
  %v1785 = vmul.f32 %v1665, %v752
  %v1786 = vmul.f32 %v1669, %v753
  %v1787 = vmul.f32 %v1673, %v754
  %v1788 = vmul.f32 %v1677, %v755
  %v1789 = vmul.f32 %v1681, %v756
  %v1790 = vmul.f32 %v1685, %v757
  %v1791 = vmul.f32 %v1689, %v758
  %v1792 = vmul.f32 %v1693, %v759
  %v1793 = vmul.f32 %v1697, %v760
  %v1794 = vmul.f32 %v1701, %v761
  %v1795 = vmul.f32 %v1705, %v762
  %v1796 = vmul.f32 %v1709, %v763
  %v1797 = vmul.f32 %v1713, %v764
  %v1798 = vmul.f32 %v1717, %v765
  %v1799 = vmul.f32 %v1721, %v766
  %v1800 = vmul.f32 %v1725, %v767
  %v1801 = vmul.f32 %v1729, %v768
  %v1802 = vmul.f32 %v1733, %v769
  %v1803 = vmul.f32 %v1737, %v770
  %v1804 = vmul.f32 %v1741, %v771
  %v1805 = vmul.f32 %v1745, %v772
  %v1806 = vmul.f32 %v1749, %v773
  %v1807 = vmul.f32 %v1753, %v774
  %v1808 = vmul.f32 %v1757, %v775
  %v1809 = vmul.f32 %v1761, %v776
  %v1810 = vmul.f32 %v1765, %v777
  %v1811 = vmul.f32 %v1769, %v778
  %v1812 = vmul.f32 %v1773, %v779
  %v1813 = vmul.f32 %v1777, %v780
  %v1814 = vmul.f32 %v1781, %v781
  %1847 = vrot.lane.b32.xlu0 %v1783, 112
  %v1848 = vpop.permute.xlu0 %1847
  %1849 = vrot.lane.b32.xlu0 %v1784, 112
  %v1850 = vpop.permute.xlu0 %1849
  %1851 = vrot.lane.b32.xlu0 %v1785, 112
  %v1852 = vpop.permute.xlu0 %1851
  %1853 = vrot.lane.b32.xlu0 %v1786, 112
  %v1854 = vpop.permute.xlu0 %1853
  %1855 = vrot.lane.b32.xlu0 %v1787, 112
  %v1856 = vpop.permute.xlu0 %1855
  %1857 = vrot.lane.b32.xlu0 %v1788, 112
  %v1858 = vpop.permute.xlu0 %1857
  %1859 = vrot.lane.b32.xlu0 %v1789, 112
  %v1860 = vpop.permute.xlu0 %1859
  %1861 = vrot.lane.b32.xlu0 %v1790, 112
  %v1862 = vpop.permute.xlu0 %1861
  %1863 = vrot.lane.b32.xlu0 %v1791, 112
  %v1864 = vpop.permute.xlu0 %1863
  %1865 = vrot.lane.b32.xlu0 %v1792, 112
  %v1866 = vpop.permute.xlu0 %1865
  %1867 = vrot.lane.b32.xlu0 %v1793, 112
  %v1868 = vpop.permute.xlu0 %1867
  %1869 = vrot.lane.b32.xlu0 %v1794, 112
  %v1870 = vpop.permute.xlu0 %1869
  %1871 = vrot.lane.b32.xlu0 %v1795, 112
  %v1872 = vpop.permute.xlu0 %1871
  %1873 = vrot.lane.b32.xlu0 %v1796, 112
  %v1874 = vpop.permute.xlu0 %1873
  %1875 = vrot.lane.b32.xlu0 %v1797, 112
  %v1876 = vpop.permute.xlu0 %1875
  %1877 = vrot.lane.b32.xlu0 %v1798, 112
  %v1878 = vpop.permute.xlu0 %1877
  %1879 = vrot.lane.b32.xlu0 %v1799, 112
  %v1880 = vpop.permute.xlu0 %1879
  %1881 = vrot.lane.b32.xlu0 %v1800, 112
  %v1882 = vpop.permute.xlu0 %1881
  %1883 = vrot.lane.b32.xlu0 %v1801, 112
  %v1884 = vpop.permute.xlu0 %1883
  %1885 = vrot.lane.b32.xlu0 %v1802, 112
  %v1886 = vpop.permute.xlu0 %1885
  %1887 = vrot.lane.b32.xlu0 %v1803, 112
  %v1888 = vpop.permute.xlu0 %1887
  %1889 = vrot.lane.b32.xlu0 %v1804, 112
  %v1890 = vpop.permute.xlu0 %1889
  %1891 = vrot.lane.b32.xlu0 %v1805, 112
  %v1892 = vpop.permute.xlu0 %1891
  %1893 = vrot.lane.b32.xlu0 %v1806, 112
  %v1894 = vpop.permute.xlu0 %1893
  %1895 = vrot.lane.b32.xlu0 %v1807, 112
  %v1896 = vpop.permute.xlu0 %1895
  %1897 = vrot.lane.b32.xlu0 %v1808, 112
  %v1898 = vpop.permute.xlu0 %1897
  %1899 = vrot.lane.b32.xlu0 %v1809, 112
  %v1900 = vpop.permute.xlu0 %1899
  %1901 = vrot.lane.b32.xlu0 %v1810, 112
  %v1902 = vpop.permute.xlu0 %1901
  %1903 = vrot.lane.b32.xlu0 %v1811, 112
  %v1904 = vpop.permute.xlu0 %1903
  %1905 = vrot.lane.b32.xlu0 %v1812, 112
  %v1906 = vpop.permute.xlu0 %1905
  %1907 = vrot.lane.b32.xlu0 %v1813, 112
  %v1908 = vpop.permute.xlu0 %1907
  %1909 = vrot.lane.b32.xlu0 %v1814, 112
  %v1910 = vpop.permute.xlu0 %1909
  %v1943 = vadd.f32 %v1623, %v1848
  %v1944 = vadd.f32 %v1624, %v1850
  %v1945 = vadd.f32 %v1625, %v1852
  %v1946 = vadd.f32 %v1626, %v1854
  %v1947 = vadd.f32 %v1627, %v1856
  %v1948 = vadd.f32 %v1628, %v1858
  %v1949 = vadd.f32 %v1629, %v1860
  %v1950 = vadd.f32 %v1630, %v1862
  %v1951 = vadd.f32 %v1631, %v1864
  %v1952 = vadd.f32 %v1632, %v1866
  %v1953 = vadd.f32 %v1633, %v1868
  %v1954 = vadd.f32 %v1634, %v1870
  %v1955 = vadd.f32 %v1635, %v1872
  %v1956 = vadd.f32 %v1636, %v1874
  %v1957 = vadd.f32 %v1637, %v1876
  %v1958 = vadd.f32 %v1638, %v1878
  %v1959 = vadd.f32 %v1639, %v1880
  %v1960 = vadd.f32 %v1640, %v1882
  %v1961 = vadd.f32 %v1641, %v1884
  %v1962 = vadd.f32 %v1642, %v1886
  %v1963 = vadd.f32 %v1643, %v1888
  %v1964 = vadd.f32 %v1644, %v1890
  %v1965 = vadd.f32 %v1645, %v1892
  %v1966 = vadd.f32 %v1646, %v1894
  %v1967 = vadd.f32 %v1647, %v1896
  %v1968 = vadd.f32 %v1648, %v1898
  %v1969 = vadd.f32 %v1649, %v1900
  %v1970 = vadd.f32 %v1650, %v1902
  %v1971 = vadd.f32 %v1651, %v1904
  %v1972 = vadd.f32 %v1652, %v1906
  %v1973 = vadd.f32 %v1653, %v1908
  %v1974 = vadd.f32 %v1654, %v1910
  %v1975 = vld [vmem:[%s18] sm:$0xff]
  %v1976 = vld [vmem:[%s18 + $0x8] sm:$0xff]
  %1978 = vset.pattern.permute.xlu0 0
  %1979 = vperm.xlu0 %1978, %v1047
  %v1980 = vpop.permute.xlu0 %1979
  %1983 = vset.pattern.permute.xlu0 0
  %1984 = vperm.xlu0 %1983, %v1048
  %v1985 = vpop.permute.xlu0 %1984
  %1988 = vset.pattern.permute.xlu0 0
  %1989 = vperm.xlu0 %1988, %v1049
  %v1990 = vpop.permute.xlu0 %1989
  %1993 = vset.pattern.permute.xlu0 0
  %1994 = vperm.xlu0 %1993, %v1050
  %v1995 = vpop.permute.xlu0 %1994
  %1998 = vset.pattern.permute.xlu0 0
  %1999 = vperm.xlu0 %1998, %v1051
  %v2000 = vpop.permute.xlu0 %1999
  %2003 = vset.pattern.permute.xlu0 0
  %2004 = vperm.xlu0 %2003, %v1052
  %v2005 = vpop.permute.xlu0 %2004
  %2008 = vset.pattern.permute.xlu0 0
  %2009 = vperm.xlu0 %2008, %v1053
  %v2010 = vpop.permute.xlu0 %2009
  %2013 = vset.pattern.permute.xlu0 0
  %2014 = vperm.xlu0 %2013, %v1054
  %v2015 = vpop.permute.xlu0 %2014
  %2018 = vset.pattern.permute.xlu0 0
  %2019 = vperm.xlu0 %2018, %v1055
  %v2020 = vpop.permute.xlu0 %2019
  %2023 = vset.pattern.permute.xlu0 0
  %2024 = vperm.xlu0 %2023, %v1056
  %v2025 = vpop.permute.xlu0 %2024
  %2028 = vset.pattern.permute.xlu0 0
  %2029 = vperm.xlu0 %2028, %v1057
  %v2030 = vpop.permute.xlu0 %2029
  %2033 = vset.pattern.permute.xlu0 0
  %2034 = vperm.xlu0 %2033, %v1058
  %v2035 = vpop.permute.xlu0 %2034
  %2038 = vset.pattern.permute.xlu0 0
  %2039 = vperm.xlu0 %2038, %v1059
  %v2040 = vpop.permute.xlu0 %2039
  %2043 = vset.pattern.permute.xlu0 0
  %2044 = vperm.xlu0 %2043, %v1060
  %v2045 = vpop.permute.xlu0 %2044
  %2048 = vset.pattern.permute.xlu0 0
  %2049 = vperm.xlu0 %2048, %v1061
  %v2050 = vpop.permute.xlu0 %2049
  %2053 = vset.pattern.permute.xlu0 0
  %2054 = vperm.xlu0 %2053, %v1062
  %v2055 = vpop.permute.xlu0 %2054
  %2058 = vset.pattern.permute.xlu0 0
  %2059 = vperm.xlu0 %2058, %v1063
  %v2060 = vpop.permute.xlu0 %2059
  %2063 = vset.pattern.permute.xlu0 0
  %2064 = vperm.xlu0 %2063, %v1064
  %v2065 = vpop.permute.xlu0 %2064
  %2068 = vset.pattern.permute.xlu0 0
  %2069 = vperm.xlu0 %2068, %v1065
  %v2070 = vpop.permute.xlu0 %2069
  %2073 = vset.pattern.permute.xlu0 0
  %2074 = vperm.xlu0 %2073, %v1066
  %v2075 = vpop.permute.xlu0 %2074
  %2078 = vset.pattern.permute.xlu0 0
  %2079 = vperm.xlu0 %2078, %v1067
  %v2080 = vpop.permute.xlu0 %2079
  %2083 = vset.pattern.permute.xlu0 0
  %2084 = vperm.xlu0 %2083, %v1068
  %v2085 = vpop.permute.xlu0 %2084
  %2088 = vset.pattern.permute.xlu0 0
  %2089 = vperm.xlu0 %2088, %v1069
  %v2090 = vpop.permute.xlu0 %2089
  %2093 = vset.pattern.permute.xlu0 0
  %2094 = vperm.xlu0 %2093, %v1070
  %v2095 = vpop.permute.xlu0 %2094
  %2098 = vset.pattern.permute.xlu0 0
  %2099 = vperm.xlu0 %2098, %v1071
  %v2100 = vpop.permute.xlu0 %2099
  %2103 = vset.pattern.permute.xlu0 0
  %2104 = vperm.xlu0 %2103, %v1072
  %v2105 = vpop.permute.xlu0 %2104
  %2108 = vset.pattern.permute.xlu0 0
  %2109 = vperm.xlu0 %2108, %v1073
  %v2110 = vpop.permute.xlu0 %2109
  %2113 = vset.pattern.permute.xlu0 0
  %2114 = vperm.xlu0 %2113, %v1074
  %v2115 = vpop.permute.xlu0 %2114
  %2118 = vset.pattern.permute.xlu0 0
  %2119 = vperm.xlu0 %2118, %v1075
  %v2120 = vpop.permute.xlu0 %2119
  %2123 = vset.pattern.permute.xlu0 0
  %2124 = vperm.xlu0 %2123, %v1076
  %v2125 = vpop.permute.xlu0 %2124
  %2128 = vset.pattern.permute.xlu0 0
  %2129 = vperm.xlu0 %2128, %v1077
  %v2130 = vpop.permute.xlu0 %2129
  %2133 = vset.pattern.permute.xlu0 0
  %2134 = vperm.xlu0 %2133, %v1078
  %v2135 = vpop.permute.xlu0 %2134
  %v2137 = vmul.f32 %v1980, %v1943
  %v2138 = vmul.f32 %v1985, %v1944
  %v2139 = vmul.f32 %v1990, %v1945
  %v2140 = vmul.f32 %v1995, %v1946
  %v2141 = vmul.f32 %v2000, %v1947
  %v2142 = vmul.f32 %v2005, %v1948
  %v2143 = vmul.f32 %v2010, %v1949
  %v2144 = vmul.f32 %v2015, %v1950
  %v2145 = vmul.f32 %v2020, %v1951
  %v2146 = vmul.f32 %v2025, %v1952
  %v2147 = vmul.f32 %v2030, %v1953
  %v2148 = vmul.f32 %v2035, %v1954
  %v2149 = vmul.f32 %v2040, %v1955
  %v2150 = vmul.f32 %v2045, %v1956
  %v2151 = vmul.f32 %v2050, %v1957
  %v2152 = vmul.f32 %v2055, %v1958
  %v2153 = vmul.f32 %v2060, %v1959
  %v2154 = vmul.f32 %v2065, %v1960
  %v2155 = vmul.f32 %v2070, %v1961
  %v2156 = vmul.f32 %v2075, %v1962
  %v2157 = vmul.f32 %v2080, %v1963
  %v2158 = vmul.f32 %v2085, %v1964
  %v2159 = vmul.f32 %v2090, %v1965
  %v2160 = vmul.f32 %v2095, %v1966
  %v2161 = vmul.f32 %v2100, %v1967
  %v2162 = vmul.f32 %v2105, %v1968
  %v2163 = vmul.f32 %v2110, %v1969
  %v2164 = vmul.f32 %v2115, %v1970
  %v2165 = vmul.f32 %v2120, %v1971
  %v2166 = vmul.f32 %v2125, %v1972
  %v2167 = vmul.f32 %v2130, %v1973
  %v2168 = vmul.f32 %v2135, %v1974
  %v2169 = vpack.c.bf16 %v2138, %v2137
  %v2170 = vpack.c.bf16 %v2140, %v2139
  %v2171 = vpack.c.bf16 %v2142, %v2141
  %v2172 = vpack.c.bf16 %v2144, %v2143
  %v2173 = vpack.c.bf16 %v2146, %v2145
  %v2174 = vpack.c.bf16 %v2148, %v2147
  %v2175 = vpack.c.bf16 %v2150, %v2149
  %v2176 = vpack.c.bf16 %v2152, %v2151
  %v2177 = vpack.c.bf16 %v2154, %v2153
  %v2178 = vpack.c.bf16 %v2156, %v2155
  %v2179 = vpack.c.bf16 %v2158, %v2157
  %v2180 = vpack.c.bf16 %v2160, %v2159
  %v2181 = vpack.c.bf16 %v2162, %v2161
  %v2182 = vpack.c.bf16 %v2164, %v2163
  %v2183 = vpack.c.bf16 %v2166, %v2165
  %v2184 = vpack.c.bf16 %v2168, %v2167
  %2201 = vxpose.xlu0.c.b16.start [1/8] %v363, 128
  %2202 = vxpose.xlu0.c.b16.cont [2/8] %v364, 128
  %2203 = vxpose.xlu0.c.b16.cont [3/8] %v365, 128
  %2204 = vxpose.xlu0.c.b16.cont [4/8] %v366, 128
  %2205 = vxpose.xlu0.c.b16.cont [5/8] %v367, 128
  %2206 = vxpose.xlu0.c.b16.cont [6/8] %v368, 128
  %2207 = vxpose.xlu0.c.b16.cont [7/8] %v369, 128
  %2208 = vxpose.xlu0.c.b16.end [8/8] %v370, 128
  %v2209 = vpop.trf.xlu0
  %v2210 = vpop.trf.xlu0
  %v2211 = vpop.trf.xlu0
  %v2212 = vpop.trf.xlu0
  %v2213 = vpop.trf.xlu0
  %v2214 = vpop.trf.xlu0
  %v2215 = vpop.trf.xlu0
  %v2216 = vpop.trf.xlu0
  %2217 = vxpose.xlu0.c.b16.start [1/8] %v371, 128
  %2218 = vxpose.xlu0.c.b16.cont [2/8] %v372, 128
  %2219 = vxpose.xlu0.c.b16.cont [3/8] %v373, 128
  %2220 = vxpose.xlu0.c.b16.cont [4/8] %v374, 128
  %2221 = vxpose.xlu0.c.b16.cont [5/8] %v375, 128
  %2222 = vxpose.xlu0.c.b16.cont [6/8] %v376, 128
  %2223 = vxpose.xlu0.c.b16.cont [7/8] %v377, 128
  %2224 = vxpose.xlu0.c.b16.end [8/8] %v378, 128
  %v2225 = vpop.trf.xlu0
  %v2226 = vpop.trf.xlu0
  %v2227 = vpop.trf.xlu0
  %v2228 = vpop.trf.xlu0
  %v2229 = vpop.trf.xlu0
  %v2230 = vpop.trf.xlu0
  %v2231 = vpop.trf.xlu0
  %v2232 = vpop.trf.xlu0
  %2233 = vmatpush.bf16.msra.mxu0 %v2176
  %2234 = vmatpush.bf16.msra.mxu0 %v2175
  %2235 = vmatpush.bf16.msra.mxu0 %v2174
  %2236 = vmatpush.bf16.msra.mxu0 %v2173
  %2237 = vmatpush.bf16.msra.mxu0 %v2172
  %2238 = vmatpush.bf16.msra.mxu0 %v2171
  %2239 = vmatpush.bf16.msra.mxu0 %v2170
  %2240 = vmatpush.bf16.msra.mxu0 %v2169
  %2241 = vmatmul.bf16.gmra.mxu0 %v2209
  %v2242 = vpop.f32.mrf.mxu0
  %v2243 = vadd.f32 0.0, %v2242
  %v2244 = vpop.f32.mrf.mxu0
  %v2245 = vadd.f32 0.0, %v2244
  %2246 = vdwg.mxu0
  %2247 = vmatpush.bf16.msra.mxu0 %v2184
  %2248 = vmatpush.bf16.msra.mxu0 %v2183
  %2249 = vmatpush.bf16.msra.mxu0 %v2182
  %2250 = vmatpush.bf16.msra.mxu0 %v2181
  %2251 = vmatpush.bf16.msra.mxu0 %v2180
  %2252 = vmatpush.bf16.msra.mxu0 %v2179
  %2253 = vmatpush.bf16.msra.mxu0 %v2178
  %2254 = vmatpush.bf16.msra.mxu0 %v2177
  %2255 = vmatmul.bf16.gmra.mxu0 %v2225
  %v2256 = vpop.f32.mrf.mxu0
  %v2257 = vadd.f32 %v2243, %v2256
  %v2258 = vpop.f32.mrf.mxu0
  %v2259 = vadd.f32 %v2245, %v2258
  %2260 = vdwg.mxu0
  %v2261 = vadd.f32 %v1975, %v2257
  %v2262 = vadd.f32 %v1976, %v2259
  %vm2263 = vcmask 64512
  %2264 = vst.msk [vmem:[%s18] sm:$0xff] %vm2263, %v2261
  %2265 = vst.msk [vmem:[%s18 + $0x8] sm:$0xff] %vm2263, %v2262
  %v2266 = vld [vmem:[%s19] sm:$0xff]
  %v2267 = vld [vmem:[%s19 + $0x8] sm:$0xff]
  %2284 = vrot.lane.b32.xlu0 %v2169, 104
  %v2285 = vpop.permute.xlu0 %2284
  %2286 = vrot.lane.b32.xlu0 %v2170, 104
  %v2287 = vpop.permute.xlu0 %2286
  %2288 = vrot.lane.b32.xlu0 %v2171, 104
  %v2289 = vpop.permute.xlu0 %2288
  %2290 = vrot.lane.b32.xlu0 %v2172, 104
  %v2291 = vpop.permute.xlu0 %2290
  %2292 = vrot.lane.b32.xlu0 %v2173, 104
  %v2293 = vpop.permute.xlu0 %2292
  %2294 = vrot.lane.b32.xlu0 %v2174, 104
  %v2295 = vpop.permute.xlu0 %2294
  %2296 = vrot.lane.b32.xlu0 %v2175, 104
  %v2297 = vpop.permute.xlu0 %2296
  %2298 = vrot.lane.b32.xlu0 %v2176, 104
  %v2299 = vpop.permute.xlu0 %2298
  %2300 = vrot.lane.b32.xlu0 %v2177, 104
  %v2301 = vpop.permute.xlu0 %2300
  %2302 = vrot.lane.b32.xlu0 %v2178, 104
  %v2303 = vpop.permute.xlu0 %2302
  %2304 = vrot.lane.b32.xlu0 %v2179, 104
  %v2305 = vpop.permute.xlu0 %2304
  %2306 = vrot.lane.b32.xlu0 %v2180, 104
  %v2307 = vpop.permute.xlu0 %2306
  %2308 = vrot.lane.b32.xlu0 %v2181, 104
  %v2309 = vpop.permute.xlu0 %2308
  %2310 = vrot.lane.b32.xlu0 %v2182, 104
  %v2311 = vpop.permute.xlu0 %2310
  %2312 = vrot.lane.b32.xlu0 %v2183, 104
  %v2313 = vpop.permute.xlu0 %2312
  %2314 = vrot.lane.b32.xlu0 %v2184, 104
  %v2315 = vpop.permute.xlu0 %2314
  %2332 = vmatpush.bf16.msra.mxu0 %v2299
  %2333 = vmatpush.bf16.msra.mxu0 %v2297
  %2334 = vmatpush.bf16.msra.mxu0 %v2295
  %2335 = vmatpush.bf16.msra.mxu0 %v2293
  %2336 = vmatpush.bf16.msra.mxu0 %v2291
  %2337 = vmatpush.bf16.msra.mxu0 %v2289
  %2338 = vmatpush.bf16.msra.mxu0 %v2287
  %2339 = vmatpush.bf16.msra.mxu0 %v2285
  %2340 = vmatmul.bf16.gmra.mxu0 %v2209
  %v2341 = vpop.f32.mrf.mxu0
  %v2342 = vadd.f32 0.0, %v2341
  %v2343 = vpop.f32.mrf.mxu0
  %v2344 = vadd.f32 0.0, %v2343
  %2345 = vdwg.mxu0
  %2346 = vmatpush.bf16.msra.mxu0 %v2315
  %2347 = vmatpush.bf16.msra.mxu0 %v2313
  %2348 = vmatpush.bf16.msra.mxu0 %v2311
  %2349 = vmatpush.bf16.msra.mxu0 %v2309
  %2350 = vmatpush.bf16.msra.mxu0 %v2307
  %2351 = vmatpush.bf16.msra.mxu0 %v2305
  %2352 = vmatpush.bf16.msra.mxu0 %v2303
  %2353 = vmatpush.bf16.msra.mxu0 %v2301
  %2354 = vmatmul.bf16.gmra.mxu0 %v2225
  %v2355 = vpop.f32.mrf.mxu0
  %v2356 = vadd.f32 %v2342, %v2355
  %v2357 = vpop.f32.mrf.mxu0
  %v2358 = vadd.f32 %v2344, %v2357
  %2359 = vdwg.mxu0
  %v2360 = vadd.f32 %v2266, %v2356
  %v2361 = vadd.f32 %v2267, %v2358
  %2362 = vst.msk [vmem:[%s19] sm:$0xff] %vm2263, %v2360
  %2363 = vst.msk [vmem:[%s19 + $0x8] sm:$0xff] %vm2263, %v2361
  %v2364 = vld [vmem:[#allocation4] sm:$0xf]
  %v2365 = vld [vmem:[#allocation4 + $0x4] sm:$0xf]
  %v2368 = vunpack.c.l.b16 %v2364
  %v2369 = vunpack.c.l.b16 %v2365
  %v2370 = vpack.c.b16 %v2369, %v2368
  %2372 = vmatpush.bf16.msra.mxu0 0
  %2373 = vmatpush.bf16.msra.mxu0 0
  %2374 = vmatpush.bf16.msra.mxu0 0
  %2375 = vmatpush.bf16.msra.mxu0 0
  %2376 = vmatpush.bf16.msra.mxu0 0
  %2377 = vmatpush.bf16.msra.mxu0 0
  %2378 = vmatpush.bf16.msra.mxu0 0
  %2379 = vmatpush.bf16.msra.mxu0 %v2370
  %2380 = vmatmul.bf16.gmra.mxu0 %v610
  %v2381 = vpop.f32.mrf.mxu0
  %v2382 = vadd.f32 0.0, %v2381
  %v2383 = vpop.f32.mrf.mxu0
  %v2384 = vadd.f32 0.0, %v2383
  %2385 = vmatmul.bf16.gmra.mxu0 %v613
  %v2386 = vpop.f32.mrf.mxu0
  %v2387 = vadd.f32 0.0, %v2386
  %v2388 = vpop.f32.mrf.mxu0
  %v2389 = vadd.f32 0.0, %v2388
  %2390 = vmatmul.bf16.gmra.mxu0 %v616
  %v2391 = vpop.f32.mrf.mxu0
  %v2392 = vadd.f32 0.0, %v2391
  %v2393 = vpop.f32.mrf.mxu0
  %v2394 = vadd.f32 0.0, %v2393
  %2395 = vmatmul.bf16.gmra.mxu0 %v619
  %v2396 = vpop.f32.mrf.mxu0
  %v2397 = vadd.f32 0.0, %v2396
  %v2398 = vpop.f32.mrf.mxu0
  %v2399 = vadd.f32 0.0, %v2398
  %2400 = vmatmul.bf16.gmra.mxu0 %v622
  %v2401 = vpop.f32.mrf.mxu0
  %v2402 = vadd.f32 0.0, %v2401
  %v2403 = vpop.f32.mrf.mxu0
  %v2404 = vadd.f32 0.0, %v2403
  %2405 = vmatmul.bf16.gmra.mxu0 %v625
  %v2406 = vpop.f32.mrf.mxu0
  %v2407 = vadd.f32 0.0, %v2406
  %v2408 = vpop.f32.mrf.mxu0
  %v2409 = vadd.f32 0.0, %v2408
  %2410 = vmatmul.bf16.gmra.mxu0 %v628
  %v2411 = vpop.f32.mrf.mxu0
  %v2412 = vadd.f32 0.0, %v2411
  %v2413 = vpop.f32.mrf.mxu0
  %v2414 = vadd.f32 0.0, %v2413
  %2415 = vmatmul.bf16.gmra.mxu0 %v631
  %v2416 = vpop.f32.mrf.mxu0
  %v2417 = vadd.f32 0.0, %v2416
  %v2418 = vpop.f32.mrf.mxu0
  %v2419 = vadd.f32 0.0, %v2418
  %2420 = vmatmul.bf16.gmra.mxu0 %v634
  %v2421 = vpop.f32.mrf.mxu0
  %v2422 = vadd.f32 0.0, %v2421
  %v2423 = vpop.f32.mrf.mxu0
  %v2424 = vadd.f32 0.0, %v2423
  %2425 = vmatmul.bf16.gmra.mxu0 %v637
  %v2426 = vpop.f32.mrf.mxu0
  %v2427 = vadd.f32 0.0, %v2426
  %v2428 = vpop.f32.mrf.mxu0
  %v2429 = vadd.f32 0.0, %v2428
  %2430 = vmatmul.bf16.gmra.mxu0 %v640
  %v2431 = vpop.f32.mrf.mxu0
  %v2432 = vadd.f32 0.0, %v2431
  %v2433 = vpop.f32.mrf.mxu0
  %v2434 = vadd.f32 0.0, %v2433
  %2435 = vmatmul.bf16.gmra.mxu0 %v643
  %v2436 = vpop.f32.mrf.mxu0
  %v2437 = vadd.f32 0.0, %v2436
  %v2438 = vpop.f32.mrf.mxu0
  %v2439 = vadd.f32 0.0, %v2438
  %2440 = vmatmul.bf16.gmra.mxu0 %v646
  %v2441 = vpop.f32.mrf.mxu0
  %v2442 = vadd.f32 0.0, %v2441
  %v2443 = vpop.f32.mrf.mxu0
  %v2444 = vadd.f32 0.0, %v2443
  %2445 = vmatmul.bf16.gmra.mxu0 %v649
  %v2446 = vpop.f32.mrf.mxu0
  %v2447 = vadd.f32 0.0, %v2446
  %v2448 = vpop.f32.mrf.mxu0
  %v2449 = vadd.f32 0.0, %v2448
  %2450 = vmatmul.bf16.gmra.mxu0 %v652
  %v2451 = vpop.f32.mrf.mxu0
  %v2452 = vadd.f32 0.0, %v2451
  %v2453 = vpop.f32.mrf.mxu0
  %v2454 = vadd.f32 0.0, %v2453
  %2455 = vmatmul.bf16.gmra.mxu0 %v655
  %v2456 = vpop.f32.mrf.mxu0
  %v2457 = vadd.f32 0.0, %v2456
  %v2458 = vpop.f32.mrf.mxu0
  %v2459 = vadd.f32 0.0, %v2458
  %2460 = vdwg.mxu0
  %v2461 = vld [vmem:[%s4] sm:$0x1]
  %v2463 = vperm.slane %v2461, 0
  %v2465 = vmul.f32 %v2382, %v2463
  %v2466 = vmul.f32 %v2384, %v2463
  %v2467 = vmul.f32 %v2387, %v2463
  %v2468 = vmul.f32 %v2389, %v2463
  %v2469 = vmul.f32 %v2392, %v2463
  %v2470 = vmul.f32 %v2394, %v2463
  %v2471 = vmul.f32 %v2397, %v2463
  %v2472 = vmul.f32 %v2399, %v2463
  %v2473 = vmul.f32 %v2402, %v2463
  %v2474 = vmul.f32 %v2404, %v2463
  %v2475 = vmul.f32 %v2407, %v2463
  %v2476 = vmul.f32 %v2409, %v2463
  %v2477 = vmul.f32 %v2412, %v2463
  %v2478 = vmul.f32 %v2414, %v2463
  %v2479 = vmul.f32 %v2417, %v2463
  %v2480 = vmul.f32 %v2419, %v2463
  %v2481 = vmul.f32 %v2422, %v2463
  %v2482 = vmul.f32 %v2424, %v2463
  %v2483 = vmul.f32 %v2427, %v2463
  %v2484 = vmul.f32 %v2429, %v2463
  %v2485 = vmul.f32 %v2432, %v2463
  %v2486 = vmul.f32 %v2434, %v2463
  %v2487 = vmul.f32 %v2437, %v2463
  %v2488 = vmul.f32 %v2439, %v2463
  %v2489 = vmul.f32 %v2442, %v2463
  %v2490 = vmul.f32 %v2444, %v2463
  %v2491 = vmul.f32 %v2447, %v2463
  %v2492 = vmul.f32 %v2449, %v2463
  %v2493 = vmul.f32 %v2452, %v2463
  %v2494 = vmul.f32 %v2454, %v2463
  %v2495 = vmul.f32 %v2457, %v2463
  %v2496 = vmul.f32 %v2459, %v2463
  %v2497 = vsel %vm2263, %v2465, 0.0
  %2498 = vadd.xlane.f32.xlu0 %v2497
  %v2499 = vpop.xlane.xlu0 %2498
  %v2500 = vsel %vm2263, %v2466, 0.0
  %2501 = vadd.xlane.f32.xlu0 %v2500
  %v2502 = vpop.xlane.xlu0 %2501
  %v2503 = vsel %vm2263, %v2467, 0.0
  %2504 = vadd.xlane.f32.xlu0 %v2503
  %v2505 = vpop.xlane.xlu0 %2504
  %v2506 = vsel %vm2263, %v2468, 0.0
  %2507 = vadd.xlane.f32.xlu0 %v2506
  %v2508 = vpop.xlane.xlu0 %2507
  %v2509 = vsel %vm2263, %v2469, 0.0
  %2510 = vadd.xlane.f32.xlu0 %v2509
  %v2511 = vpop.xlane.xlu0 %2510
  %v2512 = vsel %vm2263, %v2470, 0.0
  %2513 = vadd.xlane.f32.xlu0 %v2512
  %v2514 = vpop.xlane.xlu0 %2513
  %v2515 = vsel %vm2263, %v2471, 0.0
  %2516 = vadd.xlane.f32.xlu0 %v2515
  %v2517 = vpop.xlane.xlu0 %2516
  %v2518 = vsel %vm2263, %v2472, 0.0
  %2519 = vadd.xlane.f32.xlu0 %v2518
  %v2520 = vpop.xlane.xlu0 %2519
  %v2521 = vsel %vm2263, %v2473, 0.0
  %2522 = vadd.xlane.f32.xlu0 %v2521
  %v2523 = vpop.xlane.xlu0 %2522
  %v2524 = vsel %vm2263, %v2474, 0.0
  %2525 = vadd.xlane.f32.xlu0 %v2524
  %v2526 = vpop.xlane.xlu0 %2525
  %v2527 = vsel %vm2263, %v2475, 0.0
  %2528 = vadd.xlane.f32.xlu0 %v2527
  %v2529 = vpop.xlane.xlu0 %2528
  %v2530 = vsel %vm2263, %v2476, 0.0
  %2531 = vadd.xlane.f32.xlu0 %v2530
  %v2532 = vpop.xlane.xlu0 %2531
  %v2533 = vsel %vm2263, %v2477, 0.0
  %2534 = vadd.xlane.f32.xlu0 %v2533
  %v2535 = vpop.xlane.xlu0 %2534
  %v2536 = vsel %vm2263, %v2478, 0.0
  %2537 = vadd.xlane.f32.xlu0 %v2536
  %v2538 = vpop.xlane.xlu0 %2537
  %v2539 = vsel %vm2263, %v2479, 0.0
  %2540 = vadd.xlane.f32.xlu0 %v2539
  %v2541 = vpop.xlane.xlu0 %2540
  %v2542 = vsel %vm2263, %v2480, 0.0
  %2543 = vadd.xlane.f32.xlu0 %v2542
  %v2544 = vpop.xlane.xlu0 %2543
  %v2545 = vsel %vm2263, %v2481, 0.0
  %2546 = vadd.xlane.f32.xlu0 %v2545
  %v2547 = vpop.xlane.xlu0 %2546
  %v2548 = vsel %vm2263, %v2482, 0.0
  %2549 = vadd.xlane.f32.xlu0 %v2548
  %v2550 = vpop.xlane.xlu0 %2549
  %v2551 = vsel %vm2263, %v2483, 0.0
  %2552 = vadd.xlane.f32.xlu0 %v2551
  %v2553 = vpop.xlane.xlu0 %2552
  %v2554 = vsel %vm2263, %v2484, 0.0
  %2555 = vadd.xlane.f32.xlu0 %v2554
  %v2556 = vpop.xlane.xlu0 %2555
  %v2557 = vsel %vm2263, %v2485, 0.0
  %2558 = vadd.xlane.f32.xlu0 %v2557
  %v2559 = vpop.xlane.xlu0 %2558
  %v2560 = vsel %vm2263, %v2486, 0.0
  %2561 = vadd.xlane.f32.xlu0 %v2560
  %v2562 = vpop.xlane.xlu0 %2561
  %v2563 = vsel %vm2263, %v2487, 0.0
  %2564 = vadd.xlane.f32.xlu0 %v2563
  %v2565 = vpop.xlane.xlu0 %2564
  %v2566 = vsel %vm2263, %v2488, 0.0
  %2567 = vadd.xlane.f32.xlu0 %v2566
  %v2568 = vpop.xlane.xlu0 %2567
  %v2569 = vsel %vm2263, %v2489, 0.0
  %2570 = vadd.xlane.f32.xlu0 %v2569
  %v2571 = vpop.xlane.xlu0 %2570
  %v2572 = vsel %vm2263, %v2490, 0.0
  %2573 = vadd.xlane.f32.xlu0 %v2572
  %v2574 = vpop.xlane.xlu0 %2573
  %v2575 = vsel %vm2263, %v2491, 0.0
  %2576 = vadd.xlane.f32.xlu0 %v2575
  %v2577 = vpop.xlane.xlu0 %2576
  %v2578 = vsel %vm2263, %v2492, 0.0
  %2579 = vadd.xlane.f32.xlu0 %v2578
  %v2580 = vpop.xlane.xlu0 %2579
  %v2581 = vsel %vm2263, %v2493, 0.0
  %2582 = vadd.xlane.f32.xlu0 %v2581
  %v2583 = vpop.xlane.xlu0 %2582
  %v2584 = vsel %vm2263, %v2494, 0.0
  %2585 = vadd.xlane.f32.xlu0 %v2584
  %v2586 = vpop.xlane.xlu0 %2585
  %v2587 = vsel %vm2263, %v2495, 0.0
  %2588 = vadd.xlane.f32.xlu0 %v2587
  %v2589 = vpop.xlane.xlu0 %2588
  %v2590 = vsel %vm2263, %v2496, 0.0
  %2591 = vadd.xlane.f32.xlu0 %v2590
  %v2592 = vpop.xlane.xlu0 %2591
  %v2593 = vld [vmem:[#allocation5] sm:$0xf]
  %v2594 = vld [vmem:[#allocation5 + $0x4] sm:$0xf]
  %v2597 = vunpack.c.l.b16 %v2593
  %v2598 = vunpack.c.l.b16 %v2594
  %v2599 = vpack.c.b16 %v2598, %v2597
  %2601 = vmatpush.bf16.msra.mxu0 0
  %2602 = vmatpush.bf16.msra.mxu0 0
  %2603 = vmatpush.bf16.msra.mxu0 0
  %2604 = vmatpush.bf16.msra.mxu0 0
  %2605 = vmatpush.bf16.msra.mxu0 0
  %2606 = vmatpush.bf16.msra.mxu0 0
  %2607 = vmatpush.bf16.msra.mxu0 0
  %2608 = vmatpush.bf16.msra.mxu0 %v2599
  %2609 = vmatmul.bf16.gmra.mxu0 %v387
  %v2610 = vpop.f32.mrf.mxu0
  %v2611 = vadd.f32 0.0, %v2610
  %v2612 = vpop.f32.mrf.mxu0
  %v2613 = vadd.f32 0.0, %v2612
  %2614 = vmatmul.bf16.gmra.mxu0 %v390
  %v2615 = vpop.f32.mrf.mxu0
  %v2616 = vadd.f32 0.0, %v2615
  %v2617 = vpop.f32.mrf.mxu0
  %v2618 = vadd.f32 0.0, %v2617
  %2619 = vmatmul.bf16.gmra.mxu0 %v393
  %v2620 = vpop.f32.mrf.mxu0
  %v2621 = vadd.f32 0.0, %v2620
  %v2622 = vpop.f32.mrf.mxu0
  %v2623 = vadd.f32 0.0, %v2622
  %2624 = vmatmul.bf16.gmra.mxu0 %v396
  %v2625 = vpop.f32.mrf.mxu0
  %v2626 = vadd.f32 0.0, %v2625
  %v2627 = vpop.f32.mrf.mxu0
  %v2628 = vadd.f32 0.0, %v2627
  %2629 = vmatmul.bf16.gmra.mxu0 %v399
  %v2630 = vpop.f32.mrf.mxu0
  %v2631 = vadd.f32 0.0, %v2630
  %v2632 = vpop.f32.mrf.mxu0
  %v2633 = vadd.f32 0.0, %v2632
  %2634 = vmatmul.bf16.gmra.mxu0 %v402
  %v2635 = vpop.f32.mrf.mxu0
  %v2636 = vadd.f32 0.0, %v2635
  %v2637 = vpop.f32.mrf.mxu0
  %v2638 = vadd.f32 0.0, %v2637
  %2639 = vmatmul.bf16.gmra.mxu0 %v405
  %v2640 = vpop.f32.mrf.mxu0
  %v2641 = vadd.f32 0.0, %v2640
  %v2642 = vpop.f32.mrf.mxu0
  %v2643 = vadd.f32 0.0, %v2642
  %2644 = vmatmul.bf16.gmra.mxu0 %v408
  %v2645 = vpop.f32.mrf.mxu0
  %v2646 = vadd.f32 0.0, %v2645
  %v2647 = vpop.f32.mrf.mxu0
  %v2648 = vadd.f32 0.0, %v2647
  %2649 = vmatmul.bf16.gmra.mxu0 %v411
  %v2650 = vpop.f32.mrf.mxu0
  %v2651 = vadd.f32 0.0, %v2650
  %v2652 = vpop.f32.mrf.mxu0
  %v2653 = vadd.f32 0.0, %v2652
  %2654 = vmatmul.bf16.gmra.mxu0 %v414
  %v2655 = vpop.f32.mrf.mxu0
  %v2656 = vadd.f32 0.0, %v2655
  %v2657 = vpop.f32.mrf.mxu0
  %v2658 = vadd.f32 0.0, %v2657
  %2659 = vmatmul.bf16.gmra.mxu0 %v417
  %v2660 = vpop.f32.mrf.mxu0
  %v2661 = vadd.f32 0.0, %v2660
  %v2662 = vpop.f32.mrf.mxu0
  %v2663 = vadd.f32 0.0, %v2662
  %2664 = vmatmul.bf16.gmra.mxu0 %v420
  %v2665 = vpop.f32.mrf.mxu0
  %v2666 = vadd.f32 0.0, %v2665
  %v2667 = vpop.f32.mrf.mxu0
  %v2668 = vadd.f32 0.0, %v2667
  %2669 = vmatmul.bf16.gmra.mxu0 %v423
  %v2670 = vpop.f32.mrf.mxu0
  %v2671 = vadd.f32 0.0, %v2670
  %v2672 = vpop.f32.mrf.mxu0
  %v2673 = vadd.f32 0.0, %v2672
  %2674 = vmatmul.bf16.gmra.mxu0 %v426
  %v2675 = vpop.f32.mrf.mxu0
  %v2676 = vadd.f32 0.0, %v2675
  %v2677 = vpop.f32.mrf.mxu0
  %v2678 = vadd.f32 0.0, %v2677
  %2679 = vmatmul.bf16.gmra.mxu0 %v429
  %v2680 = vpop.f32.mrf.mxu0
  %v2681 = vadd.f32 0.0, %v2680
  %v2682 = vpop.f32.mrf.mxu0
  %v2683 = vadd.f32 0.0, %v2682
  %2684 = vmatmul.bf16.gmra.mxu0 %v432
  %v2685 = vpop.f32.mrf.mxu0
  %v2686 = vadd.f32 0.0, %v2685
  %v2687 = vpop.f32.mrf.mxu0
  %v2688 = vadd.f32 0.0, %v2687
  %2689 = vdwg.mxu0
  %v2690 = vadd.f32 %v2499, %v2611
  %v2691 = vadd.f32 %v2502, %v2613
  %v2692 = vadd.f32 %v2505, %v2616
  %v2693 = vadd.f32 %v2508, %v2618
  %v2694 = vadd.f32 %v2511, %v2621
  %v2695 = vadd.f32 %v2514, %v2623
  %v2696 = vadd.f32 %v2517, %v2626
  %v2697 = vadd.f32 %v2520, %v2628
  %v2698 = vadd.f32 %v2523, %v2631
  %v2699 = vadd.f32 %v2526, %v2633
  %v2700 = vadd.f32 %v2529, %v2636
  %v2701 = vadd.f32 %v2532, %v2638
  %v2702 = vadd.f32 %v2535, %v2641
  %v2703 = vadd.f32 %v2538, %v2643
  %v2704 = vadd.f32 %v2541, %v2646
  %v2705 = vadd.f32 %v2544, %v2648
  %v2706 = vadd.f32 %v2547, %v2651
  %v2707 = vadd.f32 %v2550, %v2653
  %v2708 = vadd.f32 %v2553, %v2656
  %v2709 = vadd.f32 %v2556, %v2658
  %v2710 = vadd.f32 %v2559, %v2661
  %v2711 = vadd.f32 %v2562, %v2663
  %v2712 = vadd.f32 %v2565, %v2666
  %v2713 = vadd.f32 %v2568, %v2668
  %v2714 = vadd.f32 %v2571, %v2671
  %v2715 = vadd.f32 %v2574, %v2673
  %v2716 = vadd.f32 %v2577, %v2676
  %v2717 = vadd.f32 %v2580, %v2678
  %v2718 = vadd.f32 %v2583, %v2681
  %v2719 = vadd.f32 %v2586, %v2683
  %v2720 = vadd.f32 %v2589, %v2686
  %v2721 = vadd.f32 %v2592, %v2688
  %vm2722 = vcmp.gt.f32.partialorder %v2690, 0.0
  %vm2723 = vcmp.gt.f32.partialorder %v2691, 0.0
  %vm2724 = vcmp.gt.f32.partialorder %v2692, 0.0
  %vm2725 = vcmp.gt.f32.partialorder %v2693, 0.0
  %vm2726 = vcmp.gt.f32.partialorder %v2694, 0.0
  %vm2727 = vcmp.gt.f32.partialorder %v2695, 0.0
  %vm2728 = vcmp.gt.f32.partialorder %v2696, 0.0
  %vm2729 = vcmp.gt.f32.partialorder %v2697, 0.0
  %vm2730 = vcmp.gt.f32.partialorder %v2698, 0.0
  %vm2731 = vcmp.gt.f32.partialorder %v2699, 0.0
  %vm2732 = vcmp.gt.f32.partialorder %v2700, 0.0
  %vm2733 = vcmp.gt.f32.partialorder %v2701, 0.0
  %vm2734 = vcmp.gt.f32.partialorder %v2702, 0.0
  %vm2735 = vcmp.gt.f32.partialorder %v2703, 0.0
  %vm2736 = vcmp.gt.f32.partialorder %v2704, 0.0
  %vm2737 = vcmp.gt.f32.partialorder %v2705, 0.0
  %vm2738 = vcmp.gt.f32.partialorder %v2706, 0.0
  %vm2739 = vcmp.gt.f32.partialorder %v2707, 0.0
  %vm2740 = vcmp.gt.f32.partialorder %v2708, 0.0
  %vm2741 = vcmp.gt.f32.partialorder %v2709, 0.0
  %vm2742 = vcmp.gt.f32.partialorder %v2710, 0.0
  %vm2743 = vcmp.gt.f32.partialorder %v2711, 0.0
  %vm2744 = vcmp.gt.f32.partialorder %v2712, 0.0
  %vm2745 = vcmp.gt.f32.partialorder %v2713, 0.0
  %vm2746 = vcmp.gt.f32.partialorder %v2714, 0.0
  %vm2747 = vcmp.gt.f32.partialorder %v2715, 0.0
  %vm2748 = vcmp.gt.f32.partialorder %v2716, 0.0
  %vm2749 = vcmp.gt.f32.partialorder %v2717, 0.0
  %vm2750 = vcmp.gt.f32.partialorder %v2718, 0.0
  %vm2751 = vcmp.gt.f32.partialorder %v2719, 0.0
  %vm2752 = vcmp.gt.f32.partialorder %v2720, 0.0
  %vm2753 = vcmp.gt.f32.partialorder %v2721, 0.0
  %v2754 = vmul.f32 %v2690, 0.2
  %v2755 = vmul.f32 %v2691, 0.2
  %v2756 = vmul.f32 %v2692, 0.2
  %v2757 = vmul.f32 %v2693, 0.2
  %v2758 = vmul.f32 %v2694, 0.2
  %v2759 = vmul.f32 %v2695, 0.2
  %v2760 = vmul.f32 %v2696, 0.2
  %v2761 = vmul.f32 %v2697, 0.2
  %v2762 = vmul.f32 %v2698, 0.2
  %v2763 = vmul.f32 %v2699, 0.2
  %v2764 = vmul.f32 %v2700, 0.2
  %v2765 = vmul.f32 %v2701, 0.2
  %v2766 = vmul.f32 %v2702, 0.2
  %v2767 = vmul.f32 %v2703, 0.2
  %v2768 = vmul.f32 %v2704, 0.2
  %v2769 = vmul.f32 %v2705, 0.2
  %v2770 = vmul.f32 %v2706, 0.2
  %v2771 = vmul.f32 %v2707, 0.2
  %v2772 = vmul.f32 %v2708, 0.2
  %v2773 = vmul.f32 %v2709, 0.2
  %v2774 = vmul.f32 %v2710, 0.2
  %v2775 = vmul.f32 %v2711, 0.2
  %v2776 = vmul.f32 %v2712, 0.2
  %v2777 = vmul.f32 %v2713, 0.2
  %v2778 = vmul.f32 %v2714, 0.2
  %v2779 = vmul.f32 %v2715, 0.2
  %v2780 = vmul.f32 %v2716, 0.2
  %v2781 = vmul.f32 %v2717, 0.2
  %v2782 = vmul.f32 %v2718, 0.2
  %v2783 = vmul.f32 %v2719, 0.2
  %v2784 = vmul.f32 %v2720, 0.2
  %v2785 = vmul.f32 %v2721, 0.2
  %v2786 = vsel %vm2722, %v2690, %v2754
  %v2787 = vsel %vm2723, %v2691, %v2755
  %v2788 = vsel %vm2724, %v2692, %v2756
  %v2789 = vsel %vm2725, %v2693, %v2757
  %v2790 = vsel %vm2726, %v2694, %v2758
  %v2791 = vsel %vm2727, %v2695, %v2759
  %v2792 = vsel %vm2728, %v2696, %v2760
  %v2793 = vsel %vm2729, %v2697, %v2761
  %v2794 = vsel %vm2730, %v2698, %v2762
  %v2795 = vsel %vm2731, %v2699, %v2763
  %v2796 = vsel %vm2732, %v2700, %v2764
  %v2797 = vsel %vm2733, %v2701, %v2765
  %v2798 = vsel %vm2734, %v2702, %v2766
  %v2799 = vsel %vm2735, %v2703, %v2767
  %v2800 = vsel %vm2736, %v2704, %v2768
  %v2801 = vsel %vm2737, %v2705, %v2769
  %v2802 = vsel %vm2738, %v2706, %v2770
  %v2803 = vsel %vm2739, %v2707, %v2771
  %v2804 = vsel %vm2740, %v2708, %v2772
  %v2805 = vsel %vm2741, %v2709, %v2773
  %v2806 = vsel %vm2742, %v2710, %v2774
  %v2807 = vsel %vm2743, %v2711, %v2775
  %v2808 = vsel %vm2744, %v2712, %v2776
  %v2809 = vsel %vm2745, %v2713, %v2777
  %v2810 = vsel %vm2746, %v2714, %v2778
  %v2811 = vsel %vm2747, %v2715, %v2779
  %v2812 = vsel %vm2748, %v2716, %v2780
  %v2813 = vsel %vm2749, %v2717, %v2781
  %v2814 = vsel %vm2750, %v2718, %v2782
  %v2815 = vsel %vm2751, %v2719, %v2783
  %v2816 = vsel %vm2752, %v2720, %v2784
  %v2817 = vsel %vm2753, %v2721, %v2785
  %v2818 = vld [vmem:[#allocation8] sm:$0x1]
  %vm2819 = vcmask 7168
  %v2820 = vsel %vm2819, %v2786, -inf
  %v2821 = vsel %vm2819, %v2787, -inf
  %v2822 = vsel %vm2819, %v2788, -inf
  %v2823 = vsel %vm2819, %v2789, -inf
  %v2824 = vsel %vm2819, %v2790, -inf
  %v2825 = vmax.f32 %v2820, %v2824
  %v2826 = vsel %vm2819, %v2791, -inf
  %v2827 = vmax.f32 %v2821, %v2826
  %v2828 = vsel %vm2819, %v2792, -inf
  %v2829 = vmax.f32 %v2822, %v2828
  %v2830 = vsel %vm2819, %v2793, -inf
  %v2831 = vmax.f32 %v2823, %v2830
  %v2832 = vsel %vm2819, %v2794, -inf
  %v2833 = vmax.f32 %v2825, %v2832
  %v2834 = vsel %vm2819, %v2795, -inf
  %v2835 = vmax.f32 %v2827, %v2834
  %v2836 = vsel %vm2819, %v2796, -inf
  %v2837 = vmax.f32 %v2829, %v2836
  %v2838 = vsel %vm2819, %v2797, -inf
  %v2839 = vmax.f32 %v2831, %v2838
  %v2840 = vsel %vm2819, %v2798, -inf
  %v2841 = vmax.f32 %v2833, %v2840
  %v2842 = vsel %vm2819, %v2799, -inf
  %v2843 = vmax.f32 %v2835, %v2842
  %v2844 = vsel %vm2819, %v2800, -inf
  %v2845 = vmax.f32 %v2837, %v2844
  %v2846 = vsel %vm2819, %v2801, -inf
  %v2847 = vmax.f32 %v2839, %v2846
  %v2848 = vsel %vm2819, %v2802, -inf
  %v2849 = vmax.f32 %v2841, %v2848
  %v2850 = vsel %vm2819, %v2803, -inf
  %v2851 = vmax.f32 %v2843, %v2850
  %v2852 = vsel %vm2819, %v2804, -inf
  %v2853 = vmax.f32 %v2845, %v2852
  %v2854 = vsel %vm2819, %v2805, -inf
  %v2855 = vmax.f32 %v2847, %v2854
  %v2856 = vsel %vm2819, %v2806, -inf
  %v2857 = vmax.f32 %v2849, %v2856
  %v2858 = vsel %vm2819, %v2807, -inf
  %v2859 = vmax.f32 %v2851, %v2858
  %v2860 = vsel %vm2819, %v2808, -inf
  %v2861 = vmax.f32 %v2853, %v2860
  %v2862 = vsel %vm2819, %v2809, -inf
  %v2863 = vmax.f32 %v2855, %v2862
  %v2864 = vsel %vm2819, %v2810, -inf
  %v2865 = vmax.f32 %v2857, %v2864
  %v2866 = vsel %vm2819, %v2811, -inf
  %v2867 = vmax.f32 %v2859, %v2866
  %v2868 = vsel %vm2819, %v2812, -inf
  %v2869 = vmax.f32 %v2861, %v2868
  %v2870 = vsel %vm2819, %v2813, -inf
  %v2871 = vmax.f32 %v2863, %v2870
  %v2872 = vsel %vm2819, %v2814, -inf
  %v2873 = vmax.f32 %v2865, %v2872
  %v2874 = vsel %vm2819, %v2815, -inf
  %v2875 = vmax.f32 %v2867, %v2874
  %v2876 = vsel %vm2819, %v2816, -inf
  %v2877 = vmax.f32 %v2869, %v2876
  %v2878 = vsel %vm2819, %v2817, -inf
  %v2879 = vmax.f32 %v2871, %v2878
  %v2880 = vmax.f32 %v2873, %v2875
  %v2881 = vmax.f32 %v2877, %v2879
  %v2882 = vmax.f32 %v2880, %v2881
  %v2883 = vrot.slane %v2882, 4
  %v2884 = vmax.f32 %v2882, %v2883
  %v2885 = vrot.slane %v2884, 2
  %v2886 = vmax.f32 %v2884, %v2885
  %v2887 = vrot.slane %v2886, 1
  %v2888 = vmax.f32 %v2886, %v2887
  %v2889 = vmax.f32 %v2818, %v2888
  %v2890 = vsub.f32 %v2818, %v2889
  %v2891 = vmul.f32 %v2890, 1.442695
  %v2892 = vpow.pop %v2891
  %v2894 = vperm.slane %v2889, 0
  %v2896 = vsub.f32 %v2786, %v2894
  %v2897 = vsub.f32 %v2787, %v2894
  %v2898 = vsub.f32 %v2788, %v2894
  %v2899 = vsub.f32 %v2789, %v2894
  %v2900 = vsub.f32 %v2790, %v2894
  %v2901 = vsub.f32 %v2791, %v2894
  %v2902 = vsub.f32 %v2792, %v2894
  %v2903 = vsub.f32 %v2793, %v2894
  %v2904 = vsub.f32 %v2794, %v2894
  %v2905 = vsub.f32 %v2795, %v2894
  %v2906 = vsub.f32 %v2796, %v2894
  %v2907 = vsub.f32 %v2797, %v2894
  %v2908 = vsub.f32 %v2798, %v2894
  %v2909 = vsub.f32 %v2799, %v2894
  %v2910 = vsub.f32 %v2800, %v2894
  %v2911 = vsub.f32 %v2801, %v2894
  %v2912 = vsub.f32 %v2802, %v2894
  %v2913 = vsub.f32 %v2803, %v2894
  %v2914 = vsub.f32 %v2804, %v2894
  %v2915 = vsub.f32 %v2805, %v2894
  %v2916 = vsub.f32 %v2806, %v2894
  %v2917 = vsub.f32 %v2807, %v2894
  %v2918 = vsub.f32 %v2808, %v2894
  %v2919 = vsub.f32 %v2809, %v2894
  %v2920 = vsub.f32 %v2810, %v2894
  %v2921 = vsub.f32 %v2811, %v2894
  %v2922 = vsub.f32 %v2812, %v2894
  %v2923 = vsub.f32 %v2813, %v2894
  %v2924 = vsub.f32 %v2814, %v2894
  %v2925 = vsub.f32 %v2815, %v2894
  %v2926 = vsub.f32 %v2816, %v2894
  %v2927 = vsub.f32 %v2817, %v2894
  %v2928 = vmul.f32 %v2896, 1.442695
  %v2929 = vpow.pop %v2928
  %v2930 = vmul.f32 %v2897, 1.442695
  %v2931 = vpow.pop %v2930
  %v2932 = vmul.f32 %v2898, 1.442695
  %v2933 = vpow.pop %v2932
  %v2934 = vmul.f32 %v2899, 1.442695
  %v2935 = vpow.pop %v2934
  %v2936 = vmul.f32 %v2900, 1.442695
  %v2937 = vpow.pop %v2936
  %v2938 = vmul.f32 %v2901, 1.442695
  %v2939 = vpow.pop %v2938
  %v2940 = vmul.f32 %v2902, 1.442695
  %v2941 = vpow.pop %v2940
  %v2942 = vmul.f32 %v2903, 1.442695
  %v2943 = vpow.pop %v2942
  %v2944 = vmul.f32 %v2904, 1.442695
  %v2945 = vpow.pop %v2944
  %v2946 = vmul.f32 %v2905, 1.442695
  %v2947 = vpow.pop %v2946
  %v2948 = vmul.f32 %v2906, 1.442695
  %v2949 = vpow.pop %v2948
  %v2950 = vmul.f32 %v2907, 1.442695
  %v2951 = vpow.pop %v2950
  %v2952 = vmul.f32 %v2908, 1.442695
  %v2953 = vpow.pop %v2952
  %v2954 = vmul.f32 %v2909, 1.442695
  %v2955 = vpow.pop %v2954
  %v2956 = vmul.f32 %v2910, 1.442695
  %v2957 = vpow.pop %v2956
  %v2958 = vmul.f32 %v2911, 1.442695
  %v2959 = vpow.pop %v2958
  %v2960 = vmul.f32 %v2912, 1.442695
  %v2961 = vpow.pop %v2960
  %v2962 = vmul.f32 %v2913, 1.442695
  %v2963 = vpow.pop %v2962
  %v2964 = vmul.f32 %v2914, 1.442695
  %v2965 = vpow.pop %v2964
  %v2966 = vmul.f32 %v2915, 1.442695
  %v2967 = vpow.pop %v2966
  %v2968 = vmul.f32 %v2916, 1.442695
  %v2969 = vpow.pop %v2968
  %v2970 = vmul.f32 %v2917, 1.442695
  %v2971 = vpow.pop %v2970
  %v2972 = vmul.f32 %v2918, 1.442695
  %v2973 = vpow.pop %v2972
  %v2974 = vmul.f32 %v2919, 1.442695
  %v2975 = vpow.pop %v2974
  %v2976 = vmul.f32 %v2920, 1.442695
  %v2977 = vpow.pop %v2976
  %v2978 = vmul.f32 %v2921, 1.442695
  %v2979 = vpow.pop %v2978
  %v2980 = vmul.f32 %v2922, 1.442695
  %v2981 = vpow.pop %v2980
  %v2982 = vmul.f32 %v2923, 1.442695
  %v2983 = vpow.pop %v2982
  %v2984 = vmul.f32 %v2924, 1.442695
  %v2985 = vpow.pop %v2984
  %v2986 = vmul.f32 %v2925, 1.442695
  %v2987 = vpow.pop %v2986
  %v2988 = vmul.f32 %v2926, 1.442695
  %v2989 = vpow.pop %v2988
  %v2990 = vmul.f32 %v2927, 1.442695
  %v2991 = vpow.pop %v2990
  %v2992 = vld [vmem:[#allocation6] sm:$0xff]
  %v2993 = vld [vmem:[#allocation6 + $0x8] sm:$0xff]
  %v2995 = vperm.slane %v2892, 0
  %v2997 = vmul.f32 %v2992, %v2995
  %v2998 = vmul.f32 %v2993, %v2995
  %v2999 = vpack.c.bf16 %v2931, %v2929
  %v3000 = vpack.c.bf16 %v2935, %v2933
  %v3001 = vpack.c.bf16 %v2939, %v2937
  %v3002 = vpack.c.bf16 %v2943, %v2941
  %v3003 = vpack.c.bf16 %v2947, %v2945
  %v3004 = vpack.c.bf16 %v2951, %v2949
  %v3005 = vpack.c.bf16 %v2955, %v2953
  %v3006 = vpack.c.bf16 %v2959, %v2957
  %v3007 = vpack.c.bf16 %v2963, %v2961
  %v3008 = vpack.c.bf16 %v2967, %v2965
  %v3009 = vpack.c.bf16 %v2971, %v2969
  %v3010 = vpack.c.bf16 %v2975, %v2973
  %v3011 = vpack.c.bf16 %v2979, %v2977
  %v3012 = vpack.c.bf16 %v2983, %v2981
  %v3013 = vpack.c.bf16 %v2987, %v2985
  %v3014 = vpack.c.bf16 %v2991, %v2989
  %3015 = vmatpush.bf16.msra.mxu0 %v3006
  %3016 = vmatpush.bf16.msra.mxu0 %v3005
  %3017 = vmatpush.bf16.msra.mxu0 %v3004
  %3018 = vmatpush.bf16.msra.mxu0 %v3003
  %3019 = vmatpush.bf16.msra.mxu0 %v3002
  %3020 = vmatpush.bf16.msra.mxu0 %v3001
  %3021 = vmatpush.bf16.msra.mxu0 %v3000
  %3022 = vmatpush.bf16.msra.mxu0 %v2999
  %3023 = vmatmul.bf16.gmra.mxu0 %v2209
  %v3024 = vpop.f32.mrf.mxu0
  %v3025 = vadd.f32 0.0, %v3024
  %v3026 = vpop.f32.mrf.mxu0
  %v3027 = vadd.f32 0.0, %v3026
  %3028 = vdwg.mxu0
  %3029 = vmatpush.bf16.msra.mxu0 %v3014
  %3030 = vmatpush.bf16.msra.mxu0 %v3013
  %3031 = vmatpush.bf16.msra.mxu0 %v3012
  %3032 = vmatpush.bf16.msra.mxu0 %v3011
  %3033 = vmatpush.bf16.msra.mxu0 %v3010
  %3034 = vmatpush.bf16.msra.mxu0 %v3009
  %3035 = vmatpush.bf16.msra.mxu0 %v3008
  %3036 = vmatpush.bf16.msra.mxu0 %v3007
  %3037 = vmatmul.bf16.gmra.mxu0 %v2225
  %v3038 = vpop.f32.mrf.mxu0
  %v3039 = vadd.f32 %v3025, %v3038
  %v3040 = vpop.f32.mrf.mxu0
  %v3041 = vadd.f32 %v3027, %v3040
  %3042 = vdwg.mxu0
  %v3043 = vadd.f32 %v2997, %v3039
  %v3044 = vadd.f32 %v2998, %v3041
  %3045 = vst.msk [vmem:[#allocation6] sm:$0xff] %vm2819, %v3043
  %3046 = vst.msk [vmem:[#allocation6 + $0x8] sm:$0xff] %vm2819, %v3044
  %v3047 = vld [vmem:[#allocation7] sm:$0xff]
  %v3048 = vld [vmem:[#allocation7 + $0x8] sm:$0xff]
  %3049 = vset.pattern.permute.xlu0 0
  %3050 = vperm.xlu0 %3049, %v2995
  %v3051 = vpop.permute.xlu0 %3050
  %v3053 = vmul.f32 %v3047, %v3051
  %v3054 = vmul.f32 %v3048, %v3051
  %3056 = vset.pattern.permute.xlu0 0
  %3057 = vperm.xlu0 %3056, %v2929
  %v3058 = vpop.permute.xlu0 %3057
  %3061 = vset.pattern.permute.xlu0 0
  %3062 = vperm.xlu0 %3061, %v2931
  %v3063 = vpop.permute.xlu0 %3062
  %3066 = vset.pattern.permute.xlu0 0
  %3067 = vperm.xlu0 %3066, %v2933
  %v3068 = vpop.permute.xlu0 %3067
  %3071 = vset.pattern.permute.xlu0 0
  %3072 = vperm.xlu0 %3071, %v2935
  %v3073 = vpop.permute.xlu0 %3072
  %3076 = vset.pattern.permute.xlu0 0
  %3077 = vperm.xlu0 %3076, %v2937
  %v3078 = vpop.permute.xlu0 %3077
  %3081 = vset.pattern.permute.xlu0 0
  %3082 = vperm.xlu0 %3081, %v2939
  %v3083 = vpop.permute.xlu0 %3082
  %3086 = vset.pattern.permute.xlu0 0
  %3087 = vperm.xlu0 %3086, %v2941
  %v3088 = vpop.permute.xlu0 %3087
  %3091 = vset.pattern.permute.xlu0 0
  %3092 = vperm.xlu0 %3091, %v2943
  %v3093 = vpop.permute.xlu0 %3092
  %3096 = vset.pattern.permute.xlu0 0
  %3097 = vperm.xlu0 %3096, %v2945
  %v3098 = vpop.permute.xlu0 %3097
  %3101 = vset.pattern.permute.xlu0 0
  %3102 = vperm.xlu0 %3101, %v2947
  %v3103 = vpop.permute.xlu0 %3102
  %3106 = vset.pattern.permute.xlu0 0
  %3107 = vperm.xlu0 %3106, %v2949
  %v3108 = vpop.permute.xlu0 %3107
  %3111 = vset.pattern.permute.xlu0 0
  %3112 = vperm.xlu0 %3111, %v2951
  %v3113 = vpop.permute.xlu0 %3112
  %3116 = vset.pattern.permute.xlu0 0
  %3117 = vperm.xlu0 %3116, %v2953
  %v3118 = vpop.permute.xlu0 %3117
  %3121 = vset.pattern.permute.xlu0 0
  %3122 = vperm.xlu0 %3121, %v2955
  %v3123 = vpop.permute.xlu0 %3122
  %3126 = vset.pattern.permute.xlu0 0
  %3127 = vperm.xlu0 %3126, %v2957
  %v3128 = vpop.permute.xlu0 %3127
  %3131 = vset.pattern.permute.xlu0 0
  %3132 = vperm.xlu0 %3131, %v2959
  %v3133 = vpop.permute.xlu0 %3132
  %3136 = vset.pattern.permute.xlu0 0
  %3137 = vperm.xlu0 %3136, %v2961
  %v3138 = vpop.permute.xlu0 %3137
  %3141 = vset.pattern.permute.xlu0 0
  %3142 = vperm.xlu0 %3141, %v2963
  %v3143 = vpop.permute.xlu0 %3142
  %3146 = vset.pattern.permute.xlu0 0
  %3147 = vperm.xlu0 %3146, %v2965
  %v3148 = vpop.permute.xlu0 %3147
  %3151 = vset.pattern.permute.xlu0 0
  %3152 = vperm.xlu0 %3151, %v2967
  %v3153 = vpop.permute.xlu0 %3152
  %3156 = vset.pattern.permute.xlu0 0
  %3157 = vperm.xlu0 %3156, %v2969
  %v3158 = vpop.permute.xlu0 %3157
  %3161 = vset.pattern.permute.xlu0 0
  %3162 = vperm.xlu0 %3161, %v2971
  %v3163 = vpop.permute.xlu0 %3162
  %3166 = vset.pattern.permute.xlu0 0
  %3167 = vperm.xlu0 %3166, %v2973
  %v3168 = vpop.permute.xlu0 %3167
  %3171 = vset.pattern.permute.xlu0 0
  %3172 = vperm.xlu0 %3171, %v2975
  %v3173 = vpop.permute.xlu0 %3172
  %3176 = vset.pattern.permute.xlu0 0
  %3177 = vperm.xlu0 %3176, %v2977
  %v3178 = vpop.permute.xlu0 %3177
  %3181 = vset.pattern.permute.xlu0 0
  %3182 = vperm.xlu0 %3181, %v2979
  %v3183 = vpop.permute.xlu0 %3182
  %3186 = vset.pattern.permute.xlu0 0
  %3187 = vperm.xlu0 %3186, %v2981
  %v3188 = vpop.permute.xlu0 %3187
  %3191 = vset.pattern.permute.xlu0 0
  %3192 = vperm.xlu0 %3191, %v2983
  %v3193 = vpop.permute.xlu0 %3192
  %3196 = vset.pattern.permute.xlu0 0
  %3197 = vperm.xlu0 %3196, %v2985
  %v3198 = vpop.permute.xlu0 %3197
  %3201 = vset.pattern.permute.xlu0 0
  %3202 = vperm.xlu0 %3201, %v2987
  %v3203 = vpop.permute.xlu0 %3202
  %3206 = vset.pattern.permute.xlu0 0
  %3207 = vperm.xlu0 %3206, %v2989
  %v3208 = vpop.permute.xlu0 %3207
  %3211 = vset.pattern.permute.xlu0 0
  %3212 = vperm.xlu0 %3211, %v2991
  %v3213 = vpop.permute.xlu0 %3212
  %v3215 = vmul.f32 %v3058, %v2382
  %v3216 = vmul.f32 %v3063, %v2384
  %v3217 = vmul.f32 %v3068, %v2387
  %v3218 = vmul.f32 %v3073, %v2389
  %v3219 = vmul.f32 %v3078, %v2392
  %v3220 = vmul.f32 %v3083, %v2394
  %v3221 = vmul.f32 %v3088, %v2397
  %v3222 = vmul.f32 %v3093, %v2399
  %v3223 = vmul.f32 %v3098, %v2402
  %v3224 = vmul.f32 %v3103, %v2404
  %v3225 = vmul.f32 %v3108, %v2407
  %v3226 = vmul.f32 %v3113, %v2409
  %v3227 = vmul.f32 %v3118, %v2412
  %v3228 = vmul.f32 %v3123, %v2414
  %v3229 = vmul.f32 %v3128, %v2417
  %v3230 = vmul.f32 %v3133, %v2419
  %v3231 = vmul.f32 %v3138, %v2422
  %v3232 = vmul.f32 %v3143, %v2424
  %v3233 = vmul.f32 %v3148, %v2427
  %v3234 = vmul.f32 %v3153, %v2429
  %v3235 = vmul.f32 %v3158, %v2432
  %v3236 = vmul.f32 %v3163, %v2434
  %v3237 = vmul.f32 %v3168, %v2437
  %v3238 = vmul.f32 %v3173, %v2439
  %v3239 = vmul.f32 %v3178, %v2442
  %v3240 = vmul.f32 %v3183, %v2444
  %v3241 = vmul.f32 %v3188, %v2447
  %v3242 = vmul.f32 %v3193, %v2449
  %v3243 = vmul.f32 %v3198, %v2452
  %v3244 = vmul.f32 %v3203, %v2454
  %v3245 = vmul.f32 %v3208, %v2457
  %v3246 = vmul.f32 %v3213, %v2459
  %v3247 = vpack.c.bf16 %v3216, %v3215
  %v3248 = vpack.c.bf16 %v3218, %v3217
  %v3249 = vpack.c.bf16 %v3220, %v3219
  %v3250 = vpack.c.bf16 %v3222, %v3221
  %v3251 = vpack.c.bf16 %v3224, %v3223
  %v3252 = vpack.c.bf16 %v3226, %v3225
  %v3253 = vpack.c.bf16 %v3228, %v3227
  %v3254 = vpack.c.bf16 %v3230, %v3229
  %v3255 = vpack.c.bf16 %v3232, %v3231
  %v3256 = vpack.c.bf16 %v3234, %v3233
  %v3257 = vpack.c.bf16 %v3236, %v3235
  %v3258 = vpack.c.bf16 %v3238, %v3237
  %v3259 = vpack.c.bf16 %v3240, %v3239
  %v3260 = vpack.c.bf16 %v3242, %v3241
  %v3261 = vpack.c.bf16 %v3244, %v3243
  %v3262 = vpack.c.bf16 %v3246, %v3245
  %3263 = vmatpush.bf16.msra.mxu0 %v3254
  %3264 = vmatpush.bf16.msra.mxu0 %v3253
  %3265 = vmatpush.bf16.msra.mxu0 %v3252
  %3266 = vmatpush.bf16.msra.mxu0 %v3251
  %3267 = vmatpush.bf16.msra.mxu0 %v3250
  %3268 = vmatpush.bf16.msra.mxu0 %v3249
  %3269 = vmatpush.bf16.msra.mxu0 %v3248
  %3270 = vmatpush.bf16.msra.mxu0 %v3247
  %3271 = vmatmul.bf16.gmra.mxu0 %v2209
  %v3272 = vpop.f32.mrf.mxu0
  %v3273 = vadd.f32 0.0, %v3272
  %v3274 = vpop.f32.mrf.mxu0
  %v3275 = vadd.f32 0.0, %v3274
  %3276 = vdwg.mxu0
  %3277 = vmatpush.bf16.msra.mxu0 %v3262
  %3278 = vmatpush.bf16.msra.mxu0 %v3261
  %3279 = vmatpush.bf16.msra.mxu0 %v3260
  %3280 = vmatpush.bf16.msra.mxu0 %v3259
  %3281 = vmatpush.bf16.msra.mxu0 %v3258
  %3282 = vmatpush.bf16.msra.mxu0 %v3257
  %3283 = vmatpush.bf16.msra.mxu0 %v3256
  %3284 = vmatpush.bf16.msra.mxu0 %v3255
  %3285 = vmatmul.bf16.gmra.mxu0 %v2225
  %v3286 = vpop.f32.mrf.mxu0
  %v3287 = vadd.f32 %v3273, %v3286
  %v3288 = vpop.f32.mrf.mxu0
  %v3289 = vadd.f32 %v3275, %v3288
  %3290 = vdwg.mxu0
  %v3291 = vadd.f32 %v3053, %v3287
  %v3292 = vadd.f32 %v3054, %v3289
  %3293 = vst.msk [vmem:[#allocation7] sm:$0xff] %vm2263, %v3291
  %3294 = vst.msk [vmem:[#allocation7 + $0x8] sm:$0xff] %vm2263, %v3292
  %vm3295 = vcmask 0
  %3296 = vst.msk [vmem:[#allocation8] sm:$0x1] %vm3295, %v2889
  // Predicated region
  $region70: #{multi_relation_gnn_forward.2} parent=0 // pred_check
    %p3297 = pneg %p60
  $region71: #{multi_relation_gnn_forward.2} parent=0 // pred_check_branch
    %3299 = sbr.rel (%p3297) target = $region73
  $region72: #{multi_relation_gnn_forward.2} parent=0 // pred_region
    %v3300 = vld [vmem:[#allocation6] sm:$0xff]
    %v3301 = vld [vmem:[#allocation6 + $0x8] sm:$0xff]
    %vm3302 = vcmp.gt.f32.partialorder %v3300, 0.0
    %vm3303 = vcmp.gt.f32.partialorder %v3301, 0.0
    %v3304 = vsel %vm3302, %v3300, 1.0
    %v3305 = vsel %vm3303, %v3301, 1.0
    %v3306 = vld [vmem:[#allocation7] sm:$0xff]
    %v3307 = vld [vmem:[#allocation7 + $0x8] sm:$0xff]
    %3309 = vset.pattern.permute.xlu0 0
    %3310 = vperm.xlu0 %3309, %v3304
    %v3311 = vpop.permute.xlu0 %3310
    %3314 = vset.pattern.permute.xlu0 0
    %3315 = vperm.xlu0 %3314, %v3305
    %v3316 = vpop.permute.xlu0 %3315
    %v3318 = vrcp.pop %v3311
    %v3319 = vmul.f32 %v3311, %v3318
    %v3320 = vsub.f32 1.0, %v3319
    %v3321 = vmul.f32 %v3318, %v3320
    %v3322 = vadd.f32 %v3318, %v3321
    %vm3323 = vweird.f32 %v3311
    %vm3324 = vweird.f32 %v3318
    %vm3325 = vmor %vm3323, %vm3324
    %v3326 = vsel %vm3325, %v3318, %v3322
    %v3327 = vand.u32 2147483647, %v3311
    %vm3328 = vcmp.eq.f32.partialorder %v3327, 8.507059e+37
    %v3329 = vand.u32 %v3311, 2147483648
    %v3330 = vor.u32 1.1754944e-38, %v3329
    %v3331 = vsel %vm3328, %v3330, %v3326
    %v3332 = vmul.f32 %v3306, %v3331
    %v3333 = vrcp.pop %v3316
    %v3334 = vmul.f32 %v3316, %v3333
    %v3335 = vsub.f32 1.0, %v3334
    %v3336 = vmul.f32 %v3333, %v3335
    %v3337 = vadd.f32 %v3333, %v3336
    %vm3338 = vweird.f32 %v3316
    %vm3339 = vweird.f32 %v3333
    %vm3340 = vmor %vm3338, %vm3339
    %v3341 = vsel %vm3340, %v3333, %v3337
    %v3342 = vand.u32 2147483647, %v3316
    %vm3343 = vcmp.eq.f32.partialorder %v3342, 8.507059e+37
    %v3344 = vand.u32 %v3316, 2147483648
    %v3345 = vor.u32 1.1754944e-38, %v3344
    %v3346 = vsel %vm3343, %v3345, %v3341
    %v3347 = vmul.f32 %v3307, %v3346
    %v3348 = vld [vmem:[%s6] sm:$0x1]
    %v3350 = vperm.slane %v3348, 0
    %v3352 = vadd.f32 %v3332, %v3350
    %v3353 = vadd.f32 %v3347, %v3350
    %3354 = vst.msk [vmem:[%s17] sm:$0xff] %vm2263, %v3352
    %3355 = vst.msk [vmem:[%s17 + $0x8] sm:$0xff] %vm2263, %v3353
  $region73: #{multi_relation_gnn_forward.2} parent=0 // pred_fallthru
    _
  // Predicated region
  $region74: #{multi_relation_gnn_forward.2} parent=0 // pred_check
    _
  $region75: #{multi_relation_gnn_forward.2} parent=0 // pred_check_branch
    %3357 = sbr.rel (0) target = $region77
  $region76: #{multi_relation_gnn_forward.2} parent=0 // pred_region
    _
  $region77: #{multi_relation_gnn_forward.2} parent=0 // pred_fallthru
    _
  // Predicated region
  $region78: #{multi_relation_gnn_forward.2} parent=0 // pred_check
    _
  $region79: #{multi_relation_gnn_forward.2} parent=0 // pred_check_branch
    %3359 = sbr.rel (0) target = $region81
  $region80: #{multi_relation_gnn_forward.2} parent=0 // pred_region
    _
  $region81: #{multi_relation_gnn_forward.2} parent=0 // pred_fallthru
    _
  // Predicated region
  $region82: #{multi_relation_gnn_forward.2} parent=0 // pred_check
    _
  $region83: #{multi_relation_gnn_forward.2} parent=0 // pred_check_branch
    %3361 = sbr.rel (0) target = $region85
  $region84: #{multi_relation_gnn_forward.2} parent=0 // pred_region
    _
  $region85: #{multi_relation_gnn_forward.2} parent=0 // pred_fallthru
    _
  // Predicated region
  $region86: #{multi_relation_gnn_forward.2} parent=0 // pred_check
    _
  $region87: #{multi_relation_gnn_forward.2} parent=0 // pred_check_branch
    %3363 = sbr.rel (0) target = $region89
  $region88: #{multi_relation_gnn_forward.2} parent=0 // pred_region
    _
  $region89: #{multi_relation_gnn_forward.2} parent=0 // pred_fallthru
    _
  // Predicated region
  $region90: #{multi_relation_gnn_forward.2} parent=0 // pred_check
    _
  $region91: #{multi_relation_gnn_forward.2} parent=0 // pred_check_branch
    %3365 = sbr.rel (0) target = $region93
  $region92: #{multi_relation_gnn_forward.2} parent=0 // pred_region
    _
  $region93: #{multi_relation_gnn_forward.2} parent=0 // pred_fallthru
    _
  // Predicated region
  $region94: #{multi_relation_gnn_forward.2} parent=0 // pred_check
    _
  $region95: #{multi_relation_gnn_forward.2} parent=0 // pred_check_branch
    %3367 = sbr.rel (0) target = $region97
  $region96: #{multi_relation_gnn_forward.2} parent=0 // pred_region
    _
  $region97: #{multi_relation_gnn_forward.2} parent=0 // pred_fallthru
    _
  // Predicated region
  $region98: #{multi_relation_gnn_forward.2} parent=0 // pred_check
    _
  $region99: #{multi_relation_gnn_forward.2} parent=0 // pred_check_branch
    %3369 = sbr.rel (0) target = $region101
  $region100: #{multi_relation_gnn_forward.2} parent=0 // pred_region
    _
  $region101: #{multi_relation_gnn_forward.2} parent=0 // pred_fallthru
    _
  // Predicated region
  $region102: #{multi_relation_gnn_forward.2} parent=0 // pred_check
    _
  $region103: #{multi_relation_gnn_forward.2} parent=0 // pred_check_branch
    %3371 = sbr.rel (0) target = $region105
  $region104: #{multi_relation_gnn_forward.2} parent=0 // pred_region
    _
  $region105: #{multi_relation_gnn_forward.2} parent=0 // pred_fallthru
    _

</llo_original>
